<compile_context>
chip_gen: v7x
topology: tpu7x:2x2x1
jax: 0.10.0
libtpu: 0.0.40
codegen_flags: <defaults>
</compile_context>

<pallas_src>
import functools
import math

import jax
import jax.numpy as jnp
from jax.experimental import pallas as pl
from jax.experimental.pallas import tpu as pltpu

LN_EPS = 1e-12          # LayerNorm(eps=1e-12), biased variance
MASK_FILL = -10000.0    # score.masked_fill(mask == 0, -10000)
MXU_DTYPE = jnp.bfloat16


# ----------------------------------------------------------------------------
# In-kernel math helpers.
# ----------------------------------------------------------------------------
def _layer_norm(x, gamma, beta):
    # x: (..., D) f32 ; gamma/beta: (1, D) f32
    mean = jnp.mean(x, axis=-1, keepdims=True)
    var = jnp.mean((x - mean) ** 2, axis=-1, keepdims=True)   # unbiased=False
    return (x - mean) * jax.lax.rsqrt(var + LN_EPS) * gamma + beta


def _split_heads(x3, n_head, dh):
    # (TB, S, D) -> (H*TB, S, dh) with z = h*TB + b.
    # Static lane slices + a leading-axis stack: layout-only ops, no matmuls.
    tb, s, _ = x3.shape
    parts = [x3[:, :, h * dh:(h + 1) * dh] for h in range(n_head)]
    return jnp.stack(parts, axis=0).reshape(n_head * tb, s, dh)


def _mha(q_in, kv_in, keep, w_q, b_q, w_kv, b_kv, w_o, b_o, *,
         n_head, approx_recip):
    """Multi-head attention with fused lane-dense projections.

    q_in : (TB, Sq, D)  f32      kv_in: (TB, Sk, D)  f32
    keep : (TB, Sq, Sk) f32  (1 = attend, 0 = masked)
    w_q  : (D, D)  bf16   b_q : (1, D)  f32
    w_kv : (D, 2D) bf16   b_kv: (1, 2D) f32
    w_o  : (D, D)  bf16   b_o : (1, D)  f32
    returns (TB, Sq, D) f32
    """
    tb, sq, d = q_in.shape
    sk = kv_in.shape[1]
    dh = d // n_head
    scale = 1.0 / math.sqrt(dh)

    # Fused, lane-dense projections (K = D contraction fills the MXU).
    q2 = jnp.dot(q_in.reshape(tb * sq, d).astype(MXU_DTYPE), w_q,
                 preferred_element_type=jnp.float32) + b_q             # (TB*Sq, D)
    kv2 = jnp.dot(kv_in.reshape(tb * sk, d).astype(MXU_DTYPE), w_kv,
                  preferred_element_type=jnp.float32) + b_kv           # (TB*Sk, 2D)
    k2 = kv2[:, :d]
    v2 = kv2[:, d:]

    # Fold 1/sqrt(dh) into q, then split heads onto one leading batch axis.
    qz = _split_heads((q2 * scale).reshape(tb, sq, d), n_head, dh).astype(MXU_DTYPE)
    kz = _split_heads(k2.reshape(tb, sk, d), n_head, dh).astype(MXU_DTYPE)
    vz = _split_heads(v2.reshape(tb, sk, d), n_head, dh).astype(MXU_DTYPE)

    s_z = jnp.einsum("zqd,zkd->zqk", qz, kz,
                     preferred_element_type=jnp.float32)               # (Z, Sq, Sk)

    # Exact masked_fill(mask == 0, -10000) as a single mul + add; the mask
    # broadcasts over the leading head axis (no per-head mask copies).
    s4 = s_z.reshape(n_head, tb, sq, sk)
    bias = (1.0 - keep) * MASK_FILL                                    # (TB, Sq, Sk)
    s4 = s4 * keep[None] + bias[None]

    # f32 softmax statistics.
    s4 = s4 - jnp.max(s4, axis=-1, keepdims=True)
    p4 = jnp.exp(s4)
    denom = jnp.sum(p4, axis=-1, keepdims=True)
    if approx_recip:
        p4 = p4 * pl.reciprocal(denom, approx=True)   # EUP slot, ~free
    else:
        p4 = p4 / denom

    ctx_z = jnp.einsum("zqk,zkd->zqd",
                       p4.reshape(n_head * tb, sq, sk).astype(MXU_DTYPE), vz,
                       preferred_element_type=jnp.float32)             # (Z, Sq, dh)

    # Merge heads back onto the lane axis (same order as torch's concat),
    # then one lane-dense (TB*Sq, D) @ (D, D) output projection.
    ctx4 = ctx_z.reshape(n_head, tb, sq, dh)
    ctx3 = jnp.concatenate([ctx4[h] for h in range(n_head)], axis=-1)  # (TB, Sq, D)
    out2 = jnp.dot(ctx3.reshape(tb * sq, d).astype(MXU_DTYPE), w_o,
                   preferred_element_type=jnp.float32) + b_o
    return out2.reshape(tb, sq, d)


# ----------------------------------------------------------------------------
# Pallas kernel: one grid step processes TB packed batch elements.
# ----------------------------------------------------------------------------
def _decoder_layer_kernel(dec_ref, enc_ref, m1_ref, m2_ref,
                          sa_wq_ref, sa_bq_ref, sa_wkv_ref, sa_bkv_ref,
                          sa_wo_ref, sa_bo_ref,
                          ca_wq_ref, ca_bq_ref, ca_wkv_ref, ca_bkv_ref,
                          ca_wo_ref, ca_bo_ref,
                          ln_g_ref, ln_b_ref,
                          ff_w1_ref, ff_b1_ref, ff_w2_ref, ff_b2_ref,
                          out_ref, *, n_head, approx_recip=True):
    dec = dec_ref[...]                     # (TB, S, D)  f32 residual path
    enc = enc_ref[...]                     # (TB, Se, D) f32
    keep1 = (m1_ref[...].astype(jnp.int32) != 0).astype(jnp.float32)
    keep2 = (m2_ref[...].astype(jnp.int32) != 0).astype(jnp.float32)
    ln_g = ln_g_ref[...]
    ln_b = ln_b_ref[...]

    tb, s, d = dec.shape

    # --- self-attention + Add & LN ------------------------------------------
    sa = _mha(dec, dec, keep1,
              sa_wq_ref[...], sa_bq_ref[...], sa_wkv_ref[...], sa_bkv_ref[...],
              sa_wo_ref[...], sa_bo_ref[...],
              n_head=n_head, approx_recip=approx_recip)
    h1 = _layer_norm(dec + sa, ln_g[0:1], ln_b[0:1])

    # --- cross-attention + Add & LN -----------------------------------------
    ca = _mha(h1, enc, keep2,
              ca_wq_ref[...], ca_bq_ref[...], ca_wkv_ref[...], ca_bkv_ref[...],
              ca_wo_ref[...], ca_bo_ref[...],
              n_head=n_head, approx_recip=approx_recip)
    h2 = _layer_norm(ca + h1, ln_g[1:2], ln_b[1:2])

    # --- FFN + Add & LN on flattened (TB*S, D) lane-dense tiles --------------
    h2f = h2.reshape(tb * s, d)
    ff = jnp.dot(h2f.astype(MXU_DTYPE), ff_w1_ref[...],
                 preferred_element_type=jnp.float32) + ff_b1_ref[...]
    ff = jnp.maximum(ff, 0.0)
    ff = jnp.dot(ff.astype(MXU_DTYPE), ff_w2_ref[...],
                 preferred_element_type=jnp.float32) + ff_b2_ref[...]
    h3 = _layer_norm(ff + h2f, ln_g[2:3], ln_b[2:3])
    out_ref[...] = h3.reshape(tb, s, d).astype(out_ref.dtype)


# ----------------------------------------------------------------------------
# Host-side parameter preparation (math layout, lane-dense weights).
# ----------------------------------------------------------------------------
def prepare_params(params, n_head, mxu_dtype=MXU_DTYPE):
    d_model = params["sa_wq"].shape[0]
    assert d_model % n_head == 0

    def attn(prefix):
        w_q = params[f"{prefix}_wq"].astype(mxu_dtype)                      # (D, D)
        w_kv = jnp.concatenate(
            [params[f"{prefix}_wk"], params[f"{prefix}_wv"]], axis=1
        ).astype(mxu_dtype)                                                 # (D, 2D)
        b_q = params[f"{prefix}_bq"].reshape(1, d_model).astype(jnp.float32)
        b_kv = jnp.concatenate(
            [params[f"{prefix}_bk"], params[f"{prefix}_bv"]], axis=0
        ).reshape(1, 2 * d_model).astype(jnp.float32)
        w_o = params[f"{prefix}_wo"].astype(mxu_dtype)                      # (D, D)
        b_o = params[f"{prefix}_bo"].reshape(1, d_model).astype(jnp.float32)
        return w_q, b_q, w_kv, b_kv, w_o, b_o

    sa = attn("sa")
    ca = attn("ca")
    return {
        "sa_wq": sa[0], "sa_bq": sa[1], "sa_wkv": sa[2], "sa_bkv": sa[3],
        "sa_wo": sa[4], "sa_bo": sa[5],
        "ca_wq": ca[0], "ca_bq": ca[1], "ca_wkv": ca[2], "ca_bkv": ca[3],
        "ca_wo": ca[4], "ca_bo": ca[5],
        "ln_g": jnp.stack([params["ln1_g"], params["ln2_g"],
                           params["ln3_g"]], 0).astype(jnp.float32),
        "ln_b": jnp.stack([params["ln1_b"], params["ln2_b"],
                           params["ln3_b"]], 0).astype(jnp.float32),
        "ff_w1": params["ff_w1"].astype(mxu_dtype),
        "ff_b1": params["ff_b1"].reshape(1, -1).astype(jnp.float32),
        "ff_w2": params["ff_w2"].astype(mxu_dtype),
        "ff_b2": params["ff_b2"].reshape(1, -1).astype(jnp.float32),
    }


# ----------------------------------------------------------------------------
# Wrapper: grid over packed batch blocks.
# ----------------------------------------------------------------------------
def _vmem_limit_bytes():
    # Generation-aware scoped-VMEM limit: ~3/4 of physical VMEM
    # (~48 MiB on v7x's 64 MiB, ~96 MiB on v5e/v6e's 128 MiB).
    cap = None
    try:
        cap = getattr(pltpu.get_tpu_info(), "vmem_capacity_bytes", None)
    except Exception:
        cap = None
    if not cap:
        return 48 * 1024 * 1024     # conservative fallback: fits every generation
    return int(min(int(cap) * 3 // 4, 100 * 1024 * 1024))


def decoder_layer(dec, enc, mask1, mask2, params, *, n_head, batch_block=None):
    B, S, D = dec.shape
    Se = enc.shape[1]
    assert D % n_head == 0
    p = prepare_params(params, n_head)

    # Batch packing: TB batch elements per grid step fills the MXU M dim and
    # amortizes per-step pipeline overhead; cap at B // 2 so the 'parallel'
    # grid axis always has >= 2 steps for v7x's two TensorCores.
    if batch_block is None:
        batch_block = max(1, min(B, 256 // max(S, 1)))
    if B >= 2:
        batch_block = min(batch_block, B // 2)
    batch_block = max(1, min(batch_block, B))
    while B % batch_block:
        batch_block -= 1
    TB = batch_block
    nb = B // TB

    dec_f = dec.astype(jnp.float32)     # residual path stays f32 (module fidelity)
    enc_f = enc.astype(jnp.float32)
    mask1_i8 = mask1.astype(jnp.int8)   # int8 masks: 4x less DMA/VMEM than int32
    mask2_i8 = mask2.astype(jnp.int8)

    kernel = functools.partial(_decoder_layer_kernel, n_head=n_head)

    def _const(arr):  # grid-invariant block: whole array, fixed index 0
        nd = arr.ndim
        return pl.BlockSpec(arr.shape, lambda i, _nd=nd: (0,) * _nd)

    grid_spec = pltpu.PrefetchScalarGridSpec(
        num_scalar_prefetch=0,
        grid=(nb,),
        in_specs=[
            pl.BlockSpec((TB, S, D), lambda i: (i, 0, 0)),     # dec (f32)
            pl.BlockSpec((TB, Se, D), lambda i: (i, 0, 0)),    # enc (f32)
            pl.BlockSpec((TB, S, S), lambda i: (i, 0, 0)),     # self mask (int8)
            pl.BlockSpec((TB, S, Se), lambda i: (i, 0, 0)),    # cross mask (int8)
            _const(p["sa_wq"]), _const(p["sa_bq"]),
            _const(p["sa_wkv"]), _const(p["sa_bkv"]),
            _const(p["sa_wo"]), _const(p["sa_bo"]),
            _const(p["ca_wq"]), _const(p["ca_bq"]),
            _const(p["ca_wkv"]), _const(p["ca_bkv"]),
            _const(p["ca_wo"]), _const(p["ca_bo"]),
            _const(p["ln_g"]), _const(p["ln_b"]),
            _const(p["ff_w1"]), _const(p["ff_b1"]),
            _const(p["ff_w2"]), _const(p["ff_b2"]),
        ],
        out_specs=pl.BlockSpec((TB, S, D), lambda i: (i, 0, 0)),
    )

    return pl.pallas_call(
        kernel,
        out_shape=jax.ShapeDtypeStruct((B, S, D), jnp.float32),
        grid_spec=grid_spec,
        compiler_params=pltpu.CompilerParams(
            dimension_semantics=("parallel",),
            vmem_limit_bytes=_vmem_limit_bytes(),
        ),
    )(dec_f, enc_f, mask1_i8, mask2_i8,
      p["sa_wq"], p["sa_bq"], p["sa_wkv"], p["sa_bkv"], p["sa_wo"], p["sa_bo"],
      p["ca_wq"], p["ca_bq"], p["ca_wkv"], p["ca_bkv"], p["ca_wo"], p["ca_bo"],
      p["ln_g"], p["ln_b"],
      p["ff_w1"], p["ff_b1"], p["ff_w2"], p["ff_b2"])


# ----------------------------------------------------------------------------
# Pure-JAX reference: straightforward full-projection f32 implementation that
# mirrors the PyTorch module (independent of the kernel's layouts/precision).
# ----------------------------------------------------------------------------
def decoder_layer_ref(dec, enc, mask1, mask2, params, *, n_head):
    def mha(q_in, kv_in, mask, pre):
        B, Sq, D = q_in.shape
        Sk = kv_in.shape[1]
        H, dh = n_head, D // n_head
        q = q_in @ params[f"{pre}_wq"] + params[f"{pre}_bq"]
        k = kv_in @ params[f"{pre}_wk"] + params[f"{pre}_bk"]
        v = kv_in @ params[f"{pre}_wv"] + params[f"{pre}_bv"]
        q = q.reshape(B, Sq, H, dh).transpose(0, 2, 1, 3)
        k = k.reshape(B, Sk, H, dh).transpose(0, 2, 1, 3)
        v = v.reshape(B, Sk, H, dh).transpose(0, 2, 1, 3)
        s = jnp.einsum("bhqd,bhkd->bhqk", q, k) / jnp.sqrt(float(dh))
        s = jnp.where(mask[:, None] == 0, MASK_FILL, s)
        pr = jax.nn.softmax(s, axis=-1)
        ctx = jnp.einsum("bhqk,bhkd->bhqd", pr, v)
        ctx = ctx.transpose(0, 2, 1, 3).reshape(B, Sq, D)
        return ctx @ params[f"{pre}_wo"] + params[f"{pre}_bo"]

    def ln(x, g, b):
        mean = jnp.mean(x, axis=-1, keepdims=True)
        var = jnp.mean((x - mean) ** 2, axis=-1, keepdims=True)
        return (x - mean) * jax.lax.rsqrt(var + LN_EPS) * g + b

    sa = mha(dec, dec, mask1, "sa")
    h1 = ln(dec + sa, params["ln1_g"], params["ln1_b"])
    ca = mha(h1, enc, mask2, "ca")
    h2 = ln(ca + h1, params["ln2_g"], params["ln2_b"])
    ff = jnp.maximum(h2 @ params["ff_w1"] + params["ff_b1"], 0.0)
    ff = ff @ params["ff_w2"] + params["ff_b2"]
    return ln(ff + h2, params["ln3_g"], params["ln3_b"])


# ----------------------------------------------------------------------------
# Deterministic parameter init + demo run.
# ----------------------------------------------------------------------------
def init_params(key, d_model, hidden):
    ks = list(jax.random.split(key, 26))
    it = iter(ks)
    scale = 0.05

    def rnd(shape):
        return scale * jax.random.normal(next(it), shape, jnp.float32)

    p = {}
    for name in ("sa", "ca"):
        for proj in ("wq", "wk", "wv", "wo"):
            p[f"{name}_{proj}"] = rnd((d_model, d_model))
        for proj in ("bq", "bk", "bv", "bo"):
            p[f"{name}_{proj}"] = rnd((d_model,))
    p["ff_w1"] = rnd((d_model, hidden))
    p["ff_b1"] = rnd((hidden,))
    p["ff_w2"] = rnd((hidden, d_model))
    p["ff_b2"] = rnd((d_model,))
    for i in (1, 2, 3):
        p[f"ln{i}_g"] = 1.0 + 0.1 * jax.random.normal(next(it), (d_model,), jnp.float32)
        p[f"ln{i}_b"] = 0.1 * jax.random.normal(next(it), (d_model,), jnp.float32)
    return p


if __name__ == "__main__":
    B, S_dec, S_enc = 4, 8, 8
    d_model, n_head, hidden = 64, 4, 128

    key = jax.random.PRNGKey(0)
    k_dec, k_enc, k_par = jax.random.split(key, 3)

    dec = jax.random.normal(k_dec, (B, S_dec, d_model), jnp.float32)
    enc = jax.random.normal(k_enc, (B, S_enc, d_model), jnp.float32)

    # self-attention: causal mask; cross-attention: full visibility
    causal = jnp.tril(jnp.ones((S_dec, S_dec), jnp.int32))
    mask1 = jnp.broadcast_to(causal, (B, S_dec, S_dec))
    mask2 = jnp.ones((B, S_dec, S_enc), jnp.int32)

    params = init_params(k_par, d_model, hidden)

    out = decoder_layer(dec, enc, mask1, mask2, params, n_head=n_head)
    out = jax.block_until_ready(out)

    ref = decoder_layer_ref(dec, enc, mask1, mask2, params, n_head=n_head)
    assert out.shape == (B, S_dec, d_model)
    max_err = float(jnp.max(jnp.abs(out - ref)))
    # bf16 MXU feeds + approximate softmax reciprocal vs full-f32 reference.
    assert bool(jnp.allclose(out, ref, atol=5e-2, rtol=5e-2)), f"max abs err {max_err}"

    print("KERNEL_OK")
</pallas_src>

<mosaic_0001>
module attributes {stable_mosaic.version = 11 : i64} {
  func.func @_decoder_layer_kernel(%arg0: i32, %arg1: memref<2x8x64xf32, #tpu.memory_space<vmem>>, %arg2: memref<2x8x64xf32, #tpu.memory_space<vmem>>, %arg3: memref<2x8x8xi8, #tpu.memory_space<vmem>>, %arg4: memref<2x8x8xi8, #tpu.memory_space<vmem>>, %arg5: memref<64x64xbf16, #tpu.memory_space<vmem>>, %arg6: memref<1x64xf32, #tpu.memory_space<vmem>>, %arg7: memref<64x128xbf16, #tpu.memory_space<vmem>>, %arg8: memref<1x128xf32, #tpu.memory_space<vmem>>, %arg9: memref<64x64xbf16, #tpu.memory_space<vmem>>, %arg10: memref<1x64xf32, #tpu.memory_space<vmem>>, %arg11: memref<64x64xbf16, #tpu.memory_space<vmem>>, %arg12: memref<1x64xf32, #tpu.memory_space<vmem>>, %arg13: memref<64x128xbf16, #tpu.memory_space<vmem>>, %arg14: memref<1x128xf32, #tpu.memory_space<vmem>>, %arg15: memref<64x64xbf16, #tpu.memory_space<vmem>>, %arg16: memref<1x64xf32, #tpu.memory_space<vmem>>, %arg17: memref<3x64xf32, #tpu.memory_space<vmem>>, %arg18: memref<3x64xf32, #tpu.memory_space<vmem>>, %arg19: memref<64x128xbf16, #tpu.memory_space<vmem>>, %arg20: memref<1x128xf32, #tpu.memory_space<vmem>>, %arg21: memref<128x64xbf16, #tpu.memory_space<vmem>>, %arg22: memref<1x64xf32, #tpu.memory_space<vmem>>, %arg23: memref<2x8x64xf32, #tpu.memory_space<vmem>>) attributes {dimension_semantics = [#tpu.dimension_semantics<parallel>], iteration_bounds = array<i64: 2>, scalar_prefetch = 0 : i64, scratch_operands = 0 : i64, tpu.core_type = #tpu.core_type<tc>, window_params = [{transform_indices = @transform_0, window_bounds = array<i64: 2, 8, 64>}, {transform_indices = @transform_1, window_bounds = array<i64: 2, 8, 64>}, {transform_indices = @transform_2, window_bounds = array<i64: 2, 8, 8>}, {transform_indices = @transform_3, window_bounds = array<i64: 2, 8, 8>}, {pipeline_mode = #tpu.pipeline_mode<synchronous>, transform_indices = @transform_4, window_bounds = array<i64: 64, 64>}, {pipeline_mode = #tpu.pipeline_mode<synchronous>, transform_indices = @transform_5, window_bounds = array<i64: 1, 64>}, {pipeline_mode = #tpu.pipeline_mode<synchronous>, transform_indices = @transform_6, window_bounds = array<i64: 64, 128>}, {pipeline_mode = #tpu.pipeline_mode<synchronous>, transform_indices = @transform_7, window_bounds = array<i64: 1, 128>}, {pipeline_mode = #tpu.pipeline_mode<synchronous>, transform_indices = @transform_8, window_bounds = array<i64: 64, 64>}, {pipeline_mode = #tpu.pipeline_mode<synchronous>, transform_indices = @transform_9, window_bounds = array<i64: 1, 64>}, {pipeline_mode = #tpu.pipeline_mode<synchronous>, transform_indices = @transform_10, window_bounds = array<i64: 64, 64>}, {pipeline_mode = #tpu.pipeline_mode<synchronous>, transform_indices = @transform_11, window_bounds = array<i64: 1, 64>}, {pipeline_mode = #tpu.pipeline_mode<synchronous>, transform_indices = @transform_12, window_bounds = array<i64: 64, 128>}, {pipeline_mode = #tpu.pipeline_mode<synchronous>, transform_indices = @transform_13, window_bounds = array<i64: 1, 128>}, {pipeline_mode = #tpu.pipeline_mode<synchronous>, transform_indices = @transform_14, window_bounds = array<i64: 64, 64>}, {pipeline_mode = #tpu.pipeline_mode<synchronous>, transform_indices = @transform_15, window_bounds = array<i64: 1, 64>}, {pipeline_mode = #tpu.pipeline_mode<synchronous>, transform_indices = @transform_16, window_bounds = array<i64: 3, 64>}, {pipeline_mode = #tpu.pipeline_mode<synchronous>, transform_indices = @transform_17, window_bounds = array<i64: 3, 64>}, {pipeline_mode = #tpu.pipeline_mode<synchronous>, transform_indices = @transform_18, window_bounds = array<i64: 64, 128>}, {pipeline_mode = #tpu.pipeline_mode<synchronous>, transform_indices = @transform_19, window_bounds = array<i64: 1, 128>}, {pipeline_mode = #tpu.pipeline_mode<synchronous>, transform_indices = @transform_20, window_bounds = array<i64: 128, 64>}, {pipeline_mode = #tpu.pipeline_mode<synchronous>, transform_indices = @transform_21, window_bounds = array<i64: 1, 64>}, {transform_indices = @transform_22, window_bounds = array<i64: 2, 8, 64>}]} {
    %c0 = arith.constant 0 : index
    %c0_0 = arith.constant 0 : index
    %c0_1 = arith.constant 0 : index
    %0 = vector.load %arg1[%c0, %c0_0, %c0_1] : memref<2x8x64xf32, #tpu.memory_space<vmem>>, vector<2x8x64xf32>
    %c0_2 = arith.constant 0 : index
    %c0_3 = arith.constant 0 : index
    %c0_4 = arith.constant 0 : index
    %1 = vector.load %arg2[%c0_2, %c0_3, %c0_4] : memref<2x8x64xf32, #tpu.memory_space<vmem>>, vector<2x8x64xf32>
    %c0_5 = arith.constant 0 : index
    %c0_6 = arith.constant 0 : index
    %c0_7 = arith.constant 0 : index
    %2 = vector.load %arg3[%c0_5, %c0_6, %c0_7] : memref<2x8x8xi8, #tpu.memory_space<vmem>>, vector<2x8x8xi8>
    %3 = arith.extsi %2 : vector<2x8x8xi8> to vector<2x8x8xi32>
    %c0_i32 = arith.constant 0 : i32
    %4 = vector.broadcast %c0_i32 : i32 to vector<2x8x8xi32>
    %5 = arith.cmpi ne, %3, %4 : vector<2x8x8xi32>
    %6 = arith.extui %5 : vector<2x8x8xi1> to vector<2x8x8xi32>
    %7 = arith.sitofp %6 : vector<2x8x8xi32> to vector<2x8x8xf32>
    %c0_8 = arith.constant 0 : index
    %c0_9 = arith.constant 0 : index
    %c0_10 = arith.constant 0 : index
    %8 = vector.load %arg4[%c0_8, %c0_9, %c0_10] : memref<2x8x8xi8, #tpu.memory_space<vmem>>, vector<2x8x8xi8>
    %9 = arith.extsi %8 : vector<2x8x8xi8> to vector<2x8x8xi32>
    %c0_i32_11 = arith.constant 0 : i32
    %10 = vector.broadcast %c0_i32_11 : i32 to vector<2x8x8xi32>
    %11 = arith.cmpi ne, %9, %10 : vector<2x8x8xi32>
    %12 = arith.extui %11 : vector<2x8x8xi1> to vector<2x8x8xi32>
    %13 = arith.sitofp %12 : vector<2x8x8xi32> to vector<2x8x8xf32>
    %c0_12 = arith.constant 0 : index
    %c0_13 = arith.constant 0 : index
    %14 = vector.load %arg17[%c0_12, %c0_13] : memref<3x64xf32, #tpu.memory_space<vmem>>, vector<3x64xf32>
    %c0_14 = arith.constant 0 : index
    %c0_15 = arith.constant 0 : index
    %15 = vector.load %arg18[%c0_14, %c0_15] : memref<3x64xf32, #tpu.memory_space<vmem>>, vector<3x64xf32>
    %c0_16 = arith.constant 0 : index
    %c0_17 = arith.constant 0 : index
    %16 = vector.load %arg5[%c0_16, %c0_17] : memref<64x64xbf16, #tpu.memory_space<vmem>>, vector<64x64xbf16>
    %c0_18 = arith.constant 0 : index
    %c0_19 = arith.constant 0 : index
    %17 = vector.load %arg6[%c0_18, %c0_19] : memref<1x64xf32, #tpu.memory_space<vmem>>, vector<1x64xf32>
    %c0_20 = arith.constant 0 : index
    %c0_21 = arith.constant 0 : index
    %18 = vector.load %arg7[%c0_20, %c0_21] : memref<64x128xbf16, #tpu.memory_space<vmem>>, vector<64x128xbf16>
    %c0_22 = arith.constant 0 : index
    %c0_23 = arith.constant 0 : index
    %19 = vector.load %arg8[%c0_22, %c0_23] : memref<1x128xf32, #tpu.memory_space<vmem>>, vector<1x128xf32>
    %c0_24 = arith.constant 0 : index
    %c0_25 = arith.constant 0 : index
    %20 = vector.load %arg9[%c0_24, %c0_25] : memref<64x64xbf16, #tpu.memory_space<vmem>>, vector<64x64xbf16>
    %c0_26 = arith.constant 0 : index
    %c0_27 = arith.constant 0 : index
    %21 = vector.load %arg10[%c0_26, %c0_27] : memref<1x64xf32, #tpu.memory_space<vmem>>, vector<1x64xf32>
    %22 = vector.shape_cast %0 : vector<2x8x64xf32> to vector<16x64xf32>
    %23 = arith.truncf %22 : vector<16x64xf32> to vector<16x64xbf16>
    %cst = arith.constant dense<0.000000e+00> : vector<16x64xf32>
    %24 = tpu.matmul %23, %16, %cst {dimension_numbers = #tpu.dot_dimension_numbers<[1], [0], [0], [1], [0, 0, 1, 1], [], []>} : vector<16x64xbf16>, vector<64x64xbf16>, vector<16x64xf32> -> vector<16x64xf32>
    %25 = vector.broadcast %17 : vector<1x64xf32> to vector<16x64xf32>
    %26 = arith.addf %24, %25 : vector<16x64xf32>
    %27 = vector.shape_cast %0 : vector<2x8x64xf32> to vector<16x64xf32>
    %28 = arith.truncf %27 : vector<16x64xf32> to vector<16x64xbf16>
    %cst_28 = arith.constant dense<0.000000e+00> : vector<16x128xf32>
    %29 = tpu.matmul %28, %18, %cst_28 {dimension_numbers = #tpu.dot_dimension_numbers<[1], [0], [0], [1], [0, 0, 1, 1], [], []>} : vector<16x64xbf16>, vector<64x128xbf16>, vector<16x128xf32> -> vector<16x128xf32>
    %30 = vector.broadcast %19 : vector<1x128xf32> to vector<16x128xf32>
    %31 = arith.addf %29, %30 : vector<16x128xf32>
    %32 = vector.extract_strided_slice %31 {offsets = [0, 0], sizes = [16, 64], strides = [1, 1]} : vector<16x128xf32> to vector<16x64xf32>
    %33 = vector.extract_strided_slice %31 {offsets = [0, 64], sizes = [16, 64], strides = [1, 1]} : vector<16x128xf32> to vector<16x64xf32>
    %cst_29 = arith.constant 2.500000e-01 : f32
    %34 = vector.broadcast %cst_29 : f32 to vector<16x64xf32>
    %35 = arith.mulf %26, %34 : vector<16x64xf32>
    %36 = vector.shape_cast %35 : vector<16x64xf32> to vector<2x8x64xf32>
    %37 = vector.extract_strided_slice %36 {offsets = [0, 0, 0], sizes = [2, 8, 16], strides = [1, 1, 1]} : vector<2x8x64xf32> to vector<2x8x16xf32>
    %38 = vector.extract_strided_slice %36 {offsets = [0, 0, 16], sizes = [2, 8, 16], strides = [1, 1, 1]} : vector<2x8x64xf32> to vector<2x8x16xf32>
    %39 = vector.extract_strided_slice %36 {offsets = [0, 0, 32], sizes = [2, 8, 16], strides = [1, 1, 1]} : vector<2x8x64xf32> to vector<2x8x16xf32>
    %40 = vector.extract_strided_slice %36 {offsets = [0, 0, 48], sizes = [2, 8, 16], strides = [1, 1, 1]} : vector<2x8x64xf32> to vector<2x8x16xf32>
    %41 = vector.shape_cast %37 : vector<2x8x16xf32> to vector<1x2x8x16xf32>
    %42 = vector.shape_cast %38 : vector<2x8x16xf32> to vector<1x2x8x16xf32>
    %43 = vector.shape_cast %39 : vector<2x8x16xf32> to vector<1x2x8x16xf32>
    %44 = vector.shape_cast %40 : vector<2x8x16xf32> to vector<1x2x8x16xf32>
    %45 = tpu.concatenate %41, %42, %43, %44 in 0 : vector<1x2x8x16xf32>, vector<1x2x8x16xf32>, vector<1x2x8x16xf32>, vector<1x2x8x16xf32> -> vector<4x2x8x16xf32>
    %46 = vector.shape_cast %45 : vector<4x2x8x16xf32> to vector<8x8x16xf32>
    %47 = arith.truncf %46 : vector<8x8x16xf32> to vector<8x8x16xbf16>
    %48 = vector.shape_cast %32 : vector<16x64xf32> to vector<2x8x64xf32>
    %49 = vector.extract_strided_slice %48 {offsets = [0, 0, 0], sizes = [2, 8, 16], strides = [1, 1, 1]} : vector<2x8x64xf32> to vector<2x8x16xf32>
    %50 = vector.extract_strided_slice %48 {offsets = [0, 0, 16], sizes = [2, 8, 16], strides = [1, 1, 1]} : vector<2x8x64xf32> to vector<2x8x16xf32>
    %51 = vector.extract_strided_slice %48 {offsets = [0, 0, 32], sizes = [2, 8, 16], strides = [1, 1, 1]} : vector<2x8x64xf32> to vector<2x8x16xf32>
    %52 = vector.extract_strided_slice %48 {offsets = [0, 0, 48], sizes = [2, 8, 16], strides = [1, 1, 1]} : vector<2x8x64xf32> to vector<2x8x16xf32>
    %53 = vector.shape_cast %49 : vector<2x8x16xf32> to vector<1x2x8x16xf32>
    %54 = vector.shape_cast %50 : vector<2x8x16xf32> to vector<1x2x8x16xf32>
    %55 = vector.shape_cast %51 : vector<2x8x16xf32> to vector<1x2x8x16xf32>
    %56 = vector.shape_cast %52 : vector<2x8x16xf32> to vector<1x2x8x16xf32>
    %57 = tpu.concatenate %53, %54, %55, %56 in 0 : vector<1x2x8x16xf32>, vector<1x2x8x16xf32>, vector<1x2x8x16xf32>, vector<1x2x8x16xf32> -> vector<4x2x8x16xf32>
    %58 = vector.shape_cast %57 : vector<4x2x8x16xf32> to vector<8x8x16xf32>
    %59 = arith.truncf %58 : vector<8x8x16xf32> to vector<8x8x16xbf16>
    %60 = vector.shape_cast %33 : vector<16x64xf32> to vector<2x8x64xf32>
    %61 = vector.extract_strided_slice %60 {offsets = [0, 0, 0], sizes = [2, 8, 16], strides = [1, 1, 1]} : vector<2x8x64xf32> to vector<2x8x16xf32>
    %62 = vector.extract_strided_slice %60 {offsets = [0, 0, 16], sizes = [2, 8, 16], strides = [1, 1, 1]} : vector<2x8x64xf32> to vector<2x8x16xf32>
    %63 = vector.extract_strided_slice %60 {offsets = [0, 0, 32], sizes = [2, 8, 16], strides = [1, 1, 1]} : vector<2x8x64xf32> to vector<2x8x16xf32>
    %64 = vector.extract_strided_slice %60 {offsets = [0, 0, 48], sizes = [2, 8, 16], strides = [1, 1, 1]} : vector<2x8x64xf32> to vector<2x8x16xf32>
    %65 = vector.shape_cast %61 : vector<2x8x16xf32> to vector<1x2x8x16xf32>
    %66 = vector.shape_cast %62 : vector<2x8x16xf32> to vector<1x2x8x16xf32>
    %67 = vector.shape_cast %63 : vector<2x8x16xf32> to vector<1x2x8x16xf32>
    %68 = vector.shape_cast %64 : vector<2x8x16xf32> to vector<1x2x8x16xf32>
    %69 = tpu.concatenate %65, %66, %67, %68 in 0 : vector<1x2x8x16xf32>, vector<1x2x8x16xf32>, vector<1x2x8x16xf32>, vector<1x2x8x16xf32> -> vector<4x2x8x16xf32>
    %70 = vector.shape_cast %69 : vector<4x2x8x16xf32> to vector<8x8x16xf32>
    %71 = arith.truncf %70 : vector<8x8x16xf32> to vector<8x8x16xbf16>
    "tpu.trace_start"() <{level = 10 : i32, message = "zqd,zkd->zqk"}> : () -> ()
    %cst_30 = arith.constant dense<0.000000e+00> : vector<8x8x8xf32>
    %72 = tpu.matmul %47, %59, %cst_30 {dimension_numbers = #tpu.dot_dimension_numbers<[2], [2], [1], [1], [0, 0, 0, 1, 1, 1], [0], [0]>} : vector<8x8x16xbf16>, vector<8x8x16xbf16>, vector<8x8x8xf32> -> vector<8x8x8xf32>
    "tpu.trace_stop"() : () -> ()
    %73 = vector.shape_cast %72 : vector<8x8x8xf32> to vector<4x2x8x8xf32>
    %cst_31 = arith.constant 1.000000e+00 : f32
    %74 = vector.broadcast %cst_31 : f32 to vector<2x8x8xf32>
    %75 = arith.subf %74, %7 : vector<2x8x8xf32>
    %cst_32 = arith.constant -1.000000e+04 : f32
    %76 = vector.broadcast %cst_32 : f32 to vector<2x8x8xf32>
    %77 = arith.mulf %75, %76 : vector<2x8x8xf32>
    %78 = vector.shape_cast %7 : vector<2x8x8xf32> to vector<1x2x8x8xf32>
    %79 = vector.broadcast %78 : vector<1x2x8x8xf32> to vector<4x2x8x8xf32>
    %80 = arith.mulf %73, %79 : vector<4x2x8x8xf32>
    %81 = vector.shape_cast %77 : vector<2x8x8xf32> to vector<1x2x8x8xf32>
    %82 = vector.broadcast %81 : vector<1x2x8x8xf32> to vector<4x2x8x8xf32>
    %83 = arith.addf %80, %82 : vector<4x2x8x8xf32>
    %cst_33 = arith.constant dense<0xFF800000> : vector<4x2x8xf32>
    %84 = vector.multi_reduction <maximumf>, %83, %cst_33 [3] : vector<4x2x8x8xf32> to vector<4x2x8xf32>
    %85 = vector.shape_cast %84 : vector<4x2x8xf32> to vector<4x2x8x1xf32>
    %86 = vector.broadcast %85 : vector<4x2x8x1xf32> to vector<4x2x8x8xf32>
    %87 = arith.subf %83, %86 : vector<4x2x8x8xf32>
    %88 = math.exp %87 : vector<4x2x8x8xf32>
    %cst_34 = arith.constant dense<0.000000e+00> : vector<4x2x8xf32>
    %89 = vector.multi_reduction <add>, %88, %cst_34 [3] : vector<4x2x8x8xf32> to vector<4x2x8xf32>
    %90 = vector.shape_cast %89 : vector<4x2x8xf32> to vector<4x2x8x1xf32>
    %91 = tpu.reciprocal %90 {approx = true} : vector<4x2x8x1xf32> -> vector<4x2x8x1xf32>
    %92 = vector.broadcast %91 : vector<4x2x8x1xf32> to vector<4x2x8x8xf32>
    %93 = arith.mulf %88, %92 : vector<4x2x8x8xf32>
    %94 = vector.shape_cast %93 : vector<4x2x8x8xf32> to vector<8x8x8xf32>
    %95 = arith.truncf %94 : vector<8x8x8xf32> to vector<8x8x8xbf16>
    "tpu.trace_start"() <{level = 10 : i32, message = "zqk,zkd->zqd"}> : () -> ()
    %cst_35 = arith.constant dense<0.000000e+00> : vector<8x8x16xf32>
    %96 = tpu.matmul %95, %71, %cst_35 {dimension_numbers = #tpu.dot_dimension_numbers<[2], [1], [1], [2], [0, 0, 0, 1, 1, 2], [0], [0]>} : vector<8x8x8xbf16>, vector<8x8x16xbf16>, vector<8x8x16xf32> -> vector<8x8x16xf32>
    "tpu.trace_stop"() : () -> ()
    %97 = vector.shape_cast %96 : vector<8x8x16xf32> to vector<4x2x8x16xf32>
    %98 = vector.extract_strided_slice %97 {offsets = [0, 0, 0, 0], sizes = [1, 2, 8, 16], strides = [1, 1, 1, 1]} : vector<4x2x8x16xf32> to vector<1x2x8x16xf32>
    %99 = vector.shape_cast %98 : vector<1x2x8x16xf32> to vector<2x8x16xf32>
    %100 = vector.extract_strided_slice %97 {offsets = [1, 0, 0, 0], sizes = [1, 2, 8, 16], strides = [1, 1, 1, 1]} : vector<4x2x8x16xf32> to vector<1x2x8x16xf32>
    %101 = vector.shape_cast %100 : vector<1x2x8x16xf32> to vector<2x8x16xf32>
    %102 = vector.extract_strided_slice %97 {offsets = [2, 0, 0, 0], sizes = [1, 2, 8, 16], strides = [1, 1, 1, 1]} : vector<4x2x8x16xf32> to vector<1x2x8x16xf32>
    %103 = vector.shape_cast %102 : vector<1x2x8x16xf32> to vector<2x8x16xf32>
    %104 = vector.extract_strided_slice %97 {offsets = [3, 0, 0, 0], sizes = [1, 2, 8, 16], strides = [1, 1, 1, 1]} : vector<4x2x8x16xf32> to vector<1x2x8x16xf32>
    %105 = vector.shape_cast %104 : vector<1x2x8x16xf32> to vector<2x8x16xf32>
    %106 = tpu.concatenate %99, %101, %103, %105 in 2 : vector<2x8x16xf32>, vector<2x8x16xf32>, vector<2x8x16xf32>, vector<2x8x16xf32> -> vector<2x8x64xf32>
    %107 = vector.shape_cast %106 : vector<2x8x64xf32> to vector<16x64xf32>
    %108 = arith.truncf %107 : vector<16x64xf32> to vector<16x64xbf16>
    %cst_36 = arith.constant dense<0.000000e+00> : vector<16x64xf32>
    %109 = tpu.matmul %108, %20, %cst_36 {dimension_numbers = #tpu.dot_dimension_numbers<[1], [0], [0], [1], [0, 0, 1, 1], [], []>} : vector<16x64xbf16>, vector<64x64xbf16>, vector<16x64xf32> -> vector<16x64xf32>
    %110 = vector.broadcast %21 : vector<1x64xf32> to vector<16x64xf32>
    %111 = arith.addf %109, %110 : vector<16x64xf32>
    %112 = vector.shape_cast %111 : vector<16x64xf32> to vector<2x8x64xf32>
    %113 = arith.addf %0, %112 : vector<2x8x64xf32>
    %114 = vector.extract_strided_slice %14 {offsets = [0, 0], sizes = [1, 64], strides = [1, 1]} : vector<3x64xf32> to vector<1x64xf32>
    %115 = vector.extract_strided_slice %15 {offsets = [0, 0], sizes = [1, 64], strides = [1, 1]} : vector<3x64xf32> to vector<1x64xf32>
    %cst_37 = arith.constant dense<0.000000e+00> : vector<2x8xf32>
    %116 = vector.multi_reduction <add>, %113, %cst_37 [2] : vector<2x8x64xf32> to vector<2x8xf32>
    %117 = vector.shape_cast %116 : vector<2x8xf32> to vector<2x8x1xf32>
    %cst_38 = arith.constant 6.400000e+01 : f32
    %118 = vector.broadcast %cst_38 : f32 to vector<2x8x1xf32>
    %119 = arith.divf %117, %118 : vector<2x8x1xf32>
    %120 = vector.broadcast %119 : vector<2x8x1xf32> to vector<2x8x64xf32>
    %121 = arith.subf %113, %120 : vector<2x8x64xf32>
    %122 = arith.mulf %121, %121 : vector<2x8x64xf32>
    %cst_39 = arith.constant dense<0.000000e+00> : vector<2x8xf32>
    %123 = vector.multi_reduction <add>, %122, %cst_39 [2] : vector<2x8x64xf32> to vector<2x8xf32>
    %124 = vector.shape_cast %123 : vector<2x8xf32> to vector<2x8x1xf32>
    %cst_40 = arith.constant 6.400000e+01 : f32
    %125 = vector.broadcast %cst_40 : f32 to vector<2x8x1xf32>
    %126 = arith.divf %124, %125 : vector<2x8x1xf32>
    %127 = vector.broadcast %119 : vector<2x8x1xf32> to vector<2x8x64xf32>
    %128 = arith.subf %113, %127 : vector<2x8x64xf32>
    %cst_41 = arith.constant 9.99999996E-13 : f32
    %129 = vector.broadcast %cst_41 : f32 to vector<2x8x1xf32>
    %130 = arith.addf %126, %129 : vector<2x8x1xf32>
    %131 = math.rsqrt %130 : vector<2x8x1xf32>
    %132 = vector.broadcast %131 : vector<2x8x1xf32> to vector<2x8x64xf32>
    %133 = arith.mulf %128, %132 : vector<2x8x64xf32>
    %134 = vector.shape_cast %114 : vector<1x64xf32> to vector<1x1x64xf32>
    %135 = vector.broadcast %134 : vector<1x1x64xf32> to vector<2x8x64xf32>
    %136 = arith.mulf %133, %135 : vector<2x8x64xf32>
    %137 = vector.shape_cast %115 : vector<1x64xf32> to vector<1x1x64xf32>
    %138 = vector.broadcast %137 : vector<1x1x64xf32> to vector<2x8x64xf32>
    %139 = arith.addf %136, %138 : vector<2x8x64xf32>
    %c0_42 = arith.constant 0 : index
    %c0_43 = arith.constant 0 : index
    %140 = vector.load %arg11[%c0_42, %c0_43] : memref<64x64xbf16, #tpu.memory_space<vmem>>, vector<64x64xbf16>
    %c0_44 = arith.constant 0 : index
    %c0_45 = arith.constant 0 : index
    %141 = vector.load %arg12[%c0_44, %c0_45] : memref<1x64xf32, #tpu.memory_space<vmem>>, vector<1x64xf32>
    %c0_46 = arith.constant 0 : index
    %c0_47 = arith.constant 0 : index
    %142 = vector.load %arg13[%c0_46, %c0_47] : memref<64x128xbf16, #tpu.memory_space<vmem>>, vector<64x128xbf16>
    %c0_48 = arith.constant 0 : index
    %c0_49 = arith.constant 0 : index
    %143 = vector.load %arg14[%c0_48, %c0_49] : memref<1x128xf32, #tpu.memory_space<vmem>>, vector<1x128xf32>
    %c0_50 = arith.constant 0 : index
    %c0_51 = arith.constant 0 : index
    %144 = vector.load %arg15[%c0_50, %c0_51] : memref<64x64xbf16, #tpu.memory_space<vmem>>, vector<64x64xbf16>
    %c0_52 = arith.constant 0 : index
    %c0_53 = arith.constant 0 : index
    %145 = vector.load %arg16[%c0_52, %c0_53] : memref<1x64xf32, #tpu.memory_space<vmem>>, vector<1x64xf32>
    %146 = vector.shape_cast %139 : vector<2x8x64xf32> to vector<16x64xf32>
    %147 = arith.truncf %146 : vector<16x64xf32> to vector<16x64xbf16>
    %cst_54 = arith.constant dense<0.000000e+00> : vector<16x64xf32>
    %148 = tpu.matmul %147, %140, %cst_54 {dimension_numbers = #tpu.dot_dimension_numbers<[1], [0], [0], [1], [0, 0, 1, 1], [], []>} : vector<16x64xbf16>, vector<64x64xbf16>, vector<16x64xf32> -> vector<16x64xf32>
    %149 = vector.broadcast %141 : vector<1x64xf32> to vector<16x64xf32>
    %150 = arith.addf %148, %149 : vector<16x64xf32>
    %151 = vector.shape_cast %1 : vector<2x8x64xf32> to vector<16x64xf32>
    %152 = arith.truncf %151 : vector<16x64xf32> to vector<16x64xbf16>
    %cst_55 = arith.constant dense<0.000000e+00> : vector<16x128xf32>
    %153 = tpu.matmul %152, %142, %cst_55 {dimension_numbers = #tpu.dot_dimension_numbers<[1], [0], [0], [1], [0, 0, 1, 1], [], []>} : vector<16x64xbf16>, vector<64x128xbf16>, vector<16x128xf32> -> vector<16x128xf32>
    %154 = vector.broadcast %143 : vector<1x128xf32> to vector<16x128xf32>
    %155 = arith.addf %153, %154 : vector<16x128xf32>
    %156 = vector.extract_strided_slice %155 {offsets = [0, 0], sizes = [16, 64], strides = [1, 1]} : vector<16x128xf32> to vector<16x64xf32>
    %157 = vector.extract_strided_slice %155 {offsets = [0, 64], sizes = [16, 64], strides = [1, 1]} : vector<16x128xf32> to vector<16x64xf32>
    %cst_56 = arith.constant 2.500000e-01 : f32
    %158 = vector.broadcast %cst_56 : f32 to vector<16x64xf32>
    %159 = arith.mulf %150, %158 : vector<16x64xf32>
    %160 = vector.shape_cast %159 : vector<16x64xf32> to vector<2x8x64xf32>
    %161 = vector.extract_strided_slice %160 {offsets = [0, 0, 0], sizes = [2, 8, 16], strides = [1, 1, 1]} : vector<2x8x64xf32> to vector<2x8x16xf32>
    %162 = vector.extract_strided_slice %160 {offsets = [0, 0, 16], sizes = [2, 8, 16], strides = [1, 1, 1]} : vector<2x8x64xf32> to vector<2x8x16xf32>
    %163 = vector.extract_strided_slice %160 {offsets = [0, 0, 32], sizes = [2, 8, 16], strides = [1, 1, 1]} : vector<2x8x64xf32> to vector<2x8x16xf32>
    %164 = vector.extract_strided_slice %160 {offsets = [0, 0, 48], sizes = [2, 8, 16], strides = [1, 1, 1]} : vector<2x8x64xf32> to vector<2x8x16xf32>
    %165 = vector.shape_cast %161 : vector<2x8x16xf32> to vector<1x2x8x16xf32>
    %166 = vector.shape_cast %162 : vector<2x8x16xf32> to vector<1x2x8x16xf32>
    %167 = vector.shape_cast %163 : vector<2x8x16xf32> to vector<1x2x8x16xf32>
    %168 = vector.shape_cast %164 : vector<2x8x16xf32> to vector<1x2x8x16xf32>
    %169 = tpu.concatenate %165, %166, %167, %168 in 0 : vector<1x2x8x16xf32>, vector<1x2x8x16xf32>, vector<1x2x8x16xf32>, vector<1x2x8x16xf32> -> vector<4x2x8x16xf32>
    %170 = vector.shape_cast %169 : vector<4x2x8x16xf32> to vector<8x8x16xf32>
    %171 = arith.truncf %170 : vector<8x8x16xf32> to vector<8x8x16xbf16>
    %172 = vector.shape_cast %156 : vector<16x64xf32> to vector<2x8x64xf32>
    %173 = vector.extract_strided_slice %172 {offsets = [0, 0, 0], sizes = [2, 8, 16], strides = [1, 1, 1]} : vector<2x8x64xf32> to vector<2x8x16xf32>
    %174 = vector.extract_strided_slice %172 {offsets = [0, 0, 16], sizes = [2, 8, 16], strides = [1, 1, 1]} : vector<2x8x64xf32> to vector<2x8x16xf32>
    %175 = vector.extract_strided_slice %172 {offsets = [0, 0, 32], sizes = [2, 8, 16], strides = [1, 1, 1]} : vector<2x8x64xf32> to vector<2x8x16xf32>
    %176 = vector.extract_strided_slice %172 {offsets = [0, 0, 48], sizes = [2, 8, 16], strides = [1, 1, 1]} : vector<2x8x64xf32> to vector<2x8x16xf32>
    %177 = vector.shape_cast %173 : vector<2x8x16xf32> to vector<1x2x8x16xf32>
    %178 = vector.shape_cast %174 : vector<2x8x16xf32> to vector<1x2x8x16xf32>
    %179 = vector.shape_cast %175 : vector<2x8x16xf32> to vector<1x2x8x16xf32>
    %180 = vector.shape_cast %176 : vector<2x8x16xf32> to vector<1x2x8x16xf32>
    %181 = tpu.concatenate %177, %178, %179, %180 in 0 : vector<1x2x8x16xf32>, vector<1x2x8x16xf32>, vector<1x2x8x16xf32>, vector<1x2x8x16xf32> -> vector<4x2x8x16xf32>
    %182 = vector.shape_cast %181 : vector<4x2x8x16xf32> to vector<8x8x16xf32>
    %183 = arith.truncf %182 : vector<8x8x16xf32> to vector<8x8x16xbf16>
    %184 = vector.shape_cast %157 : vector<16x64xf32> to vector<2x8x64xf32>
    %185 = vector.extract_strided_slice %184 {offsets = [0, 0, 0], sizes = [2, 8, 16], strides = [1, 1, 1]} : vector<2x8x64xf32> to vector<2x8x16xf32>
    %186 = vector.extract_strided_slice %184 {offsets = [0, 0, 16], sizes = [2, 8, 16], strides = [1, 1, 1]} : vector<2x8x64xf32> to vector<2x8x16xf32>
    %187 = vector.extract_strided_slice %184 {offsets = [0, 0, 32], sizes = [2, 8, 16], strides = [1, 1, 1]} : vector<2x8x64xf32> to vector<2x8x16xf32>
    %188 = vector.extract_strided_slice %184 {offsets = [0, 0, 48], sizes = [2, 8, 16], strides = [1, 1, 1]} : vector<2x8x64xf32> to vector<2x8x16xf32>
    %189 = vector.shape_cast %185 : vector<2x8x16xf32> to vector<1x2x8x16xf32>
    %190 = vector.shape_cast %186 : vector<2x8x16xf32> to vector<1x2x8x16xf32>
    %191 = vector.shape_cast %187 : vector<2x8x16xf32> to vector<1x2x8x16xf32>
    %192 = vector.shape_cast %188 : vector<2x8x16xf32> to vector<1x2x8x16xf32>
    %193 = tpu.concatenate %189, %190, %191, %192 in 0 : vector<1x2x8x16xf32>, vector<1x2x8x16xf32>, vector<1x2x8x16xf32>, vector<1x2x8x16xf32> -> vector<4x2x8x16xf32>
    %194 = vector.shape_cast %193 : vector<4x2x8x16xf32> to vector<8x8x16xf32>
    %195 = arith.truncf %194 : vector<8x8x16xf32> to vector<8x8x16xbf16>
    "tpu.trace_start"() <{level = 10 : i32, message = "zqd,zkd->zqk"}> : () -> ()
    %cst_57 = arith.constant dense<0.000000e+00> : vector<8x8x8xf32>
    %196 = tpu.matmul %171, %183, %cst_57 {dimension_numbers = #tpu.dot_dimension_numbers<[2], [2], [1], [1], [0, 0, 0, 1, 1, 1], [0], [0]>} : vector<8x8x16xbf16>, vector<8x8x16xbf16>, vector<8x8x8xf32> -> vector<8x8x8xf32>
    "tpu.trace_stop"() : () -> ()
    %197 = vector.shape_cast %196 : vector<8x8x8xf32> to vector<4x2x8x8xf32>
    %cst_58 = arith.constant 1.000000e+00 : f32
    %198 = vector.broadcast %cst_58 : f32 to vector<2x8x8xf32>
    %199 = arith.subf %198, %13 : vector<2x8x8xf32>
    %cst_59 = arith.constant -1.000000e+04 : f32
    %200 = vector.broadcast %cst_59 : f32 to vector<2x8x8xf32>
    %201 = arith.mulf %199, %200 : vector<2x8x8xf32>
    %202 = vector.shape_cast %13 : vector<2x8x8xf32> to vector<1x2x8x8xf32>
    %203 = vector.broadcast %202 : vector<1x2x8x8xf32> to vector<4x2x8x8xf32>
    %204 = arith.mulf %197, %203 : vector<4x2x8x8xf32>
    %205 = vector.shape_cast %201 : vector<2x8x8xf32> to vector<1x2x8x8xf32>
    %206 = vector.broadcast %205 : vector<1x2x8x8xf32> to vector<4x2x8x8xf32>
    %207 = arith.addf %204, %206 : vector<4x2x8x8xf32>
    %cst_60 = arith.constant dense<0xFF800000> : vector<4x2x8xf32>
    %208 = vector.multi_reduction <maximumf>, %207, %cst_60 [3] : vector<4x2x8x8xf32> to vector<4x2x8xf32>
    %209 = vector.shape_cast %208 : vector<4x2x8xf32> to vector<4x2x8x1xf32>
    %210 = vector.broadcast %209 : vector<4x2x8x1xf32> to vector<4x2x8x8xf32>
    %211 = arith.subf %207, %210 : vector<4x2x8x8xf32>
    %212 = math.exp %211 : vector<4x2x8x8xf32>
    %cst_61 = arith.constant dense<0.000000e+00> : vector<4x2x8xf32>
    %213 = vector.multi_reduction <add>, %212, %cst_61 [3] : vector<4x2x8x8xf32> to vector<4x2x8xf32>
    %214 = vector.shape_cast %213 : vector<4x2x8xf32> to vector<4x2x8x1xf32>
    %215 = tpu.reciprocal %214 {approx = true} : vector<4x2x8x1xf32> -> vector<4x2x8x1xf32>
    %216 = vector.broadcast %215 : vector<4x2x8x1xf32> to vector<4x2x8x8xf32>
    %217 = arith.mulf %212, %216 : vector<4x2x8x8xf32>
    %218 = vector.shape_cast %217 : vector<4x2x8x8xf32> to vector<8x8x8xf32>
    %219 = arith.truncf %218 : vector<8x8x8xf32> to vector<8x8x8xbf16>
    "tpu.trace_start"() <{level = 10 : i32, message = "zqk,zkd->zqd"}> : () -> ()
    %cst_62 = arith.constant dense<0.000000e+00> : vector<8x8x16xf32>
    %220 = tpu.matmul %219, %195, %cst_62 {dimension_numbers = #tpu.dot_dimension_numbers<[2], [1], [1], [2], [0, 0, 0, 1, 1, 2], [0], [0]>} : vector<8x8x8xbf16>, vector<8x8x16xbf16>, vector<8x8x16xf32> -> vector<8x8x16xf32>
    "tpu.trace_stop"() : () -> ()
    %221 = vector.shape_cast %220 : vector<8x8x16xf32> to vector<4x2x8x16xf32>
    %222 = vector.extract_strided_slice %221 {offsets = [0, 0, 0, 0], sizes = [1, 2, 8, 16], strides = [1, 1, 1, 1]} : vector<4x2x8x16xf32> to vector<1x2x8x16xf32>
    %223 = vector.shape_cast %222 : vector<1x2x8x16xf32> to vector<2x8x16xf32>
    %224 = vector.extract_strided_slice %221 {offsets = [1, 0, 0, 0], sizes = [1, 2, 8, 16], strides = [1, 1, 1, 1]} : vector<4x2x8x16xf32> to vector<1x2x8x16xf32>
    %225 = vector.shape_cast %224 : vector<1x2x8x16xf32> to vector<2x8x16xf32>
    %226 = vector.extract_strided_slice %221 {offsets = [2, 0, 0, 0], sizes = [1, 2, 8, 16], strides = [1, 1, 1, 1]} : vector<4x2x8x16xf32> to vector<1x2x8x16xf32>
    %227 = vector.shape_cast %226 : vector<1x2x8x16xf32> to vector<2x8x16xf32>
    %228 = vector.extract_strided_slice %221 {offsets = [3, 0, 0, 0], sizes = [1, 2, 8, 16], strides = [1, 1, 1, 1]} : vector<4x2x8x16xf32> to vector<1x2x8x16xf32>
    %229 = vector.shape_cast %228 : vector<1x2x8x16xf32> to vector<2x8x16xf32>
    %230 = tpu.concatenate %223, %225, %227, %229 in 2 : vector<2x8x16xf32>, vector<2x8x16xf32>, vector<2x8x16xf32>, vector<2x8x16xf32> -> vector<2x8x64xf32>
    %231 = vector.shape_cast %230 : vector<2x8x64xf32> to vector<16x64xf32>
    %232 = arith.truncf %231 : vector<16x64xf32> to vector<16x64xbf16>
    %cst_63 = arith.constant dense<0.000000e+00> : vector<16x64xf32>
    %233 = tpu.matmul %232, %144, %cst_63 {dimension_numbers = #tpu.dot_dimension_numbers<[1], [0], [0], [1], [0, 0, 1, 1], [], []>} : vector<16x64xbf16>, vector<64x64xbf16>, vector<16x64xf32> -> vector<16x64xf32>
    %234 = vector.broadcast %145 : vector<1x64xf32> to vector<16x64xf32>
    %235 = arith.addf %233, %234 : vector<16x64xf32>
    %236 = vector.shape_cast %235 : vector<16x64xf32> to vector<2x8x64xf32>
    %237 = arith.addf %236, %139 : vector<2x8x64xf32>
    %238 = vector.extract_strided_slice %14 {offsets = [1, 0], sizes = [1, 64], strides = [1, 1]} : vector<3x64xf32> to vector<1x64xf32>
    %239 = vector.extract_strided_slice %15 {offsets = [1, 0], sizes = [1, 64], strides = [1, 1]} : vector<3x64xf32> to vector<1x64xf32>
    %cst_64 = arith.constant dense<0.000000e+00> : vector<2x8xf32>
    %240 = vector.multi_reduction <add>, %237, %cst_64 [2] : vector<2x8x64xf32> to vector<2x8xf32>
    %241 = vector.shape_cast %240 : vector<2x8xf32> to vector<2x8x1xf32>
    %cst_65 = arith.constant 6.400000e+01 : f32
    %242 = vector.broadcast %cst_65 : f32 to vector<2x8x1xf32>
    %243 = arith.divf %241, %242 : vector<2x8x1xf32>
    %244 = vector.broadcast %243 : vector<2x8x1xf32> to vector<2x8x64xf32>
    %245 = arith.subf %237, %244 : vector<2x8x64xf32>
    %246 = arith.mulf %245, %245 : vector<2x8x64xf32>
    %cst_66 = arith.constant dense<0.000000e+00> : vector<2x8xf32>
    %247 = vector.multi_reduction <add>, %246, %cst_66 [2] : vector<2x8x64xf32> to vector<2x8xf32>
    %248 = vector.shape_cast %247 : vector<2x8xf32> to vector<2x8x1xf32>
    %cst_67 = arith.constant 6.400000e+01 : f32
    %249 = vector.broadcast %cst_67 : f32 to vector<2x8x1xf32>
    %250 = arith.divf %248, %249 : vector<2x8x1xf32>
    %251 = vector.broadcast %243 : vector<2x8x1xf32> to vector<2x8x64xf32>
    %252 = arith.subf %237, %251 : vector<2x8x64xf32>
    %cst_68 = arith.constant 9.99999996E-13 : f32
    %253 = vector.broadcast %cst_68 : f32 to vector<2x8x1xf32>
    %254 = arith.addf %250, %253 : vector<2x8x1xf32>
    %255 = math.rsqrt %254 : vector<2x8x1xf32>
    %256 = vector.broadcast %255 : vector<2x8x1xf32> to vector<2x8x64xf32>
    %257 = arith.mulf %252, %256 : vector<2x8x64xf32>
    %258 = vector.shape_cast %238 : vector<1x64xf32> to vector<1x1x64xf32>
    %259 = vector.broadcast %258 : vector<1x1x64xf32> to vector<2x8x64xf32>
    %260 = arith.mulf %257, %259 : vector<2x8x64xf32>
    %261 = vector.shape_cast %239 : vector<1x64xf32> to vector<1x1x64xf32>
    %262 = vector.broadcast %261 : vector<1x1x64xf32> to vector<2x8x64xf32>
    %263 = arith.addf %260, %262 : vector<2x8x64xf32>
    %264 = vector.shape_cast %263 : vector<2x8x64xf32> to vector<16x64xf32>
    %265 = arith.truncf %264 : vector<16x64xf32> to vector<16x64xbf16>
    %c0_69 = arith.constant 0 : index
    %c0_70 = arith.constant 0 : index
    %266 = vector.load %arg19[%c0_69, %c0_70] : memref<64x128xbf16, #tpu.memory_space<vmem>>, vector<64x128xbf16>
    %cst_71 = arith.constant dense<0.000000e+00> : vector<16x128xf32>
    %267 = tpu.matmul %265, %266, %cst_71 {dimension_numbers = #tpu.dot_dimension_numbers<[1], [0], [0], [1], [0, 0, 1, 1], [], []>} : vector<16x64xbf16>, vector<64x128xbf16>, vector<16x128xf32> -> vector<16x128xf32>
    %c0_72 = arith.constant 0 : index
    %c0_73 = arith.constant 0 : index
    %268 = vector.load %arg20[%c0_72, %c0_73] : memref<1x128xf32, #tpu.memory_space<vmem>>, vector<1x128xf32>
    %269 = vector.broadcast %268 : vector<1x128xf32> to vector<16x128xf32>
    %270 = arith.addf %267, %269 : vector<16x128xf32>
    %cst_74 = arith.constant 0.000000e+00 : f32
    %271 = vector.broadcast %cst_74 : f32 to vector<16x128xf32>
    %272 = arith.maximumf %270, %271 : vector<16x128xf32>
    %273 = arith.truncf %272 : vector<16x128xf32> to vector<16x128xbf16>
    %c0_75 = arith.constant 0 : index
    %c0_76 = arith.constant 0 : index
    %274 = vector.load %arg21[%c0_75, %c0_76] : memref<128x64xbf16, #tpu.memory_space<vmem>>, vector<128x64xbf16>
    %cst_77 = arith.constant dense<0.000000e+00> : vector<16x64xf32>
    %275 = tpu.matmul %273, %274, %cst_77 {dimension_numbers = #tpu.dot_dimension_numbers<[1], [0], [0], [1], [0, 0, 1, 1], [], []>} : vector<16x128xbf16>, vector<128x64xbf16>, vector<16x64xf32> -> vector<16x64xf32>
    %c0_78 = arith.constant 0 : index
    %c0_79 = arith.constant 0 : index
    %276 = vector.load %arg22[%c0_78, %c0_79] : memref<1x64xf32, #tpu.memory_space<vmem>>, vector<1x64xf32>
    %277 = vector.broadcast %276 : vector<1x64xf32> to vector<16x64xf32>
    %278 = arith.addf %275, %277 : vector<16x64xf32>
    %279 = arith.addf %278, %264 : vector<16x64xf32>
    %280 = vector.extract_strided_slice %14 {offsets = [2, 0], sizes = [1, 64], strides = [1, 1]} : vector<3x64xf32> to vector<1x64xf32>
    %281 = vector.extract_strided_slice %15 {offsets = [2, 0], sizes = [1, 64], strides = [1, 1]} : vector<3x64xf32> to vector<1x64xf32>
    %cst_80 = arith.constant dense<0.000000e+00> : vector<16xf32>
    %282 = vector.multi_reduction <add>, %279, %cst_80 [1] : vector<16x64xf32> to vector<16xf32>
    %283 = vector.shape_cast %282 : vector<16xf32> to vector<16x1xf32>
    %cst_81 = arith.constant 6.400000e+01 : f32
    %284 = vector.broadcast %cst_81 : f32 to vector<16x1xf32>
    %285 = arith.divf %283, %284 : vector<16x1xf32>
    %286 = vector.broadcast %285 : vector<16x1xf32> to vector<16x64xf32>
    %287 = arith.subf %279, %286 : vector<16x64xf32>
    %288 = arith.mulf %287, %287 : vector<16x64xf32>
    %cst_82 = arith.constant dense<0.000000e+00> : vector<16xf32>
    %289 = vector.multi_reduction <add>, %288, %cst_82 [1] : vector<16x64xf32> to vector<16xf32>
    %290 = vector.shape_cast %289 : vector<16xf32> to vector<16x1xf32>
    %cst_83 = arith.constant 6.400000e+01 : f32
    %291 = vector.broadcast %cst_83 : f32 to vector<16x1xf32>
    %292 = arith.divf %290, %291 : vector<16x1xf32>
    %293 = vector.broadcast %285 : vector<16x1xf32> to vector<16x64xf32>
    %294 = arith.subf %279, %293 : vector<16x64xf32>
    %cst_84 = arith.constant 9.99999996E-13 : f32
    %295 = vector.broadcast %cst_84 : f32 to vector<16x1xf32>
    %296 = arith.addf %292, %295 : vector<16x1xf32>
    %297 = math.rsqrt %296 : vector<16x1xf32>
    %298 = vector.broadcast %297 : vector<16x1xf32> to vector<16x64xf32>
    %299 = arith.mulf %294, %298 : vector<16x64xf32>
    %300 = vector.broadcast %280 : vector<1x64xf32> to vector<16x64xf32>
    %301 = arith.mulf %299, %300 : vector<16x64xf32>
    %302 = vector.broadcast %281 : vector<1x64xf32> to vector<16x64xf32>
    %303 = arith.addf %301, %302 : vector<16x64xf32>
    %304 = vector.shape_cast %303 : vector<16x64xf32> to vector<2x8x64xf32>
    %c0_85 = arith.constant 0 : index
    %c0_86 = arith.constant 0 : index
    %c0_87 = arith.constant 0 : index
    %305 = vector.load %arg23[%c0_85, %c0_86, %c0_87] : memref<2x8x64xf32, #tpu.memory_space<vmem>>, vector<2x8x64xf32>
    tpu.vector_store %arg23[%c0_85, %c0_86, %c0_87], %304 {strides = array<i32>} : memref<2x8x64xf32, #tpu.memory_space<vmem>>, vector<2x8x64xf32>,
    return
  }
  func.func @transform_0(%arg0: i32) -> (i32, i32, i32) {
    %c0_i32 = arith.constant 0 : i32
    %c0_i32_0 = arith.constant 0 : i32
    %c0_i32_1 = arith.constant 0 : i32
    return %arg0, %c0_i32, %c0_i32_0 : i32, i32, i32
  }
  func.func @transform_1(%arg0: i32) -> (i32, i32, i32) {
    %c0_i32 = arith.constant 0 : i32
    %c0_i32_0 = arith.constant 0 : i32
    %c0_i32_1 = arith.constant 0 : i32
    return %arg0, %c0_i32, %c0_i32_0 : i32, i32, i32
  }
  func.func @transform_2(%arg0: i32) -> (i32, i32, i32) {
    %c0_i32 = arith.constant 0 : i32
    %c0_i32_0 = arith.constant 0 : i32
    %c0_i32_1 = arith.constant 0 : i32
    return %arg0, %c0_i32, %c0_i32_0 : i32, i32, i32
  }
  func.func @transform_3(%arg0: i32) -> (i32, i32, i32) {
    %c0_i32 = arith.constant 0 : i32
    %c0_i32_0 = arith.constant 0 : i32
    %c0_i32_1 = arith.constant 0 : i32
    return %arg0, %c0_i32, %c0_i32_0 : i32, i32, i32
  }
  func.func @transform_4(%arg0: i32) -> (i32, i32) {
    %c0_i32 = arith.constant 0 : i32
    %c0_i32_0 = arith.constant 0 : i32
    %c0_i32_1 = arith.constant 0 : i32
    return %c0_i32, %c0_i32_0 : i32, i32
  }
  func.func @transform_5(%arg0: i32) -> (i32, i32) {
    %c0_i32 = arith.constant 0 : i32
    %c0_i32_0 = arith.constant 0 : i32
    %c0_i32_1 = arith.constant 0 : i32
    return %c0_i32, %c0_i32_0 : i32, i32
  }
  func.func @transform_6(%arg0: i32) -> (i32, i32) {
    %c0_i32 = arith.constant 0 : i32
    %c0_i32_0 = arith.constant 0 : i32
    %c0_i32_1 = arith.constant 0 : i32
    return %c0_i32, %c0_i32_0 : i32, i32
  }
  func.func @transform_7(%arg0: i32) -> (i32, i32) {
    %c0_i32 = arith.constant 0 : i32
    %c0_i32_0 = arith.constant 0 : i32
    %c0_i32_1 = arith.constant 0 : i32
    return %c0_i32, %c0_i32_0 : i32, i32
  }
  func.func @transform_8(%arg0: i32) -> (i32, i32) {
    %c0_i32 = arith.constant 0 : i32
    %c0_i32_0 = arith.constant 0 : i32
    %c0_i32_1 = arith.constant 0 : i32
    return %c0_i32, %c0_i32_0 : i32, i32
  }
  func.func @transform_9(%arg0: i32) -> (i32, i32) {
    %c0_i32 = arith.constant 0 : i32
    %c0_i32_0 = arith.constant 0 : i32
    %c0_i32_1 = arith.constant 0 : i32
    return %c0_i32, %c0_i32_0 : i32, i32
  }
  func.func @transform_10(%arg0: i32) -> (i32, i32) {
    %c0_i32 = arith.constant 0 : i32
    %c0_i32_0 = arith.constant 0 : i32
    %c0_i32_1 = arith.constant 0 : i32
    return %c0_i32, %c0_i32_0 : i32, i32
  }
  func.func @transform_11(%arg0: i32) -> (i32, i32) {
    %c0_i32 = arith.constant 0 : i32
    %c0_i32_0 = arith.constant 0 : i32
    %c0_i32_1 = arith.constant 0 : i32
    return %c0_i32, %c0_i32_0 : i32, i32
  }
  func.func @transform_12(%arg0: i32) -> (i32, i32) {
    %c0_i32 = arith.constant 0 : i32
    %c0_i32_0 = arith.constant 0 : i32
    %c0_i32_1 = arith.constant 0 : i32
    return %c0_i32, %c0_i32_0 : i32, i32
  }
  func.func @transform_13(%arg0: i32) -> (i32, i32) {
    %c0_i32 = arith.constant 0 : i32
    %c0_i32_0 = arith.constant 0 : i32
    %c0_i32_1 = arith.constant 0 : i32
    return %c0_i32, %c0_i32_0 : i32, i32
  }
  func.func @transform_14(%arg0: i32) -> (i32, i32) {
    %c0_i32 = arith.constant 0 : i32
    %c0_i32_0 = arith.constant 0 : i32
    %c0_i32_1 = arith.constant 0 : i32
    return %c0_i32, %c0_i32_0 : i32, i32
  }
  func.func @transform_15(%arg0: i32) -> (i32, i32) {
    %c0_i32 = arith.constant 0 : i32
    %c0_i32_0 = arith.constant 0 : i32
    %c0_i32_1 = arith.constant 0 : i32
    return %c0_i32, %c0_i32_0 : i32, i32
  }
  func.func @transform_16(%arg0: i32) -> (i32, i32) {
    %c0_i32 = arith.constant 0 : i32
    %c0_i32_0 = arith.constant 0 : i32
    %c0_i32_1 = arith.constant 0 : i32
    return %c0_i32, %c0_i32_0 : i32, i32
  }
  func.func @transform_17(%arg0: i32) -> (i32, i32) {
    %c0_i32 = arith.constant 0 : i32
    %c0_i32_0 = arith.constant 0 : i32
    %c0_i32_1 = arith.constant 0 : i32
    return %c0_i32, %c0_i32_0 : i32, i32
  }
  func.func @transform_18(%arg0: i32) -> (i32, i32) {
    %c0_i32 = arith.constant 0 : i32
    %c0_i32_0 = arith.constant 0 : i32
    %c0_i32_1 = arith.constant 0 : i32
    return %c0_i32, %c0_i32_0 : i32, i32
  }
  func.func @transform_19(%arg0: i32) -> (i32, i32) {
    %c0_i32 = arith.constant 0 : i32
    %c0_i32_0 = arith.constant 0 : i32
    %c0_i32_1 = arith.constant 0 : i32
    return %c0_i32, %c0_i32_0 : i32, i32
  }
  func.func @transform_20(%arg0: i32) -> (i32, i32) {
    %c0_i32 = arith.constant 0 : i32
    %c0_i32_0 = arith.constant 0 : i32
    %c0_i32_1 = arith.constant 0 : i32
    return %c0_i32, %c0_i32_0 : i32, i32
  }
  func.func @transform_21(%arg0: i32) -> (i32, i32) {
    %c0_i32 = arith.constant 0 : i32
    %c0_i32_0 = arith.constant 0 : i32
    %c0_i32_1 = arith.constant 0 : i32
    return %c0_i32, %c0_i32_0 : i32, i32
  }
  func.func @transform_22(%arg0: i32) -> (i32, i32, i32) {
    %c0_i32 = arith.constant 0 : i32
    %c0_i32_0 = arith.constant 0 : i32
    %c0_i32_1 = arith.constant 0 : i32
    return %arg0, %c0_i32, %c0_i32_0 : i32, i32, i32
  }
}

</mosaic_0001>

<llo_original>
// kernel: tpu_custom_call.1
$region0: #{tpu_custom_call.1}
  #allocation0 [shape = 'u32[]', space=smem, size = 0x4, offset = 0x4, fixed_abs, tag = 'smem constant byte address 0x4 - core index']
  #allocation1 [shape = 'u32[144,128]{1,0:T(1,128)}', space=vmem, size = 0x12000, scoped, tag = 'internal scratch']
  %s0 = inlined_call_operand.vmem [shape: f32[4,8,64], index: 0, kind: input, shape index: {}]
  %s1 = inlined_call_operand.vmem [shape: f32[4,8,64], index: 1, kind: input, shape index: {}]
  %s2 = inlined_call_operand.hbm [shape: s8[4,8,8], index: 2, kind: input, shape index: {}]
  %s3 = inlined_call_operand.hbm [shape: s8[4,8,8], index: 3, kind: input, shape index: {}]
  %s4 = inlined_call_operand.vmem [shape: bf16[64,64], index: 4, kind: input, shape index: {}]
  %s5 = inlined_call_operand.hbm [shape: f32[1,64], index: 5, kind: input, shape index: {}]
  %s6 = inlined_call_operand.hbm [shape: bf16[64,128], index: 6, kind: input, shape index: {}]
  %s7 = inlined_call_operand.hbm [shape: f32[1,128], index: 7, kind: input, shape index: {}]
  %s8 = inlined_call_operand.hbm [shape: bf16[64,64], index: 8, kind: input, shape index: {}]
  %s9 = inlined_call_operand.hbm [shape: f32[1,64], index: 9, kind: input, shape index: {}]
  %s10 = inlined_call_operand.vmem [shape: bf16[64,64], index: 10, kind: input, shape index: {}]
  %s11 = inlined_call_operand.hbm [shape: f32[1,64], index: 11, kind: input, shape index: {}]
  %s12 = inlined_call_operand.hbm [shape: bf16[64,128], index: 12, kind: input, shape index: {}]
  %s13 = inlined_call_operand.hbm [shape: f32[1,128], index: 13, kind: input, shape index: {}]
  %s14 = inlined_call_operand.hbm [shape: bf16[64,64], index: 14, kind: input, shape index: {}]
  %s15 = inlined_call_operand.hbm [shape: f32[1,64], index: 15, kind: input, shape index: {}]
  %s16 = inlined_call_operand.hbm [shape: f32[3,64], index: 16, kind: input, shape index: {}]
  %s17 = inlined_call_operand.hbm [shape: f32[3,64], index: 17, kind: input, shape index: {}]
  %s18 = inlined_call_operand.hbm [shape: bf16[64,128], index: 18, kind: input, shape index: {}]
  %s19 = inlined_call_operand.vmem [shape: f32[1,128], index: 19, kind: input, shape index: {}]
  %s20 = inlined_call_operand.vmem [shape: bf16[128,64], index: 20, kind: input, shape index: {}]
  %s21 = inlined_call_operand.vmem [shape: f32[1,64], index: 21, kind: input, shape index: {}]
  %s22 = inlined_call_operand.hbm [shape: f32[4,8,64], index: 22, kind: output, shape index: {}]
  %s23 = sld [smem:[#allocation0]]
  $region181: #{tpu_custom_call.1} parent=0
    _
  %s25 = ssub.s32 1, %s23
  %s26 = scalar_select 0, %s25, %s23
  $region1: #{tpu_custom_call.1} parent=0
    #allocation2 [shape = 'u8[4096]{0}', space=vmem, size = 0x1000, scoped, tag = 'input window, operand 2']
    #allocation3 [shape = 's32[2]{0}', space=sflag, size = 0x8, scoped, tag = 'scoped memory for tpu_custom_call.1']
    #allocation4 [shape = 's32[2]{0}', space=sflag, size = 0x8, scoped, tag = 'scoped memory for tpu_custom_call.1']
    #allocation5 [shape = 'u8[4096]{0}', space=vmem, size = 0x1000, scoped, tag = 'input window, operand 3']
    #allocation6 [shape = 's32[2]{0}', space=sflag, size = 0x8, scoped, tag = 'scoped memory for tpu_custom_call.1']
    #allocation7 [shape = 'u8[512]{0}', space=vmem, size = 0x400, scoped, tag = 'input window, operand 5, single buffered']
    #allocation8 [shape = 'u8[16384]{0}', space=vmem, size = 0x4000, scoped, tag = 'input window, operand 6, single buffered']
    #allocation9 [shape = 's32[1]{0}', space=sflag, size = 0x4, scoped, tag = 'scoped memory for tpu_custom_call.1']
    #allocation10 [shape = 'u8[512]{0}', space=vmem, size = 0x400, scoped, tag = 'input window, operand 7, single buffered']
    #allocation11 [shape = 'u8[16384]{0}', space=vmem, size = 0x4000, scoped, tag = 'input window, operand 8, single buffered']
    #allocation12 [shape = 's32[1]{0}', space=sflag, size = 0x4, scoped, tag = 'scoped memory for tpu_custom_call.1']
    #allocation13 [shape = 'u8[512]{0}', space=vmem, size = 0x400, scoped, tag = 'input window, operand 9, single buffered']
    #allocation14 [shape = 'u8[512]{0}', space=vmem, size = 0x400, scoped, tag = 'input window, operand 11, single buffered']
    #allocation15 [shape = 's32[1]{0}', space=sflag, size = 0x4, scoped, tag = 'scoped memory for tpu_custom_call.1']
    #allocation16 [shape = 'u8[16384]{0}', space=vmem, size = 0x4000, scoped, tag = 'input window, operand 12, single buffered']
    #allocation17 [shape = 'u8[512]{0}', space=vmem, size = 0x400, scoped, tag = 'input window, operand 13, single buffered']
    #allocation18 [shape = 's32[1]{0}', space=sflag, size = 0x4, scoped, tag = 'scoped memory for tpu_custom_call.1']
    #allocation19 [shape = 'u8[16384]{0}', space=vmem, size = 0x4000, scoped, tag = 'input window, operand 14, single buffered']
    #allocation20 [shape = 'u8[512]{0}', space=vmem, size = 0x400, scoped, tag = 'input window, operand 15, single buffered']
    #allocation21 [shape = 's32[1]{0}', space=sflag, size = 0x4, scoped, tag = 'scoped memory for tpu_custom_call.1']
    #allocation22 [shape = 'u8[2048]{0}', space=vmem, size = 0x800, scoped, tag = 'input window, operand 16, single buffered']
    #allocation23 [shape = 'u8[2048]{0}', space=vmem, size = 0x800, scoped, tag = 'input window, operand 17, single buffered']
    #allocation24 [shape = 's32[1]{0}', space=sflag, size = 0x4, scoped, tag = 'scoped memory for tpu_custom_call.1']
    #allocation25 [shape = 'u8[16384]{0}', space=vmem, size = 0x4000, scoped, tag = 'input window, operand 18, single buffered']
    #allocation26 [shape = 'u8[16384]{0}', space=vmem, size = 0x4000, scoped, tag = 'output window, operand 0']
    %27 = vsyncpa [#allocation3], 0
    %s28 = scalar_lea.sflag [#allocation3], 1
    %29 = vsyncpa %s28, 0
    %30 = vsyncpa [#allocation6], 0
    %s31 = scalar_lea.sflag [#allocation6], 1
    %32 = vsyncpa %s31, 0
    %33 = vsyncpa [#allocation9], 0
    %34 = vsyncpa [#allocation12], 0
    %35 = vsyncpa [#allocation15], 0
    %36 = vsyncpa [#allocation18], 0
    %37 = vsyncpa [#allocation21], 0
    %38 = vsyncpa [#allocation24], 0
    %39 = vsyncpa [#allocation4], 0
    %s40 = scalar_lea.sflag [#allocation4], 1
    %41 = vsyncpa %s40, 0
    loop: start=0, step=1, limit=4
    $region2: #{tpu_custom_call.1} parent=1 // loop_pre_header
      _
    $region3: #{tpu_custom_call.1} parent=1 // loop_header
      %s43 = sphi 0, %s47
      %p44 = scmp.ge.s32.totalorder %s43, 4
      %s53 = sphi 0, %s55
      %s56 = sphi 0, %s53
      %s57 = sphi 0, %s56
      %s73 = sphi 0, %s57
      %s79 = sphi 0, %s81
      %s82 = sphi 0, %s79
      %s83 = sphi 0, %s82
      %s99 = sphi 0, %s83
      %s105 = sphi 0, %s107
      %s108 = sphi 0, %s105
      %s109 = sphi 0, %s108
      %s125 = sphi 0, %s109
      %s131 = sphi 0, %s133
      %s134 = sphi 0, %s131
      %s135 = sphi 0, %s134
      %s151 = sphi 0, %s135
      %s155 = sphi 0, %s155
      %s157 = sphi 0, %s155
      %s158 = sphi 0, %s157
      %s172 = sphi 0, %s158
      %s176 = sphi 0, %s176
      %s178 = sphi 0, %s176
      %s179 = sphi 0, %s178
      %s193 = sphi 0, %s179
      %s197 = sphi 0, %s197
      %s199 = sphi 0, %s197
      %s200 = sphi 0, %s199
      %s214 = sphi 0, %s200
      %s218 = sphi 0, %s218
      %s220 = sphi 0, %s218
      %s221 = sphi 0, %s220
      %s235 = sphi 0, %s221
      %s239 = sphi 0, %s239
      %s241 = sphi 0, %s239
      %s242 = sphi 0, %s241
      %s256 = sphi 0, %s242
      %s260 = sphi 0, %s260
      %s262 = sphi 0, %s260
      %s263 = sphi 0, %s262
      %s277 = sphi 0, %s263
      %s281 = sphi 0, %s281
      %s283 = sphi 0, %s281
      %s284 = sphi 0, %s283
      %s298 = sphi 0, %s284
      %s302 = sphi 0, %s302
      %s304 = sphi 0, %s302
      %s305 = sphi 0, %s304
      %s319 = sphi 0, %s305
      %s323 = sphi 0, %s323
      %s325 = sphi 0, %s323
      %s326 = sphi 0, %s325
      %s340 = sphi 0, %s326
      %s344 = sphi 0, %s344
      %s346 = sphi 0, %s344
      %s347 = sphi 0, %s346
      %s361 = sphi 0, %s347
      %s365 = sphi 0, %s365
      %s367 = sphi 0, %s365
      %s368 = sphi 0, %s367
      %s382 = sphi 0, %s368
      %s386 = sphi 0, %s386
      %s388 = sphi 0, %s386
      %s389 = sphi 0, %s388
      %s403 = sphi 0, %s389
      %s407 = sphi 0, %s407
      %s409 = sphi 0, %s407
      %s410 = sphi 0, %s409
      %s424 = sphi 0, %s410
      %s428 = sphi 0, %s428
      %s430 = sphi 0, %s428
      %s431 = sphi 0, %s430
      %s445 = sphi 0, %s431
      %s449 = sphi 0, %s449
      %s451 = sphi 0, %s449
      %s452 = sphi 0, %s451
      %s466 = sphi 0, %s452
      %s470 = sphi 0, %s470
      %s472 = sphi 0, %s470
      %s473 = sphi 0, %s472
      %s487 = sphi 0, %s473
      %s491 = sphi 0, %s491
      %s493 = sphi 0, %s491
      %s494 = sphi 0, %s493
      %s508 = sphi 0, %s494
      %s512 = sphi 0, %s512
      %s514 = sphi 0, %s512
      %s515 = sphi 0, %s514
      %s529 = sphi 0, %s515
      %s535 = sphi 0, %s537
      %s538 = sphi 0, %s535
      %s539 = sphi 0, %s538
      %s555 = sphi 0, %s539
    $region4: #{tpu_custom_call.1} parent=1 // loop_header_branch
      %46 = sbr.rel (%p44) target = $region8
    $region5: #{tpu_custom_call.1} parent=1 // loop_body
      %s48 = ssub.s32 %s43, 1
      %s49 = ssub.s32 %s43, 2
      %s50 = sadd.s32 %s43, 1
      %s51 = ssub.s32 %s43, %s50
      %p52 = scmp.eq.s32.totalorder %s51, 0
      %s54 = sadd.s32 %s53, 1
      %s55 = scalar_select %p52, %s53, %s54
      %p58 = pneg %p52
      %p59 = scmp.eq.s32.totalorder %s43, 1
      %p60 = por %p58, %p59
      %p61 = scmp.ne.s32.totalorder %s53, %s56
      %p62 = scmp.eq.s32.totalorder %s43, 0
      %p63 = por %p61, %p62
      %p64 = scmp.ne.s32.totalorder %s53, %s56
      %p65 = scmp.eq.s32.totalorder %s48, 1
      %p66 = por %p64, %p65
      %p67 = scmp.ne.s32.totalorder %s56, %s57
      %p68 = scmp.eq.s32.totalorder %s48, 0
      %p69 = por %p67, %p68
      %p70 = scmp.ne.s32.totalorder %s56, %s57
      %p71 = scmp.eq.s32.totalorder %s49, 1
      %p72 = por %p70, %p71
      %p74 = scmp.ne.s32.totalorder %s57, %s73
      %p75 = scmp.eq.s32.totalorder %s49, 0
      %p76 = por %p74, %p75
      %s77 = ssub.s32 %s43, %s50
      %p78 = scmp.eq.s32.totalorder %s77, 0
      %s80 = sadd.s32 %s79, 1
      %s81 = scalar_select %p78, %s79, %s80
      %p84 = pneg %p78
      %p85 = scmp.eq.s32.totalorder %s43, 1
      %p86 = por %p84, %p85
      %p87 = scmp.ne.s32.totalorder %s79, %s82
      %p88 = scmp.eq.s32.totalorder %s43, 0
      %p89 = por %p87, %p88
      %p90 = scmp.ne.s32.totalorder %s79, %s82
      %p91 = scmp.eq.s32.totalorder %s48, 1
      %p92 = por %p90, %p91
      %p93 = scmp.ne.s32.totalorder %s82, %s83
      %p94 = scmp.eq.s32.totalorder %s48, 0
      %p95 = por %p93, %p94
      %p96 = scmp.ne.s32.totalorder %s82, %s83
      %p97 = scmp.eq.s32.totalorder %s49, 1
      %p98 = por %p96, %p97
      %p100 = scmp.ne.s32.totalorder %s83, %s99
      %p101 = scmp.eq.s32.totalorder %s49, 0
      %p102 = por %p100, %p101
      %s103 = ssub.s32 %s43, %s50
      %p104 = scmp.eq.s32.totalorder %s103, 0
      %s106 = sadd.s32 %s105, 1
      %s107 = scalar_select %p104, %s105, %s106
      %p110 = pneg %p104
      %p111 = scmp.eq.s32.totalorder %s43, 1
      %p112 = por %p110, %p111
      %p113 = scmp.ne.s32.totalorder %s105, %s108
      %p114 = scmp.eq.s32.totalorder %s43, 0
      %p115 = por %p113, %p114
      %p116 = scmp.ne.s32.totalorder %s105, %s108
      %p117 = scmp.eq.s32.totalorder %s48, 1
      %p118 = por %p116, %p117
      %p119 = scmp.ne.s32.totalorder %s108, %s109
      %p120 = scmp.eq.s32.totalorder %s48, 0
      %p121 = por %p119, %p120
      %p122 = scmp.ne.s32.totalorder %s108, %s109
      %p123 = scmp.eq.s32.totalorder %s49, 1
      %p124 = por %p122, %p123
      %p126 = scmp.ne.s32.totalorder %s109, %s125
      %p127 = scmp.eq.s32.totalorder %s49, 0
      %p128 = por %p126, %p127
      %s129 = ssub.s32 %s43, %s50
      %p130 = scmp.eq.s32.totalorder %s129, 0
      %s132 = sadd.s32 %s131, 1
      %s133 = scalar_select %p130, %s131, %s132
      %p136 = pneg %p130
      %p137 = scmp.eq.s32.totalorder %s43, 1
      %p138 = por %p136, %p137
      %p139 = scmp.ne.s32.totalorder %s131, %s134
      %p140 = scmp.eq.s32.totalorder %s43, 0
      %p141 = por %p139, %p140
      %p142 = scmp.ne.s32.totalorder %s131, %s134
      %p143 = scmp.eq.s32.totalorder %s48, 1
      %p144 = por %p142, %p143
      %p145 = scmp.ne.s32.totalorder %s134, %s135
      %p146 = scmp.eq.s32.totalorder %s48, 0
      %p147 = por %p145, %p146
      %p148 = scmp.ne.s32.totalorder %s134, %s135
      %p149 = scmp.eq.s32.totalorder %s49, 1
      %p150 = por %p148, %p149
      %p152 = scmp.ne.s32.totalorder %s135, %s151
      %p153 = scmp.eq.s32.totalorder %s49, 0
      %p154 = por %p152, %p153
      %s156 = sadd.s32 %s155, 1
      %p159 = scmp.eq.s32.totalorder %s43, 1
      %p160 = scmp.ne.s32.totalorder %s155, %s157
      %p161 = scmp.eq.s32.totalorder %s43, 0
      %p162 = por %p160, %p161
      %p163 = scmp.ne.s32.totalorder %s155, %s157
      %p164 = scmp.eq.s32.totalorder %s48, 1
      %p165 = por %p163, %p164
      %p166 = scmp.ne.s32.totalorder %s157, %s158
      %p167 = scmp.eq.s32.totalorder %s48, 0
      %p168 = por %p166, %p167
      %p169 = scmp.ne.s32.totalorder %s157, %s158
      %p170 = scmp.eq.s32.totalorder %s49, 1
      %p171 = por %p169, %p170
      %p173 = scmp.ne.s32.totalorder %s158, %s172
      %p174 = scmp.eq.s32.totalorder %s49, 0
      %p175 = por %p173, %p174
      %s177 = sadd.s32 %s176, 1
      %p180 = scmp.eq.s32.totalorder %s43, 1
      %p181 = scmp.ne.s32.totalorder %s176, %s178
      %p182 = scmp.eq.s32.totalorder %s43, 0
      %p183 = por %p181, %p182
      %p184 = scmp.ne.s32.totalorder %s176, %s178
      %p185 = scmp.eq.s32.totalorder %s48, 1
      %p186 = por %p184, %p185
      %p187 = scmp.ne.s32.totalorder %s178, %s179
      %p188 = scmp.eq.s32.totalorder %s48, 0
      %p189 = por %p187, %p188
      %p190 = scmp.ne.s32.totalorder %s178, %s179
      %p191 = scmp.eq.s32.totalorder %s49, 1
      %p192 = por %p190, %p191
      %p194 = scmp.ne.s32.totalorder %s179, %s193
      %p195 = scmp.eq.s32.totalorder %s49, 0
      %p196 = por %p194, %p195
      %s198 = sadd.s32 %s197, 1
      %p201 = scmp.eq.s32.totalorder %s43, 1
      %p202 = scmp.ne.s32.totalorder %s197, %s199
      %p203 = scmp.eq.s32.totalorder %s43, 0
      %p204 = por %p202, %p203
      %p205 = scmp.ne.s32.totalorder %s197, %s199
      %p206 = scmp.eq.s32.totalorder %s48, 1
      %p207 = por %p205, %p206
      %p208 = scmp.ne.s32.totalorder %s199, %s200
      %p209 = scmp.eq.s32.totalorder %s48, 0
      %p210 = por %p208, %p209
      %p211 = scmp.ne.s32.totalorder %s199, %s200
      %p212 = scmp.eq.s32.totalorder %s49, 1
      %p213 = por %p211, %p212
      %p215 = scmp.ne.s32.totalorder %s200, %s214
      %p216 = scmp.eq.s32.totalorder %s49, 0
      %p217 = por %p215, %p216
      %s219 = sadd.s32 %s218, 1
      %p222 = scmp.eq.s32.totalorder %s43, 1
      %p223 = scmp.ne.s32.totalorder %s218, %s220
      %p224 = scmp.eq.s32.totalorder %s43, 0
      %p225 = por %p223, %p224
      %p226 = scmp.ne.s32.totalorder %s218, %s220
      %p227 = scmp.eq.s32.totalorder %s48, 1
      %p228 = por %p226, %p227
      %p229 = scmp.ne.s32.totalorder %s220, %s221
      %p230 = scmp.eq.s32.totalorder %s48, 0
      %p231 = por %p229, %p230
      %p232 = scmp.ne.s32.totalorder %s220, %s221
      %p233 = scmp.eq.s32.totalorder %s49, 1
      %p234 = por %p232, %p233
      %p236 = scmp.ne.s32.totalorder %s221, %s235
      %p237 = scmp.eq.s32.totalorder %s49, 0
      %p238 = por %p236, %p237
      %s240 = sadd.s32 %s239, 1
      %p243 = scmp.eq.s32.totalorder %s43, 1
      %p244 = scmp.ne.s32.totalorder %s239, %s241
      %p245 = scmp.eq.s32.totalorder %s43, 0
      %p246 = por %p244, %p245
      %p247 = scmp.ne.s32.totalorder %s239, %s241
      %p248 = scmp.eq.s32.totalorder %s48, 1
      %p249 = por %p247, %p248
      %p250 = scmp.ne.s32.totalorder %s241, %s242
      %p251 = scmp.eq.s32.totalorder %s48, 0
      %p252 = por %p250, %p251
      %p253 = scmp.ne.s32.totalorder %s241, %s242
      %p254 = scmp.eq.s32.totalorder %s49, 1
      %p255 = por %p253, %p254
      %p257 = scmp.ne.s32.totalorder %s242, %s256
      %p258 = scmp.eq.s32.totalorder %s49, 0
      %p259 = por %p257, %p258
      %s261 = sadd.s32 %s260, 1
      %p264 = scmp.eq.s32.totalorder %s43, 1
      %p265 = scmp.ne.s32.totalorder %s260, %s262
      %p266 = scmp.eq.s32.totalorder %s43, 0
      %p267 = por %p265, %p266
      %p268 = scmp.ne.s32.totalorder %s260, %s262
      %p269 = scmp.eq.s32.totalorder %s48, 1
      %p270 = por %p268, %p269
      %p271 = scmp.ne.s32.totalorder %s262, %s263
      %p272 = scmp.eq.s32.totalorder %s48, 0
      %p273 = por %p271, %p272
      %p274 = scmp.ne.s32.totalorder %s262, %s263
      %p275 = scmp.eq.s32.totalorder %s49, 1
      %p276 = por %p274, %p275
      %p278 = scmp.ne.s32.totalorder %s263, %s277
      %p279 = scmp.eq.s32.totalorder %s49, 0
      %p280 = por %p278, %p279
      %s282 = sadd.s32 %s281, 1
      %p285 = scmp.eq.s32.totalorder %s43, 1
      %p286 = scmp.ne.s32.totalorder %s281, %s283
      %p287 = scmp.eq.s32.totalorder %s43, 0
      %p288 = por %p286, %p287
      %p289 = scmp.ne.s32.totalorder %s281, %s283
      %p290 = scmp.eq.s32.totalorder %s48, 1
      %p291 = por %p289, %p290
      %p292 = scmp.ne.s32.totalorder %s283, %s284
      %p293 = scmp.eq.s32.totalorder %s48, 0
      %p294 = por %p292, %p293
      %p295 = scmp.ne.s32.totalorder %s283, %s284
      %p296 = scmp.eq.s32.totalorder %s49, 1
      %p297 = por %p295, %p296
      %p299 = scmp.ne.s32.totalorder %s284, %s298
      %p300 = scmp.eq.s32.totalorder %s49, 0
      %p301 = por %p299, %p300
      %s303 = sadd.s32 %s302, 1
      %p306 = scmp.eq.s32.totalorder %s43, 1
      %p307 = scmp.ne.s32.totalorder %s302, %s304
      %p308 = scmp.eq.s32.totalorder %s43, 0
      %p309 = por %p307, %p308
      %p310 = scmp.ne.s32.totalorder %s302, %s304
      %p311 = scmp.eq.s32.totalorder %s48, 1
      %p312 = por %p310, %p311
      %p313 = scmp.ne.s32.totalorder %s304, %s305
      %p314 = scmp.eq.s32.totalorder %s48, 0
      %p315 = por %p313, %p314
      %p316 = scmp.ne.s32.totalorder %s304, %s305
      %p317 = scmp.eq.s32.totalorder %s49, 1
      %p318 = por %p316, %p317
      %p320 = scmp.ne.s32.totalorder %s305, %s319
      %p321 = scmp.eq.s32.totalorder %s49, 0
      %p322 = por %p320, %p321
      %s324 = sadd.s32 %s323, 1
      %p327 = scmp.eq.s32.totalorder %s43, 1
      %p328 = scmp.ne.s32.totalorder %s323, %s325
      %p329 = scmp.eq.s32.totalorder %s43, 0
      %p330 = por %p328, %p329
      %p331 = scmp.ne.s32.totalorder %s323, %s325
      %p332 = scmp.eq.s32.totalorder %s48, 1
      %p333 = por %p331, %p332
      %p334 = scmp.ne.s32.totalorder %s325, %s326
      %p335 = scmp.eq.s32.totalorder %s48, 0
      %p336 = por %p334, %p335
      %p337 = scmp.ne.s32.totalorder %s325, %s326
      %p338 = scmp.eq.s32.totalorder %s49, 1
      %p339 = por %p337, %p338
      %p341 = scmp.ne.s32.totalorder %s326, %s340
      %p342 = scmp.eq.s32.totalorder %s49, 0
      %p343 = por %p341, %p342
      %s345 = sadd.s32 %s344, 1
      %p348 = scmp.eq.s32.totalorder %s43, 1
      %p349 = scmp.ne.s32.totalorder %s344, %s346
      %p350 = scmp.eq.s32.totalorder %s43, 0
      %p351 = por %p349, %p350
      %p352 = scmp.ne.s32.totalorder %s344, %s346
      %p353 = scmp.eq.s32.totalorder %s48, 1
      %p354 = por %p352, %p353
      %p355 = scmp.ne.s32.totalorder %s346, %s347
      %p356 = scmp.eq.s32.totalorder %s48, 0
      %p357 = por %p355, %p356
      %p358 = scmp.ne.s32.totalorder %s346, %s347
      %p359 = scmp.eq.s32.totalorder %s49, 1
      %p360 = por %p358, %p359
      %p362 = scmp.ne.s32.totalorder %s347, %s361
      %p363 = scmp.eq.s32.totalorder %s49, 0
      %p364 = por %p362, %p363
      %s366 = sadd.s32 %s365, 1
      %p369 = scmp.eq.s32.totalorder %s43, 1
      %p370 = scmp.ne.s32.totalorder %s365, %s367
      %p371 = scmp.eq.s32.totalorder %s43, 0
      %p372 = por %p370, %p371
      %p373 = scmp.ne.s32.totalorder %s365, %s367
      %p374 = scmp.eq.s32.totalorder %s48, 1
      %p375 = por %p373, %p374
      %p376 = scmp.ne.s32.totalorder %s367, %s368
      %p377 = scmp.eq.s32.totalorder %s48, 0
      %p378 = por %p376, %p377
      %p379 = scmp.ne.s32.totalorder %s367, %s368
      %p380 = scmp.eq.s32.totalorder %s49, 1
      %p381 = por %p379, %p380
      %p383 = scmp.ne.s32.totalorder %s368, %s382
      %p384 = scmp.eq.s32.totalorder %s49, 0
      %p385 = por %p383, %p384
      %s387 = sadd.s32 %s386, 1
      %p390 = scmp.eq.s32.totalorder %s43, 1
      %p391 = scmp.ne.s32.totalorder %s386, %s388
      %p392 = scmp.eq.s32.totalorder %s43, 0
      %p393 = por %p391, %p392
      %p394 = scmp.ne.s32.totalorder %s386, %s388
      %p395 = scmp.eq.s32.totalorder %s48, 1
      %p396 = por %p394, %p395
      %p397 = scmp.ne.s32.totalorder %s388, %s389
      %p398 = scmp.eq.s32.totalorder %s48, 0
      %p399 = por %p397, %p398
      %p400 = scmp.ne.s32.totalorder %s388, %s389
      %p401 = scmp.eq.s32.totalorder %s49, 1
      %p402 = por %p400, %p401
      %p404 = scmp.ne.s32.totalorder %s389, %s403
      %p405 = scmp.eq.s32.totalorder %s49, 0
      %p406 = por %p404, %p405
      %s408 = sadd.s32 %s407, 1
      %p411 = scmp.eq.s32.totalorder %s43, 1
      %p412 = scmp.ne.s32.totalorder %s407, %s409
      %p413 = scmp.eq.s32.totalorder %s43, 0
      %p414 = por %p412, %p413
      %p415 = scmp.ne.s32.totalorder %s407, %s409
      %p416 = scmp.eq.s32.totalorder %s48, 1
      %p417 = por %p415, %p416
      %p418 = scmp.ne.s32.totalorder %s409, %s410
      %p419 = scmp.eq.s32.totalorder %s48, 0
      %p420 = por %p418, %p419
      %p421 = scmp.ne.s32.totalorder %s409, %s410
      %p422 = scmp.eq.s32.totalorder %s49, 1
      %p423 = por %p421, %p422
      %p425 = scmp.ne.s32.totalorder %s410, %s424
      %p426 = scmp.eq.s32.totalorder %s49, 0
      %p427 = por %p425, %p426
      %s429 = sadd.s32 %s428, 1
      %p432 = scmp.eq.s32.totalorder %s43, 1
      %p433 = scmp.ne.s32.totalorder %s428, %s430
      %p434 = scmp.eq.s32.totalorder %s43, 0
      %p435 = por %p433, %p434
      %p436 = scmp.ne.s32.totalorder %s428, %s430
      %p437 = scmp.eq.s32.totalorder %s48, 1
      %p438 = por %p436, %p437
      %p439 = scmp.ne.s32.totalorder %s430, %s431
      %p440 = scmp.eq.s32.totalorder %s48, 0
      %p441 = por %p439, %p440
      %p442 = scmp.ne.s32.totalorder %s430, %s431
      %p443 = scmp.eq.s32.totalorder %s49, 1
      %p444 = por %p442, %p443
      %p446 = scmp.ne.s32.totalorder %s431, %s445
      %p447 = scmp.eq.s32.totalorder %s49, 0
      %p448 = por %p446, %p447
      %s450 = sadd.s32 %s449, 1
      %p453 = scmp.eq.s32.totalorder %s43, 1
      %p454 = scmp.ne.s32.totalorder %s449, %s451
      %p455 = scmp.eq.s32.totalorder %s43, 0
      %p456 = por %p454, %p455
      %p457 = scmp.ne.s32.totalorder %s449, %s451
      %p458 = scmp.eq.s32.totalorder %s48, 1
      %p459 = por %p457, %p458
      %p460 = scmp.ne.s32.totalorder %s451, %s452
      %p461 = scmp.eq.s32.totalorder %s48, 0
      %p462 = por %p460, %p461
      %p463 = scmp.ne.s32.totalorder %s451, %s452
      %p464 = scmp.eq.s32.totalorder %s49, 1
      %p465 = por %p463, %p464
      %p467 = scmp.ne.s32.totalorder %s452, %s466
      %p468 = scmp.eq.s32.totalorder %s49, 0
      %p469 = por %p467, %p468
      %s471 = sadd.s32 %s470, 1
      %p474 = scmp.eq.s32.totalorder %s43, 1
      %p475 = scmp.ne.s32.totalorder %s470, %s472
      %p476 = scmp.eq.s32.totalorder %s43, 0
      %p477 = por %p475, %p476
      %p478 = scmp.ne.s32.totalorder %s470, %s472
      %p479 = scmp.eq.s32.totalorder %s48, 1
      %p480 = por %p478, %p479
      %p481 = scmp.ne.s32.totalorder %s472, %s473
      %p482 = scmp.eq.s32.totalorder %s48, 0
      %p483 = por %p481, %p482
      %p484 = scmp.ne.s32.totalorder %s472, %s473
      %p485 = scmp.eq.s32.totalorder %s49, 1
      %p486 = por %p484, %p485
      %p488 = scmp.ne.s32.totalorder %s473, %s487
      %p489 = scmp.eq.s32.totalorder %s49, 0
      %p490 = por %p488, %p489
      %s492 = sadd.s32 %s491, 1
      %p495 = scmp.eq.s32.totalorder %s43, 1
      %p496 = scmp.ne.s32.totalorder %s491, %s493
      %p497 = scmp.eq.s32.totalorder %s43, 0
      %p498 = por %p496, %p497
      %p499 = scmp.ne.s32.totalorder %s491, %s493
      %p500 = scmp.eq.s32.totalorder %s48, 1
      %p501 = por %p499, %p500
      %p502 = scmp.ne.s32.totalorder %s493, %s494
      %p503 = scmp.eq.s32.totalorder %s48, 0
      %p504 = por %p502, %p503
      %p505 = scmp.ne.s32.totalorder %s493, %s494
      %p506 = scmp.eq.s32.totalorder %s49, 1
      %p507 = por %p505, %p506
      %p509 = scmp.ne.s32.totalorder %s494, %s508
      %p510 = scmp.eq.s32.totalorder %s49, 0
      %p511 = por %p509, %p510
      %s513 = sadd.s32 %s512, 1
      %p516 = scmp.eq.s32.totalorder %s43, 1
      %p517 = scmp.ne.s32.totalorder %s512, %s514
      %p518 = scmp.eq.s32.totalorder %s43, 0
      %p519 = por %p517, %p518
      %p520 = scmp.ne.s32.totalorder %s512, %s514
      %p521 = scmp.eq.s32.totalorder %s48, 1
      %p522 = por %p520, %p521
      %p523 = scmp.ne.s32.totalorder %s514, %s515
      %p524 = scmp.eq.s32.totalorder %s48, 0
      %p525 = por %p523, %p524
      %p526 = scmp.ne.s32.totalorder %s514, %s515
      %p527 = scmp.eq.s32.totalorder %s49, 1
      %p528 = por %p526, %p527
      %p530 = scmp.ne.s32.totalorder %s515, %s529
      %p531 = scmp.eq.s32.totalorder %s49, 0
      %p532 = por %p530, %p531
      %s533 = ssub.s32 %s43, %s50
      %p534 = scmp.eq.s32.totalorder %s533, 0
      %s536 = sadd.s32 %s535, 1
      %s537 = scalar_select %p534, %s535, %s536
      %p540 = pneg %p534
      %p541 = scmp.eq.s32.totalorder %s43, 1
      %p542 = por %p540, %p541
      %p543 = scmp.ne.s32.totalorder %s535, %s538
      %p544 = scmp.eq.s32.totalorder %s43, 0
      %p545 = por %p543, %p544
      %p546 = scmp.ne.s32.totalorder %s535, %s538
      %p547 = scmp.eq.s32.totalorder %s48, 1
      %p548 = por %p546, %p547
      %p549 = scmp.ne.s32.totalorder %s538, %s539
      %p550 = scmp.eq.s32.totalorder %s48, 0
      %p551 = por %p549, %p550
      %p552 = scmp.ne.s32.totalorder %s538, %s539
      %p553 = scmp.eq.s32.totalorder %s49, 1
      %p554 = por %p552, %p553
      %p556 = scmp.ne.s32.totalorder %s539, %s555
      %p557 = scmp.eq.s32.totalorder %s49, 0
      %p558 = por %p556, %p557
      %p559 = scmp.le.s32.totalorder 1, %s43
      %p560 = scmp.lt.s32.totalorder %s43, 3
      %p561 = pnand %p559, %p560
      %p562 = pneg %p561
      // Predicated region
      $region9: #{tpu_custom_call.1} parent=5 // pred_check
        _
      $region10: #{tpu_custom_call.1} parent=5 // pred_check_branch
        %564 = sbr.rel (%p561) target = $region12
      $region11: #{tpu_custom_call.1} parent=5 // pred_region
        %s565 = ssub.s32 %s43, 1
        // Predicated region
        $region13: #{tpu_custom_call.1} parent=11 // pred_check
          %p566 = pneg %p168
        $region14: #{tpu_custom_call.1} parent=11 // pred_check_branch
          %568 = sbr.rel (%p566) target = $region16
        $region15: #{tpu_custom_call.1} parent=11 // pred_region
          _
        $region16: #{tpu_custom_call.1} parent=11 // pred_fallthru
          _
        // Predicated region
        $region17: #{tpu_custom_call.1} parent=11 // pred_check
          %p569 = pneg %p189
        $region18: #{tpu_custom_call.1} parent=11 // pred_check_branch
          %571 = sbr.rel (%p569) target = $region20
        $region19: #{tpu_custom_call.1} parent=11 // pred_region
          %s573 = ssub.s32 16, 16
          %574 = vsyncadd [#allocation6], %s573
          %s576 = sshll.u32 [#allocation7], 4
          %s577 = int_to_ptr.vmem [resolvable:$true] %s576
          %579 = dma.hbm_to_vmem [thread:$0]  %s5, 16, %s577, [#allocation6]
        $region20: #{tpu_custom_call.1} parent=11 // pred_fallthru
          _
        // Predicated region
        $region21: #{tpu_custom_call.1} parent=11 // pred_check
          %p580 = pneg %p210
        $region22: #{tpu_custom_call.1} parent=11 // pred_check_branch
          %582 = sbr.rel (%p580) target = $region24
        $region23: #{tpu_custom_call.1} parent=11 // pred_region
          %s584 = ssub.s32 512, 512
          %585 = vsyncadd [#allocation9], %s584
          %s586 = sshll.u32 [#allocation8], 4
          %s587 = int_to_ptr.vmem [resolvable:$true] %s586
          %592 = dma.hbm_to_vmem [thread:$0]  %s6, 512, %s587, [#allocation9], 64, 64, 4
        $region24: #{tpu_custom_call.1} parent=11 // pred_fallthru
          _
        // Predicated region
        $region25: #{tpu_custom_call.1} parent=11 // pred_check
          %p593 = pneg %p231
        $region26: #{tpu_custom_call.1} parent=11 // pred_check_branch
          %595 = sbr.rel (%p593) target = $region28
        $region27: #{tpu_custom_call.1} parent=11 // pred_region
          %s597 = ssub.s32 16, 16
          %598 = vsyncadd [#allocation9], %s597
          %s600 = sshll.u32 [#allocation10], 4
          %s601 = int_to_ptr.vmem [resolvable:$true] %s600
          %603 = dma.hbm_to_vmem [thread:$0]  %s7, 16, %s601, [#allocation9]
        $region28: #{tpu_custom_call.1} parent=11 // pred_fallthru
          _
        // Predicated region
        $region29: #{tpu_custom_call.1} parent=11 // pred_check
          %p604 = pneg %p252
        $region30: #{tpu_custom_call.1} parent=11 // pred_check_branch
          %606 = sbr.rel (%p604) target = $region32
        $region31: #{tpu_custom_call.1} parent=11 // pred_region
          %s608 = ssub.s32 512, 512
          %609 = vsyncadd [#allocation12], %s608
          %s610 = sshll.u32 [#allocation11], 4
          %s611 = int_to_ptr.vmem [resolvable:$true] %s610
          %616 = dma.hbm_to_vmem [thread:$0]  %s8, 512, %s611, [#allocation12], 64, 64, 4
        $region32: #{tpu_custom_call.1} parent=11 // pred_fallthru
          _
        // Predicated region
        $region33: #{tpu_custom_call.1} parent=11 // pred_check
          %p617 = pneg %p273
        $region34: #{tpu_custom_call.1} parent=11 // pred_check_branch
          %619 = sbr.rel (%p617) target = $region36
        $region35: #{tpu_custom_call.1} parent=11 // pred_region
          %s621 = ssub.s32 16, 16
          %622 = vsyncadd [#allocation12], %s621
          %s624 = sshll.u32 [#allocation13], 4
          %s625 = int_to_ptr.vmem [resolvable:$true] %s624
          %627 = dma.hbm_to_vmem [thread:$0]  %s9, 16, %s625, [#allocation12]
        $region36: #{tpu_custom_call.1} parent=11 // pred_fallthru
          _
        // Predicated region
        $region37: #{tpu_custom_call.1} parent=11 // pred_check
          %p628 = pneg %p294
        $region38: #{tpu_custom_call.1} parent=11 // pred_check_branch
          %630 = sbr.rel (%p628) target = $region40
        $region39: #{tpu_custom_call.1} parent=11 // pred_region
          _
        $region40: #{tpu_custom_call.1} parent=11 // pred_fallthru
          _
        // Predicated region
        $region41: #{tpu_custom_call.1} parent=11 // pred_check
          %p631 = pneg %p315
        $region42: #{tpu_custom_call.1} parent=11 // pred_check_branch
          %633 = sbr.rel (%p631) target = $region44
        $region43: #{tpu_custom_call.1} parent=11 // pred_region
          %s635 = ssub.s32 16, 16
          %636 = vsyncadd [#allocation15], %s635
          %s638 = sshll.u32 [#allocation14], 4
          %s639 = int_to_ptr.vmem [resolvable:$true] %s638
          %641 = dma.hbm_to_vmem [thread:$0]  %s11, 16, %s639, [#allocation15]
        $region44: #{tpu_custom_call.1} parent=11 // pred_fallthru
          _
        // Predicated region
        $region45: #{tpu_custom_call.1} parent=11 // pred_check
          %p642 = pneg %p336
        $region46: #{tpu_custom_call.1} parent=11 // pred_check_branch
          %644 = sbr.rel (%p642) target = $region48
        $region47: #{tpu_custom_call.1} parent=11 // pred_region
          %s646 = ssub.s32 512, 512
          %647 = vsyncadd [#allocation15], %s646
          %s648 = sshll.u32 [#allocation16], 4
          %s649 = int_to_ptr.vmem [resolvable:$true] %s648
          %654 = dma.hbm_to_vmem [thread:$0]  %s12, 512, %s649, [#allocation15], 64, 64, 4
        $region48: #{tpu_custom_call.1} parent=11 // pred_fallthru
          _
        // Predicated region
        $region49: #{tpu_custom_call.1} parent=11 // pred_check
          %p655 = pneg %p357
        $region50: #{tpu_custom_call.1} parent=11 // pred_check_branch
          %657 = sbr.rel (%p655) target = $region52
        $region51: #{tpu_custom_call.1} parent=11 // pred_region
          %s659 = ssub.s32 16, 16
          %660 = vsyncadd [#allocation18], %s659
          %s662 = sshll.u32 [#allocation17], 4
          %s663 = int_to_ptr.vmem [resolvable:$true] %s662
          %665 = dma.hbm_to_vmem [thread:$0]  %s13, 16, %s663, [#allocation18]
        $region52: #{tpu_custom_call.1} parent=11 // pred_fallthru
          _
        // Predicated region
        $region53: #{tpu_custom_call.1} parent=11 // pred_check
          %p666 = pneg %p378
        $region54: #{tpu_custom_call.1} parent=11 // pred_check_branch
          %668 = sbr.rel (%p666) target = $region56
        $region55: #{tpu_custom_call.1} parent=11 // pred_region
          %s670 = ssub.s32 512, 512
          %671 = vsyncadd [#allocation18], %s670
          %s672 = sshll.u32 [#allocation19], 4
          %s673 = int_to_ptr.vmem [resolvable:$true] %s672
          %678 = dma.hbm_to_vmem [thread:$0]  %s14, 512, %s673, [#allocation18], 64, 64, 4
        $region56: #{tpu_custom_call.1} parent=11 // pred_fallthru
          _
        // Predicated region
        $region57: #{tpu_custom_call.1} parent=11 // pred_check
          %p679 = pneg %p399
        $region58: #{tpu_custom_call.1} parent=11 // pred_check_branch
          %681 = sbr.rel (%p679) target = $region60
        $region59: #{tpu_custom_call.1} parent=11 // pred_region
          %s683 = ssub.s32 16, 16
          %684 = vsyncadd [#allocation21], %s683
          %s686 = sshll.u32 [#allocation20], 4
          %s687 = int_to_ptr.vmem [resolvable:$true] %s686
          %689 = dma.hbm_to_vmem [thread:$0]  %s15, 16, %s687, [#allocation21]
        $region60: #{tpu_custom_call.1} parent=11 // pred_fallthru
          _
        // Predicated region
        $region61: #{tpu_custom_call.1} parent=11 // pred_check
          %p690 = pneg %p420
        $region62: #{tpu_custom_call.1} parent=11 // pred_check_branch
          %692 = sbr.rel (%p690) target = $region64
        $region63: #{tpu_custom_call.1} parent=11 // pred_region
          %s694 = ssub.s32 64, 64
          %695 = vsyncadd [#allocation21], %s694
          %s697 = sshll.u32 [#allocation22], 4
          %s698 = int_to_ptr.vmem [resolvable:$true] %s697
          %700 = dma.hbm_to_vmem [thread:$0]  %s16, 64, %s698, [#allocation21]
        $region64: #{tpu_custom_call.1} parent=11 // pred_fallthru
          _
        // Predicated region
        $region65: #{tpu_custom_call.1} parent=11 // pred_check
          %p701 = pneg %p441
        $region66: #{tpu_custom_call.1} parent=11 // pred_check_branch
          %703 = sbr.rel (%p701) target = $region68
        $region67: #{tpu_custom_call.1} parent=11 // pred_region
          %s705 = ssub.s32 64, 64
          %706 = vsyncadd [#allocation24], %s705
          %s708 = sshll.u32 [#allocation23], 4
          %s709 = int_to_ptr.vmem [resolvable:$true] %s708
          %711 = dma.hbm_to_vmem [thread:$0]  %s17, 64, %s709, [#allocation24]
        $region68: #{tpu_custom_call.1} parent=11 // pred_fallthru
          _
        // Predicated region
        $region69: #{tpu_custom_call.1} parent=11 // pred_check
          %p712 = pneg %p462
        $region70: #{tpu_custom_call.1} parent=11 // pred_check_branch
          %714 = sbr.rel (%p712) target = $region72
        $region71: #{tpu_custom_call.1} parent=11 // pred_region
          %s716 = ssub.s32 512, 512
          %717 = vsyncadd [#allocation24], %s716
          %s718 = sshll.u32 [#allocation25], 4
          %s719 = int_to_ptr.vmem [resolvable:$true] %s718
          %724 = dma.hbm_to_vmem [thread:$0]  %s18, 512, %s719, [#allocation24], 64, 64, 4
        $region72: #{tpu_custom_call.1} parent=11 // pred_fallthru
          _
        // Predicated region
        $region73: #{tpu_custom_call.1} parent=11 // pred_check
          %p725 = pneg %p483
        $region74: #{tpu_custom_call.1} parent=11 // pred_check_branch
          %727 = sbr.rel (%p725) target = $region76
        $region75: #{tpu_custom_call.1} parent=11 // pred_region
          _
        $region76: #{tpu_custom_call.1} parent=11 // pred_fallthru
          _
        // Predicated region
        $region77: #{tpu_custom_call.1} parent=11 // pred_check
          %p728 = pneg %p504
        $region78: #{tpu_custom_call.1} parent=11 // pred_check_branch
          %730 = sbr.rel (%p728) target = $region80
        $region79: #{tpu_custom_call.1} parent=11 // pred_region
          _
        $region80: #{tpu_custom_call.1} parent=11 // pred_fallthru
          _
        // Predicated region
        $region81: #{tpu_custom_call.1} parent=11 // pred_check
          %p731 = pneg %p525
        $region82: #{tpu_custom_call.1} parent=11 // pred_check_branch
          %733 = sbr.rel (%p731) target = $region84
        $region83: #{tpu_custom_call.1} parent=11 // pred_region
          _
        $region84: #{tpu_custom_call.1} parent=11 // pred_fallthru
          _
      $region12: #{tpu_custom_call.1} parent=5 // pred_fallthru
        _
      %p734 = scmp.lt.s32.totalorder %s43, 2
      // Predicated region
      $region85: #{tpu_custom_call.1} parent=5 // pred_check
        %p735 = pneg %p734
      $region86: #{tpu_custom_call.1} parent=5 // pred_check_branch
        %737 = sbr.rel (%p735) target = $region88
      $region87: #{tpu_custom_call.1} parent=5 // pred_region
        // Predicated region
        $region89: #{tpu_custom_call.1} parent=87 // pred_check
          %p738 = pneg %p63
        $region90: #{tpu_custom_call.1} parent=87 // pred_check_branch
          %740 = sbr.rel (%p738) target = $region92
        $region91: #{tpu_custom_call.1} parent=87 // pred_region
          %s741 = smul.u32 2, %s43
          %p742 = scmp.lt.s32.totalorder %s741, 3
          %s743 = scalar_select %p742, %s741, 3
          %s744 = smul.addr %s743, 8
          %s745 = scalar_lea.vmem %s0, %s744
          %s746 = smul.u32 2, %s43
        $region92: #{tpu_custom_call.1} parent=87 // pred_fallthru
          _
        // Predicated region
        $region93: #{tpu_custom_call.1} parent=87 // pred_check
          %p747 = pneg %p89
        $region94: #{tpu_custom_call.1} parent=87 // pred_check_branch
          %749 = sbr.rel (%p747) target = $region96
        $region95: #{tpu_custom_call.1} parent=87 // pred_region
          %s750 = smul.u32 2, %s43
          %p751 = scmp.lt.s32.totalorder %s750, 3
          %s752 = scalar_select %p751, %s750, 3
          %s753 = smul.addr %s752, 8
          %s754 = scalar_lea.vmem %s1, %s753
          %s755 = smul.u32 2, %s43
        $region96: #{tpu_custom_call.1} parent=87 // pred_fallthru
          _
        // Predicated region
        $region97: #{tpu_custom_call.1} parent=87 // pred_check
          %p756 = pneg %p115
        $region98: #{tpu_custom_call.1} parent=87 // pred_check_branch
          %758 = sbr.rel (%p756) target = $region100
        $region99: #{tpu_custom_call.1} parent=87 // pred_region
          %s759 = sand.u32 %s105, 1
          %s760 = scalar_lea.sflag [#allocation3], %s759
          %s761 = sand.u32 %s105, 1
          %s762 = smul.addr %s761, 4
          %s763 = scalar_lea.vmem [#allocation2], %s762
          %s764 = smul.u32 2, %s43
          %s766 = ssub.s32 64, 64
          %767 = vsyncadd %s760, %s766
          %s768 = smul.addr %s764, 32
          %s769 = scalar_lea.hbm %s2, %s768
          %s770 = sshll.u32 %s763, 4
          %s771 = int_to_ptr.vmem [resolvable:$true] %s770
          %776 = dma.hbm_to_vmem [thread:$0]  %s769, 64, %s771, %s760, 32, 32, 2
        $region100: #{tpu_custom_call.1} parent=87 // pred_fallthru
          _
        // Predicated region
        $region101: #{tpu_custom_call.1} parent=87 // pred_check
          %p777 = pneg %p141
        $region102: #{tpu_custom_call.1} parent=87 // pred_check_branch
          %779 = sbr.rel (%p777) target = $region104
        $region103: #{tpu_custom_call.1} parent=87 // pred_region
          %s780 = sand.u32 %s43, 1
          %s781 = scalar_lea.sflag [#allocation6], %s780
          %s782 = sand.u32 %s131, 1
          %s783 = smul.addr %s782, 4
          %s784 = scalar_lea.vmem [#allocation5], %s783
          %s785 = smul.u32 2, %s43
          %s787 = ssub.s32 64, 64
          %788 = vsyncadd %s781, %s787
          %s789 = smul.addr %s785, 32
          %s790 = scalar_lea.hbm %s3, %s789
          %s791 = sshll.u32 %s784, 4
          %s792 = int_to_ptr.vmem [resolvable:$true] %s791
          %797 = dma.hbm_to_vmem [thread:$0]  %s790, 64, %s792, %s781, 32, 32, 2
        $region104: #{tpu_custom_call.1} parent=87 // pred_fallthru
          _
      $region88: #{tpu_custom_call.1} parent=5 // pred_fallthru
        _
      %p798 = scmp.le.s32.totalorder 1, %s43
      %p799 = scmp.lt.s32.totalorder %s43, 3
      %p800 = pnand %p798, %p799
      %p801 = pneg %p800
      // Predicated region
      $region105: #{tpu_custom_call.1} parent=5 // pred_check
        _
      $region106: #{tpu_custom_call.1} parent=5 // pred_check_branch
        %803 = sbr.rel (%p800) target = $region108
      $region107: #{tpu_custom_call.1} parent=5 // pred_region
        %s804 = ssub.s32 %s43, 1
        %s805 = sand.u32 %s108, 1
        %s806 = scalar_lea.sflag [#allocation3], %s805
        %s807 = sand.u32 %s108, 1
        %s808 = smul.addr %s807, 4
        %s809 = scalar_lea.vmem [#allocation2], %s808
        // Predicated region
        $region109: #{tpu_custom_call.1} parent=107 // pred_check
          %p810 = pneg %p121
        $region110: #{tpu_custom_call.1} parent=107 // pred_check_branch
          %812 = sbr.rel (%p810) target = $region112
        $region111: #{tpu_custom_call.1} parent=107 // pred_region
          %813 = dma.done %s806, 64
        $region112: #{tpu_custom_call.1} parent=107 // pred_fallthru
          _
        %s814 = sand.u32 %s48, 1
        %s815 = scalar_lea.sflag [#allocation6], %s814
        %s816 = sand.u32 %s134, 1
        %s817 = smul.addr %s816, 4
        %s818 = scalar_lea.vmem [#allocation5], %s817
        // Predicated region
        $region113: #{tpu_custom_call.1} parent=107 // pred_check
          %p819 = pneg %p147
        $region114: #{tpu_custom_call.1} parent=107 // pred_check_branch
          %821 = sbr.rel (%p819) target = $region116
        $region115: #{tpu_custom_call.1} parent=107 // pred_region
          %822 = dma.done %s815, 64
        $region116: #{tpu_custom_call.1} parent=107 // pred_fallthru
          _
        // Predicated region
        $region117: #{tpu_custom_call.1} parent=107 // pred_check
          %p823 = pneg %p189
        $region118: #{tpu_custom_call.1} parent=107 // pred_check_branch
          %825 = sbr.rel (%p823) target = $region120
        $region119: #{tpu_custom_call.1} parent=107 // pred_region
          %826 = dma.done [#allocation6], 16
        $region120: #{tpu_custom_call.1} parent=107 // pred_fallthru
          _
        // Predicated region
        $region121: #{tpu_custom_call.1} parent=107 // pred_check
          %p827 = pneg %p210
        $region122: #{tpu_custom_call.1} parent=107 // pred_check_branch
          %829 = sbr.rel (%p827) target = $region124
        $region123: #{tpu_custom_call.1} parent=107 // pred_region
          %830 = dma.done [#allocation9], 512
        $region124: #{tpu_custom_call.1} parent=107 // pred_fallthru
          _
        // Predicated region
        $region125: #{tpu_custom_call.1} parent=107 // pred_check
          %p831 = pneg %p231
        $region126: #{tpu_custom_call.1} parent=107 // pred_check_branch
          %833 = sbr.rel (%p831) target = $region128
        $region127: #{tpu_custom_call.1} parent=107 // pred_region
          %834 = dma.done [#allocation9], 16
        $region128: #{tpu_custom_call.1} parent=107 // pred_fallthru
          _
        // Predicated region
        $region129: #{tpu_custom_call.1} parent=107 // pred_check
          %p835 = pneg %p252
        $region130: #{tpu_custom_call.1} parent=107 // pred_check_branch
          %837 = sbr.rel (%p835) target = $region132
        $region131: #{tpu_custom_call.1} parent=107 // pred_region
          %838 = dma.done [#allocation12], 512
        $region132: #{tpu_custom_call.1} parent=107 // pred_fallthru
          _
        // Predicated region
        $region133: #{tpu_custom_call.1} parent=107 // pred_check
          %p839 = pneg %p273
        $region134: #{tpu_custom_call.1} parent=107 // pred_check_branch
          %841 = sbr.rel (%p839) target = $region136
        $region135: #{tpu_custom_call.1} parent=107 // pred_region
          %842 = dma.done [#allocation12], 16
        $region136: #{tpu_custom_call.1} parent=107 // pred_fallthru
          _
        // Predicated region
        $region137: #{tpu_custom_call.1} parent=107 // pred_check
          %p843 = pneg %p315
        $region138: #{tpu_custom_call.1} parent=107 // pred_check_branch
          %845 = sbr.rel (%p843) target = $region140
        $region139: #{tpu_custom_call.1} parent=107 // pred_region
          %846 = dma.done [#allocation15], 16
        $region140: #{tpu_custom_call.1} parent=107 // pred_fallthru
          _
        // Predicated region
        $region141: #{tpu_custom_call.1} parent=107 // pred_check
          %p847 = pneg %p336
        $region142: #{tpu_custom_call.1} parent=107 // pred_check_branch
          %849 = sbr.rel (%p847) target = $region144
        $region143: #{tpu_custom_call.1} parent=107 // pred_region
          %850 = dma.done [#allocation15], 512
        $region144: #{tpu_custom_call.1} parent=107 // pred_fallthru
          _
        // Predicated region
        $region145: #{tpu_custom_call.1} parent=107 // pred_check
          %p851 = pneg %p357
        $region146: #{tpu_custom_call.1} parent=107 // pred_check_branch
          %853 = sbr.rel (%p851) target = $region148
        $region147: #{tpu_custom_call.1} parent=107 // pred_region
          %854 = dma.done [#allocation18], 16
        $region148: #{tpu_custom_call.1} parent=107 // pred_fallthru
          _
        // Predicated region
        $region149: #{tpu_custom_call.1} parent=107 // pred_check
          %p855 = pneg %p378
        $region150: #{tpu_custom_call.1} parent=107 // pred_check_branch
          %857 = sbr.rel (%p855) target = $region152
        $region151: #{tpu_custom_call.1} parent=107 // pred_region
          %858 = dma.done [#allocation18], 512
        $region152: #{tpu_custom_call.1} parent=107 // pred_fallthru
          _
        // Predicated region
        $region153: #{tpu_custom_call.1} parent=107 // pred_check
          %p859 = pneg %p399
        $region154: #{tpu_custom_call.1} parent=107 // pred_check_branch
          %861 = sbr.rel (%p859) target = $region156
        $region155: #{tpu_custom_call.1} parent=107 // pred_region
          %862 = dma.done [#allocation21], 16
        $region156: #{tpu_custom_call.1} parent=107 // pred_fallthru
          _
        // Predicated region
        $region157: #{tpu_custom_call.1} parent=107 // pred_check
          %p863 = pneg %p420
        $region158: #{tpu_custom_call.1} parent=107 // pred_check_branch
          %865 = sbr.rel (%p863) target = $region160
        $region159: #{tpu_custom_call.1} parent=107 // pred_region
          %866 = dma.done [#allocation21], 64
        $region160: #{tpu_custom_call.1} parent=107 // pred_fallthru
          _
        // Predicated region
        $region161: #{tpu_custom_call.1} parent=107 // pred_check
          %p867 = pneg %p441
        $region162: #{tpu_custom_call.1} parent=107 // pred_check_branch
          %869 = sbr.rel (%p867) target = $region164
        $region163: #{tpu_custom_call.1} parent=107 // pred_region
          %870 = dma.done [#allocation24], 64
        $region164: #{tpu_custom_call.1} parent=107 // pred_fallthru
          _
        // Predicated region
        $region165: #{tpu_custom_call.1} parent=107 // pred_check
          %p871 = pneg %p462
        $region166: #{tpu_custom_call.1} parent=107 // pred_check_branch
          %873 = sbr.rel (%p871) target = $region168
        $region167: #{tpu_custom_call.1} parent=107 // pred_region
          %874 = dma.done [#allocation24], 512
        $region168: #{tpu_custom_call.1} parent=107 // pred_fallthru
          _
        %s875 = smul.u32 2, %s48
        %p876 = scmp.lt.s32.totalorder %s875, 3
        %s877 = scalar_select %p876, %s875, 3
        %s878 = smul.addr %s877, 8
        %s879 = scalar_lea.vmem %s0, %s878
        %p880 = pneg %p69
        %p881 = pneg %p66
        %s882 = smul.u32 2, %s48
        %p883 = scmp.lt.s32.totalorder %s882, 3
        %s884 = scalar_select %p883, %s882, 3
        %s885 = smul.addr %s884, 8
        %s886 = scalar_lea.vmem %s1, %s885
        %p887 = pneg %p95
        %p888 = pneg %p92
        %s889 = sand.u32 %s108, 1
        %s890 = scalar_lea.sflag [#allocation3], %s889
        %s891 = sand.u32 %s108, 1
        %s892 = smul.addr %s891, 4
        %s893 = scalar_lea.vmem [#allocation2], %s892
        %p894 = pneg %p121
        %p895 = pneg %p118
        %s896 = sand.u32 %s48, 1
        %s897 = scalar_lea.sflag [#allocation6], %s896
        %s898 = sand.u32 %s134, 1
        %s899 = smul.addr %s898, 4
        %s900 = scalar_lea.vmem [#allocation5], %s899
        %p901 = pneg %p147
        %p902 = pneg %p144
        %p903 = pneg %p168
        %p904 = pneg %p165
        %p905 = pneg %p189
        %p906 = pneg %p186
        %p907 = pneg %p210
        %p908 = pneg %p207
        %p909 = pneg %p231
        %p910 = pneg %p228
        %p911 = pneg %p252
        %p912 = pneg %p249
        %p913 = pneg %p273
        %p914 = pneg %p270
        %p915 = pneg %p294
        %p916 = pneg %p291
        %p917 = pneg %p315
        %p918 = pneg %p312
        %p919 = pneg %p336
        %p920 = pneg %p333
        %p921 = pneg %p357
        %p922 = pneg %p354
        %p923 = pneg %p378
        %p924 = pneg %p375
        %p925 = pneg %p399
        %p926 = pneg %p396
        %p927 = pneg %p420
        %p928 = pneg %p417
        %p929 = pneg %p441
        %p930 = pneg %p438
        %p931 = pneg %p462
        %p932 = pneg %p459
        %p933 = pneg %p483
        %p934 = pneg %p480
        %p935 = pneg %p504
        %p936 = pneg %p501
        %p937 = pneg %p525
        %p938 = pneg %p522
        %p939 = pneg %p551
        %p940 = pneg %p548
        %s941 = sand.u32 %s538, 1
        %s942 = scalar_lea.sflag [#allocation4], %s941
        %s943 = sand.u32 %s538, 1
        %s944 = smul.addr %s943, 16
        %s945 = scalar_lea.vmem [#allocation26], %s944
        %s946 = smul.u32 2, %s48
        %p947 = scmp.lt.s32.totalorder %s946, 3
        %s948 = scalar_select %p947, %s946, 3
        %s949 = smul.addr %s948, 8
        %s950 = scalar_lea.vmem %s0, %s949
        %s951 = smul.u32 2, %s48
        %s952 = smul.u32 2, %s48
        %p953 = scmp.lt.s32.totalorder %s952, 3
        %s954 = scalar_select %p953, %s952, 3
        %s955 = smul.addr %s954, 8
        %s956 = scalar_lea.vmem %s1, %s955
        %s957 = smul.u32 2, %s48
        %s958 = smul.u32 2, %s48
        %s959 = smul.u32 2, %s48
        %s960 = smul.u32 2, %s48
        %v962 = vld [vmem:[%s950] sm:$0xff]
        %v963 = vld [vmem:[%s950 + $0x8] sm:$0xff]
        %v964 = vld [vmem:[%s956] sm:$0xff]
        %v965 = vld [vmem:[%s956 + $0x8] sm:$0xff]
        %v966 = vld [vmem:[%s809] sm:$0x3]
        %v967 = vld [vmem:[%s809 + $0x2] sm:$0x3]
        %v968 = vunpack.c.0.s8 %v966
        %v969 = vunpack.c.0.s8 %v967
        %vm970 = vcmp.ne.s32.totalorder %v968, 0
        %vm971 = vcmp.ne.s32.totalorder %v969, 0
        %v972 = vsel %vm970, 1, 0
        %v973 = vsel %vm971, 1, 0
        %v974 = vcvt.s32.f32 %v972
        %v975 = vcvt.s32.f32 %v973
        %v976 = vld [vmem:[%s818] sm:$0x3]
        %v977 = vld [vmem:[%s818 + $0x2] sm:$0x3]
        %v978 = vunpack.c.0.s8 %v976
        %v979 = vunpack.c.0.s8 %v977
        %vm980 = vcmp.ne.s32.totalorder %v978, 0
        %vm981 = vcmp.ne.s32.totalorder %v979, 0
        %v982 = vsel %vm980, 1, 0
        %v983 = vsel %vm981, 1, 0
        %v984 = vcvt.s32.f32 %v982
        %v985 = vcvt.s32.f32 %v983
        %v986 = vld [vmem:[#allocation22] sm:$0x7]
        %v987 = vld [vmem:[#allocation23] sm:$0x7]
        %v988 = vld [vmem:[%s4] sm:$0xf]
        %v989 = vld [vmem:[%s4 + $0x4] sm:$0xf]
        %v990 = vld [vmem:[%s4 + $0x8] sm:$0xf]
        %v991 = vld [vmem:[%s4 + $0xc] sm:$0xf]
        %v992 = vld [vmem:[%s4 + $0x10] sm:$0xf]
        %v993 = vld [vmem:[%s4 + $0x14] sm:$0xf]
        %v994 = vld [vmem:[%s4 + $0x18] sm:$0xf]
        %v995 = vld [vmem:[%s4 + $0x1c] sm:$0xf]
        %v996 = vld [vmem:[#allocation7] sm:$0x1]
        %v997 = vld [vmem:[#allocation8] sm:$0xf]
        %v998 = vld [vmem:[#allocation8 + $0x4] sm:$0xf]
        %v999 = vld [vmem:[#allocation8 + $0x8] sm:$0xf]
        %v1000 = vld [vmem:[#allocation8 + $0xc] sm:$0xf]
        %v1001 = vld [vmem:[#allocation8 + $0x10] sm:$0xf]
        %v1002 = vld [vmem:[#allocation8 + $0x14] sm:$0xf]
        %v1003 = vld [vmem:[#allocation8 + $0x18] sm:$0xf]
        %v1004 = vld [vmem:[#allocation8 + $0x1c] sm:$0xf]
        %v1005 = vld [vmem:[#allocation10] sm:$0x1]
        %v1006 = vld [vmem:[#allocation11] sm:$0xf]
        %v1007 = vld [vmem:[#allocation11 + $0x4] sm:$0xf]
        %v1008 = vld [vmem:[#allocation11 + $0x8] sm:$0xf]
        %v1009 = vld [vmem:[#allocation11 + $0xc] sm:$0xf]
        %v1010 = vld [vmem:[#allocation11 + $0x10] sm:$0xf]
        %v1011 = vld [vmem:[#allocation11 + $0x14] sm:$0xf]
        %v1012 = vld [vmem:[#allocation11 + $0x18] sm:$0xf]
        %v1013 = vld [vmem:[#allocation11 + $0x1c] sm:$0xf]
        %v1014 = vld [vmem:[#allocation13] sm:$0x1]
        %v1015 = vpack.c.bf16 %v963, %v962
        %v1017 = vlaneseq
        %v1018 = vshrl.u32 %v1017, 7
        %v1019 = vsub.s32 0, %v1018
        %v1020 = vrot.slane %v996, %v1019
        %v1030 = vunpack.c.l.b16 %v988
        %v1031 = vunpack.c.l.b16 %v989
        %v1032 = vunpack.c.l.b16 %v990
        %v1033 = vunpack.c.l.b16 %v991
        %v1034 = vunpack.c.l.b16 %v992
        %v1035 = vunpack.c.l.b16 %v993
        %v1036 = vunpack.c.l.b16 %v994
        %v1037 = vunpack.c.l.b16 %v995
        %v1038 = vpack.c.b16 %v1031, %v1030
        %v1039 = vpack.c.b16 %v1033, %v1032
        %v1040 = vpack.c.b16 %v1035, %v1034
        %v1041 = vpack.c.b16 %v1037, %v1036
        %vm1046 = vcmask 523264
        %v1048 = vsel %vm1046, %v1015, 0
        %1050 = vmatprep.subr.bf16.mxu0 0
        %1051 = vmatpush1.bf16.msra.mxu0 %v1038
        %1052 = vmatprep.subr.bf16.mxu0 0
        %1053 = vmatpush1.bf16.msra.mxu0 %v1039
        %1054 = vmatprep.subr.bf16.mxu0 0
        %1055 = vmatpush1.bf16.msra.mxu0 %v1040
        %1056 = vmatprep.subr.bf16.mxu0 0
        %1057 = vmatpush1.bf16.msra.mxu0 %v1041
        %1058 = vmatprep.subr.bf16.mxu0 0
        %1059 = vmatpush1.bf16.msra.mxu0 0
        %1060 = vmatprep.subr.bf16.mxu0 0
        %1061 = vmatpush1.bf16.msra.mxu0 0
        %1062 = vmatprep.subr.bf16.mxu0 0
        %1063 = vmatpush1.bf16.msra.mxu0 0
        %1064 = vmatprep.subr.bf16.mxu0 0
        %1065 = vmatpush1.bf16.msra.mxu0 0
        %1066 = vmatprep.subr.bf16.mxu0 0
        %1067 = vmatpush1.bf16.msra.mxu0 0
        %1068 = vmatprep.subr.bf16.mxu0 0
        %1069 = vmatpush1.bf16.msra.mxu0 0
        %1070 = vmatprep.subr.bf16.mxu0 0
        %1071 = vmatpush1.bf16.msra.mxu0 0
        %1072 = vmatprep.subr.bf16.mxu0 0
        %1073 = vmatpush1.bf16.msra.mxu0 0
        %1074 = vmatprep.subr.bf16.mxu0 0
        %1075 = vmatpush1.bf16.msra.mxu0 0
        %1076 = vmatprep.subr.bf16.mxu0 0
        %1077 = vmatpush1.bf16.msra.mxu0 0
        %1078 = vmatprep.subr.bf16.mxu0 0
        %1079 = vmatpush1.bf16.msra.mxu0 0
        %1080 = vmatprep.subr.bf16.mxu0 0
        %1081 = vmatpush1.bf16.msra.mxu0 0
        %1082 = vmatprep.mubr.bf16.mxu0 0
        %1083 = vmatmul.mubr.bf16.gmra.mrb[0].mxu0 %v1048
        %v1084 = vpop.f32.mrb[0].mxu0
        %v1085 = vadd.f32 %v1020, %v1084
        %v1086 = vpop.f32.mrb[0].mxu0
        %v1087 = vpop.f32.mrb[0].mxu0
        %v1088 = vadd.f32 %v1020, %v1087
        %v1089 = vpop.f32.mrb[0].mxu0
        %1090 = vdwg.mxu0
        %v1092 = vlaneseq
        %v1093 = vshrl.u32 %v1092, 7
        %v1094 = vsub.s32 0, %v1093
        %v1095 = vrot.slane %v1005, %v1094
        %v1105 = vunpack.c.l.b16 %v997
        %v1106 = vunpack.c.l.b16 %v998
        %v1107 = vunpack.c.l.b16 %v999
        %v1108 = vunpack.c.l.b16 %v1000
        %v1109 = vunpack.c.l.b16 %v1001
        %v1110 = vunpack.c.l.b16 %v1002
        %v1111 = vunpack.c.l.b16 %v1003
        %v1112 = vunpack.c.l.b16 %v1004
        %v1113 = vpack.c.b16 %v1106, %v1105
        %v1114 = vpack.c.b16 %v1108, %v1107
        %v1115 = vpack.c.b16 %v1110, %v1109
        %v1116 = vpack.c.b16 %v1112, %v1111
        %1121 = vmatprep.subr.bf16.mxu0 0
        %1122 = vmatpush1.bf16.msra.mxu0 %v1113
        %1123 = vmatprep.subr.bf16.mxu0 0
        %1124 = vmatpush1.bf16.msra.mxu0 %v1114
        %1125 = vmatprep.subr.bf16.mxu0 0
        %1126 = vmatpush1.bf16.msra.mxu0 %v1115
        %1127 = vmatprep.subr.bf16.mxu0 0
        %1128 = vmatpush1.bf16.msra.mxu0 %v1116
        %1129 = vmatprep.subr.bf16.mxu0 0
        %1130 = vmatpush1.bf16.msra.mxu0 0
        %1131 = vmatprep.subr.bf16.mxu0 0
        %1132 = vmatpush1.bf16.msra.mxu0 0
        %1133 = vmatprep.subr.bf16.mxu0 0
        %1134 = vmatpush1.bf16.msra.mxu0 0
        %1135 = vmatprep.subr.bf16.mxu0 0
        %1136 = vmatpush1.bf16.msra.mxu0 0
        %1137 = vmatprep.subr.bf16.mxu0 0
        %1138 = vmatpush1.bf16.msra.mxu0 0
        %1139 = vmatprep.subr.bf16.mxu0 0
        %1140 = vmatpush1.bf16.msra.mxu0 0
        %1141 = vmatprep.subr.bf16.mxu0 0
        %1142 = vmatpush1.bf16.msra.mxu0 0
        %1143 = vmatprep.subr.bf16.mxu0 0
        %1144 = vmatpush1.bf16.msra.mxu0 0
        %1145 = vmatprep.subr.bf16.mxu0 0
        %1146 = vmatpush1.bf16.msra.mxu0 0
        %1147 = vmatprep.subr.bf16.mxu0 0
        %1148 = vmatpush1.bf16.msra.mxu0 0
        %1149 = vmatprep.subr.bf16.mxu0 0
        %1150 = vmatpush1.bf16.msra.mxu0 0
        %1151 = vmatprep.subr.bf16.mxu0 0
        %1152 = vmatpush1.bf16.msra.mxu0 0
        %1153 = vmatprep.mubr.bf16.mxu0 0
        %1154 = vmatmul.mubr.bf16.gmra.mrb[0].mxu0 %v1048
        %v1155 = vpop.f32.mrb[0].mxu0
        %v1156 = vadd.f32 %v1095, %v1155
        %v1157 = vpop.f32.mrb[0].mxu0
        %v1158 = vpop.f32.mrb[0].mxu0
        %v1159 = vadd.f32 %v1095, %v1158
        %v1160 = vpop.f32.mrb[0].mxu0
        %1161 = vdwg.mxu0
        %v1162 = vmul.f32 %v1085, 0.25
        %v1163 = vmul.f32 %v1088, 0.25
        %1166 = vrot.lane.b32.xlu0 %v1162, 112
        %v1167 = vpop.permute.xlu0 %1166
        %1168 = vrot.lane.b32.xlu0 %v1163, 112
        %v1169 = vpop.permute.xlu0 %1168
        %1172 = vrot.lane.b32.xlu0 %v1162, 96
        %v1173 = vpop.permute.xlu0 %1172
        %1174 = vrot.lane.b32.xlu0 %v1163, 96
        %v1175 = vpop.permute.xlu0 %1174
        %1178 = vrot.lane.b32.xlu0 %v1162, 80
        %v1179 = vpop.permute.xlu0 %1178
        %1180 = vrot.lane.b32.xlu0 %v1163, 80
        %v1181 = vpop.permute.xlu0 %1180
        %v1184 = vpack.c.bf16 %v1162, %v1162
        %v1185 = vpack.c.bf16 %v1163, %v1163
        %v1186 = vpack.c.bf16 %v1167, %v1167
        %v1187 = vpack.c.bf16 %v1169, %v1169
        %v1188 = vpack.c.bf16 %v1173, %v1173
        %v1189 = vpack.c.bf16 %v1175, %v1175
        %v1190 = vpack.c.bf16 %v1179, %v1179
        %v1191 = vpack.c.bf16 %v1181, %v1181
        %1194 = vrot.lane.b32.xlu0 %v1156, 112
        %v1195 = vpop.permute.xlu0 %1194
        %1196 = vrot.lane.b32.xlu0 %v1159, 112
        %v1197 = vpop.permute.xlu0 %1196
        %1200 = vrot.lane.b32.xlu0 %v1156, 96
        %v1201 = vpop.permute.xlu0 %1200
        %1202 = vrot.lane.b32.xlu0 %v1159, 96
        %v1203 = vpop.permute.xlu0 %1202
        %1206 = vrot.lane.b32.xlu0 %v1156, 80
        %v1207 = vpop.permute.xlu0 %1206
        %1208 = vrot.lane.b32.xlu0 %v1159, 80
        %v1209 = vpop.permute.xlu0 %1208
        %v1212 = vpack.c.bf16 %v1156, %v1156
        %v1213 = vpack.c.bf16 %v1159, %v1159
        %v1214 = vpack.c.bf16 %v1195, %v1195
        %v1215 = vpack.c.bf16 %v1197, %v1197
        %v1216 = vpack.c.bf16 %v1201, %v1201
        %v1217 = vpack.c.bf16 %v1203, %v1203
        %v1218 = vpack.c.bf16 %v1207, %v1207
        %v1219 = vpack.c.bf16 %v1209, %v1209
        %vm1220 = vcmask 130048
        %v1222 = vsel %vm1220, %v1184, 0
        %v1225 = vsel %vm1220, %v1212, 0
        %1227 = vmatprep.subr.bf16.mxu0 0
        %1228 = vmatpush1.bf16.xpose.msra.mxu0 %v1225
        %1229 = vmatprep.subr.bf16.mxu0 0
        %1230 = vmatpush1.bf16.xpose.msra.mxu0 0
        %1231 = vmatprep.subr.bf16.mxu0 0
        %1232 = vmatpush1.bf16.xpose.msra.mxu0 0
        %1233 = vmatprep.subr.bf16.mxu0 0
        %1234 = vmatpush1.bf16.xpose.msra.mxu0 0
        %1235 = vmatprep.subr.bf16.mxu0 0
        %1236 = vmatpush1.bf16.xpose.msra.mxu0 0
        %1237 = vmatprep.subr.bf16.mxu0 0
        %1238 = vmatpush1.bf16.xpose.msra.mxu0 0
        %1239 = vmatprep.subr.bf16.mxu0 0
        %1240 = vmatpush1.bf16.xpose.msra.mxu0 0
        %1241 = vmatprep.subr.bf16.mxu0 0
        %1242 = vmatpush1.bf16.xpose.msra.mxu0 0
        %1243 = vmatprep.subr.bf16.mxu0 0
        %1244 = vmatpush1.bf16.xpose.msra.mxu0 0
        %1245 = vmatprep.subr.bf16.mxu0 0
        %1246 = vmatpush1.bf16.xpose.msra.mxu0 0
        %1247 = vmatprep.subr.bf16.mxu0 0
        %1248 = vmatpush1.bf16.xpose.msra.mxu0 0
        %1249 = vmatprep.subr.bf16.mxu0 0
        %1250 = vmatpush1.bf16.xpose.msra.mxu0 0
        %1251 = vmatprep.subr.bf16.mxu0 0
        %1252 = vmatpush1.bf16.xpose.msra.mxu0 0
        %1253 = vmatprep.subr.bf16.mxu0 0
        %1254 = vmatpush1.bf16.xpose.msra.mxu0 0
        %1255 = vmatprep.subr.bf16.mxu0 0
        %1256 = vmatpush1.bf16.xpose.msra.mxu0 0
        %1257 = vmatprep.subr.bf16.mxu0 0
        %1258 = vmatpush1.bf16.xpose.msra.mxu0 0
        %1259 = vmatprep.mubr.bf16.mxu0 0
        %1260 = vmatmul.mubr.bf16.gmra.mrb[0].mxu0 %v1222
        %v1261 = vpop.f32.mrb[0].mxu0
        %v1262 = vadd.f32 0.0, %v1261
        %v1263 = vpop.f32.mrb[0].mxu0
        %v1264 = vpop.f32.mrb[0].mxu0
        %v1265 = vpop.f32.mrb[0].mxu0
        %1266 = vdwg.mxu0
        %v1268 = vsel %vm1220, %v1185, 0
        %v1271 = vsel %vm1220, %v1213, 0
        %1273 = vmatprep.subr.bf16.mxu0 0
        %1274 = vmatpush1.bf16.xpose.msra.mxu0 %v1271
        %1275 = vmatprep.subr.bf16.mxu0 0
        %1276 = vmatpush1.bf16.xpose.msra.mxu0 0
        %1277 = vmatprep.subr.bf16.mxu0 0
        %1278 = vmatpush1.bf16.xpose.msra.mxu0 0
        %1279 = vmatprep.subr.bf16.mxu0 0
        %1280 = vmatpush1.bf16.xpose.msra.mxu0 0
        %1281 = vmatprep.subr.bf16.mxu0 0
        %1282 = vmatpush1.bf16.xpose.msra.mxu0 0
        %1283 = vmatprep.subr.bf16.mxu0 0
        %1284 = vmatpush1.bf16.xpose.msra.mxu0 0
        %1285 = vmatprep.subr.bf16.mxu0 0
        %1286 = vmatpush1.bf16.xpose.msra.mxu0 0
        %1287 = vmatprep.subr.bf16.mxu0 0
        %1288 = vmatpush1.bf16.xpose.msra.mxu0 0
        %1289 = vmatprep.subr.bf16.mxu0 0
        %1290 = vmatpush1.bf16.xpose.msra.mxu0 0
        %1291 = vmatprep.subr.bf16.mxu0 0
        %1292 = vmatpush1.bf16.xpose.msra.mxu0 0
        %1293 = vmatprep.subr.bf16.mxu0 0
        %1294 = vmatpush1.bf16.xpose.msra.mxu0 0
        %1295 = vmatprep.subr.bf16.mxu0 0
        %1296 = vmatpush1.bf16.xpose.msra.mxu0 0
        %1297 = vmatprep.subr.bf16.mxu0 0
        %1298 = vmatpush1.bf16.xpose.msra.mxu0 0
        %1299 = vmatprep.subr.bf16.mxu0 0
        %1300 = vmatpush1.bf16.xpose.msra.mxu0 0
        %1301 = vmatprep.subr.bf16.mxu0 0
        %1302 = vmatpush1.bf16.xpose.msra.mxu0 0
        %1303 = vmatprep.subr.bf16.mxu0 0
        %1304 = vmatpush1.bf16.xpose.msra.mxu0 0
        %1305 = vmatprep.mubr.bf16.mxu0 0
        %1306 = vmatmul.mubr.bf16.gmra.mrb[0].mxu0 %v1268
        %v1307 = vpop.f32.mrb[0].mxu0
        %v1308 = vadd.f32 0.0, %v1307
        %v1309 = vpop.f32.mrb[0].mxu0
        %v1310 = vpop.f32.mrb[0].mxu0
        %v1311 = vpop.f32.mrb[0].mxu0
        %1312 = vdwg.mxu0
        %v1314 = vsel %vm1220, %v1186, 0
        %v1317 = vsel %vm1220, %v1214, 0
        %1319 = vmatprep.subr.bf16.mxu0 0
        %1320 = vmatpush1.bf16.xpose.msra.mxu0 %v1317
        %1321 = vmatprep.subr.bf16.mxu0 0
        %1322 = vmatpush1.bf16.xpose.msra.mxu0 0
        %1323 = vmatprep.subr.bf16.mxu0 0
        %1324 = vmatpush1.bf16.xpose.msra.mxu0 0
        %1325 = vmatprep.subr.bf16.mxu0 0
        %1326 = vmatpush1.bf16.xpose.msra.mxu0 0
        %1327 = vmatprep.subr.bf16.mxu0 0
        %1328 = vmatpush1.bf16.xpose.msra.mxu0 0
        %1329 = vmatprep.subr.bf16.mxu0 0
        %1330 = vmatpush1.bf16.xpose.msra.mxu0 0
        %1331 = vmatprep.subr.bf16.mxu0 0
        %1332 = vmatpush1.bf16.xpose.msra.mxu0 0
        %1333 = vmatprep.subr.bf16.mxu0 0
        %1334 = vmatpush1.bf16.xpose.msra.mxu0 0
        %1335 = vmatprep.subr.bf16.mxu0 0
        %1336 = vmatpush1.bf16.xpose.msra.mxu0 0
        %1337 = vmatprep.subr.bf16.mxu0 0
        %1338 = vmatpush1.bf16.xpose.msra.mxu0 0
        %1339 = vmatprep.subr.bf16.mxu0 0
        %1340 = vmatpush1.bf16.xpose.msra.mxu0 0
        %1341 = vmatprep.subr.bf16.mxu0 0
        %1342 = vmatpush1.bf16.xpose.msra.mxu0 0
        %1343 = vmatprep.subr.bf16.mxu0 0
        %1344 = vmatpush1.bf16.xpose.msra.mxu0 0
        %1345 = vmatprep.subr.bf16.mxu0 0
        %1346 = vmatpush1.bf16.xpose.msra.mxu0 0
        %1347 = vmatprep.subr.bf16.mxu0 0
        %1348 = vmatpush1.bf16.xpose.msra.mxu0 0
        %1349 = vmatprep.subr.bf16.mxu0 0
        %1350 = vmatpush1.bf16.xpose.msra.mxu0 0
        %1351 = vmatprep.mubr.bf16.mxu0 0
        %1352 = vmatmul.mubr.bf16.gmra.mrb[0].mxu0 %v1314
        %v1353 = vpop.f32.mrb[0].mxu0
        %v1354 = vadd.f32 0.0, %v1353
        %v1355 = vpop.f32.mrb[0].mxu0
        %v1356 = vpop.f32.mrb[0].mxu0
        %v1357 = vpop.f32.mrb[0].mxu0
        %1358 = vdwg.mxu0
        %v1360 = vsel %vm1220, %v1187, 0
        %v1363 = vsel %vm1220, %v1215, 0
        %1365 = vmatprep.subr.bf16.mxu0 0
        %1366 = vmatpush1.bf16.xpose.msra.mxu0 %v1363
        %1367 = vmatprep.subr.bf16.mxu0 0
        %1368 = vmatpush1.bf16.xpose.msra.mxu0 0
        %1369 = vmatprep.subr.bf16.mxu0 0
        %1370 = vmatpush1.bf16.xpose.msra.mxu0 0
        %1371 = vmatprep.subr.bf16.mxu0 0
        %1372 = vmatpush1.bf16.xpose.msra.mxu0 0
        %1373 = vmatprep.subr.bf16.mxu0 0
        %1374 = vmatpush1.bf16.xpose.msra.mxu0 0
        %1375 = vmatprep.subr.bf16.mxu0 0
        %1376 = vmatpush1.bf16.xpose.msra.mxu0 0
        %1377 = vmatprep.subr.bf16.mxu0 0
        %1378 = vmatpush1.bf16.xpose.msra.mxu0 0
        %1379 = vmatprep.subr.bf16.mxu0 0
        %1380 = vmatpush1.bf16.xpose.msra.mxu0 0
        %1381 = vmatprep.subr.bf16.mxu0 0
        %1382 = vmatpush1.bf16.xpose.msra.mxu0 0
        %1383 = vmatprep.subr.bf16.mxu0 0
        %1384 = vmatpush1.bf16.xpose.msra.mxu0 0
        %1385 = vmatprep.subr.bf16.mxu0 0
        %1386 = vmatpush1.bf16.xpose.msra.mxu0 0
        %1387 = vmatprep.subr.bf16.mxu0 0
        %1388 = vmatpush1.bf16.xpose.msra.mxu0 0
        %1389 = vmatprep.subr.bf16.mxu0 0
        %1390 = vmatpush1.bf16.xpose.msra.mxu0 0
        %1391 = vmatprep.subr.bf16.mxu0 0
        %1392 = vmatpush1.bf16.xpose.msra.mxu0 0
        %1393 = vmatprep.subr.bf16.mxu0 0
        %1394 = vmatpush1.bf16.xpose.msra.mxu0 0
        %1395 = vmatprep.subr.bf16.mxu0 0
        %1396 = vmatpush1.bf16.xpose.msra.mxu0 0
        %1397 = vmatprep.mubr.bf16.mxu0 0
        %1398 = vmatmul.mubr.bf16.gmra.mrb[0].mxu0 %v1360
        %v1399 = vpop.f32.mrb[0].mxu0
        %v1400 = vadd.f32 0.0, %v1399
        %v1401 = vpop.f32.mrb[0].mxu0
        %v1402 = vpop.f32.mrb[0].mxu0
        %v1403 = vpop.f32.mrb[0].mxu0
        %1404 = vdwg.mxu0
        %v1406 = vsel %vm1220, %v1188, 0
        %v1409 = vsel %vm1220, %v1216, 0
        %1411 = vmatprep.subr.bf16.mxu0 0
        %1412 = vmatpush1.bf16.xpose.msra.mxu0 %v1409
        %1413 = vmatprep.subr.bf16.mxu0 0
        %1414 = vmatpush1.bf16.xpose.msra.mxu0 0
        %1415 = vmatprep.subr.bf16.mxu0 0
        %1416 = vmatpush1.bf16.xpose.msra.mxu0 0
        %1417 = vmatprep.subr.bf16.mxu0 0
        %1418 = vmatpush1.bf16.xpose.msra.mxu0 0
        %1419 = vmatprep.subr.bf16.mxu0 0
        %1420 = vmatpush1.bf16.xpose.msra.mxu0 0
        %1421 = vmatprep.subr.bf16.mxu0 0
        %1422 = vmatpush1.bf16.xpose.msra.mxu0 0
        %1423 = vmatprep.subr.bf16.mxu0 0
        %1424 = vmatpush1.bf16.xpose.msra.mxu0 0
        %1425 = vmatprep.subr.bf16.mxu0 0
        %1426 = vmatpush1.bf16.xpose.msra.mxu0 0
        %1427 = vmatprep.subr.bf16.mxu0 0
        %1428 = vmatpush1.bf16.xpose.msra.mxu0 0
        %1429 = vmatprep.subr.bf16.mxu0 0
        %1430 = vmatpush1.bf16.xpose.msra.mxu0 0
        %1431 = vmatprep.subr.bf16.mxu0 0
        %1432 = vmatpush1.bf16.xpose.msra.mxu0 0
        %1433 = vmatprep.subr.bf16.mxu0 0
        %1434 = vmatpush1.bf16.xpose.msra.mxu0 0
        %1435 = vmatprep.subr.bf16.mxu0 0
        %1436 = vmatpush1.bf16.xpose.msra.mxu0 0
        %1437 = vmatprep.subr.bf16.mxu0 0
        %1438 = vmatpush1.bf16.xpose.msra.mxu0 0
        %1439 = vmatprep.subr.bf16.mxu0 0
        %1440 = vmatpush1.bf16.xpose.msra.mxu0 0
        %1441 = vmatprep.subr.bf16.mxu0 0
        %1442 = vmatpush1.bf16.xpose.msra.mxu0 0
        %1443 = vmatprep.mubr.bf16.mxu0 0
        %1444 = vmatmul.mubr.bf16.gmra.mrb[0].mxu0 %v1406
        %v1445 = vpop.f32.mrb[0].mxu0
        %v1446 = vadd.f32 0.0, %v1445
        %v1447 = vpop.f32.mrb[0].mxu0
        %v1448 = vpop.f32.mrb[0].mxu0
        %v1449 = vpop.f32.mrb[0].mxu0
        %1450 = vdwg.mxu0
        %v1452 = vsel %vm1220, %v1189, 0
        %v1455 = vsel %vm1220, %v1217, 0
        %1457 = vmatprep.subr.bf16.mxu0 0
        %1458 = vmatpush1.bf16.xpose.msra.mxu0 %v1455
        %1459 = vmatprep.subr.bf16.mxu0 0
        %1460 = vmatpush1.bf16.xpose.msra.mxu0 0
        %1461 = vmatprep.subr.bf16.mxu0 0
        %1462 = vmatpush1.bf16.xpose.msra.mxu0 0
        %1463 = vmatprep.subr.bf16.mxu0 0
        %1464 = vmatpush1.bf16.xpose.msra.mxu0 0
        %1465 = vmatprep.subr.bf16.mxu0 0
        %1466 = vmatpush1.bf16.xpose.msra.mxu0 0
        %1467 = vmatprep.subr.bf16.mxu0 0
        %1468 = vmatpush1.bf16.xpose.msra.mxu0 0
        %1469 = vmatprep.subr.bf16.mxu0 0
        %1470 = vmatpush1.bf16.xpose.msra.mxu0 0
        %1471 = vmatprep.subr.bf16.mxu0 0
        %1472 = vmatpush1.bf16.xpose.msra.mxu0 0
        %1473 = vmatprep.subr.bf16.mxu0 0
        %1474 = vmatpush1.bf16.xpose.msra.mxu0 0
        %1475 = vmatprep.subr.bf16.mxu0 0
        %1476 = vmatpush1.bf16.xpose.msra.mxu0 0
        %1477 = vmatprep.subr.bf16.mxu0 0
        %1478 = vmatpush1.bf16.xpose.msra.mxu0 0
        %1479 = vmatprep.subr.bf16.mxu0 0
        %1480 = vmatpush1.bf16.xpose.msra.mxu0 0
        %1481 = vmatprep.subr.bf16.mxu0 0
        %1482 = vmatpush1.bf16.xpose.msra.mxu0 0
        %1483 = vmatprep.subr.bf16.mxu0 0
        %1484 = vmatpush1.bf16.xpose.msra.mxu0 0
        %1485 = vmatprep.subr.bf16.mxu0 0
        %1486 = vmatpush1.bf16.xpose.msra.mxu0 0
        %1487 = vmatprep.subr.bf16.mxu0 0
        %1488 = vmatpush1.bf16.xpose.msra.mxu0 0
        %1489 = vmatprep.mubr.bf16.mxu0 0
        %1490 = vmatmul.mubr.bf16.gmra.mrb[0].mxu0 %v1452
        %v1491 = vpop.f32.mrb[0].mxu0
        %v1492 = vadd.f32 0.0, %v1491
        %v1493 = vpop.f32.mrb[0].mxu0
        %v1494 = vpop.f32.mrb[0].mxu0
        %v1495 = vpop.f32.mrb[0].mxu0
        %1496 = vdwg.mxu0
        %v1498 = vsel %vm1220, %v1190, 0
        %v1501 = vsel %vm1220, %v1218, 0
        %1503 = vmatprep.subr.bf16.mxu0 0
        %1504 = vmatpush1.bf16.xpose.msra.mxu0 %v1501
        %1505 = vmatprep.subr.bf16.mxu0 0
        %1506 = vmatpush1.bf16.xpose.msra.mxu0 0
        %1507 = vmatprep.subr.bf16.mxu0 0
        %1508 = vmatpush1.bf16.xpose.msra.mxu0 0
        %1509 = vmatprep.subr.bf16.mxu0 0
        %1510 = vmatpush1.bf16.xpose.msra.mxu0 0
        %1511 = vmatprep.subr.bf16.mxu0 0
        %1512 = vmatpush1.bf16.xpose.msra.mxu0 0
        %1513 = vmatprep.subr.bf16.mxu0 0
        %1514 = vmatpush1.bf16.xpose.msra.mxu0 0
        %1515 = vmatprep.subr.bf16.mxu0 0
        %1516 = vmatpush1.bf16.xpose.msra.mxu0 0
        %1517 = vmatprep.subr.bf16.mxu0 0
        %1518 = vmatpush1.bf16.xpose.msra.mxu0 0
        %1519 = vmatprep.subr.bf16.mxu0 0
        %1520 = vmatpush1.bf16.xpose.msra.mxu0 0
        %1521 = vmatprep.subr.bf16.mxu0 0
        %1522 = vmatpush1.bf16.xpose.msra.mxu0 0
        %1523 = vmatprep.subr.bf16.mxu0 0
        %1524 = vmatpush1.bf16.xpose.msra.mxu0 0
        %1525 = vmatprep.subr.bf16.mxu0 0
        %1526 = vmatpush1.bf16.xpose.msra.mxu0 0
        %1527 = vmatprep.subr.bf16.mxu0 0
        %1528 = vmatpush1.bf16.xpose.msra.mxu0 0
        %1529 = vmatprep.subr.bf16.mxu0 0
        %1530 = vmatpush1.bf16.xpose.msra.mxu0 0
        %1531 = vmatprep.subr.bf16.mxu0 0
        %1532 = vmatpush1.bf16.xpose.msra.mxu0 0
        %1533 = vmatprep.subr.bf16.mxu0 0
        %1534 = vmatpush1.bf16.xpose.msra.mxu0 0
        %1535 = vmatprep.mubr.bf16.mxu0 0
        %1536 = vmatmul.mubr.bf16.gmra.mrb[0].mxu0 %v1498
        %v1537 = vpop.f32.mrb[0].mxu0
        %v1538 = vadd.f32 0.0, %v1537
        %v1539 = vpop.f32.mrb[0].mxu0
        %v1540 = vpop.f32.mrb[0].mxu0
        %v1541 = vpop.f32.mrb[0].mxu0
        %1542 = vdwg.mxu0
        %v1544 = vsel %vm1220, %v1191, 0
        %v1547 = vsel %vm1220, %v1219, 0
        %1549 = vmatprep.subr.bf16.mxu0 0
        %1550 = vmatpush1.bf16.xpose.msra.mxu0 %v1547
        %1551 = vmatprep.subr.bf16.mxu0 0
        %1552 = vmatpush1.bf16.xpose.msra.mxu0 0
        %1553 = vmatprep.subr.bf16.mxu0 0
        %1554 = vmatpush1.bf16.xpose.msra.mxu0 0
        %1555 = vmatprep.subr.bf16.mxu0 0
        %1556 = vmatpush1.bf16.xpose.msra.mxu0 0
        %1557 = vmatprep.subr.bf16.mxu0 0
        %1558 = vmatpush1.bf16.xpose.msra.mxu0 0
        %1559 = vmatprep.subr.bf16.mxu0 0
        %1560 = vmatpush1.bf16.xpose.msra.mxu0 0
        %1561 = vmatprep.subr.bf16.mxu0 0
        %1562 = vmatpush1.bf16.xpose.msra.mxu0 0
        %1563 = vmatprep.subr.bf16.mxu0 0
        %1564 = vmatpush1.bf16.xpose.msra.mxu0 0
        %1565 = vmatprep.subr.bf16.mxu0 0
        %1566 = vmatpush1.bf16.xpose.msra.mxu0 0
        %1567 = vmatprep.subr.bf16.mxu0 0
        %1568 = vmatpush1.bf16.xpose.msra.mxu0 0
        %1569 = vmatprep.subr.bf16.mxu0 0
        %1570 = vmatpush1.bf16.xpose.msra.mxu0 0
        %1571 = vmatprep.subr.bf16.mxu0 0
        %1572 = vmatpush1.bf16.xpose.msra.mxu0 0
        %1573 = vmatprep.subr.bf16.mxu0 0
        %1574 = vmatpush1.bf16.xpose.msra.mxu0 0
        %1575 = vmatprep.subr.bf16.mxu0 0
        %1576 = vmatpush1.bf16.xpose.msra.mxu0 0
        %1577 = vmatprep.subr.bf16.mxu0 0
        %1578 = vmatpush1.bf16.xpose.msra.mxu0 0
        %1579 = vmatprep.subr.bf16.mxu0 0
        %1580 = vmatpush1.bf16.xpose.msra.mxu0 0
        %1581 = vmatprep.mubr.bf16.mxu0 0
        %1582 = vmatmul.mubr.bf16.gmra.mrb[0].mxu0 %v1544
        %v1583 = vpop.f32.mrb[0].mxu0
        %v1584 = vadd.f32 0.0, %v1583
        %v1585 = vpop.f32.mrb[0].mxu0
        %v1586 = vpop.f32.mrb[0].mxu0
        %v1587 = vpop.f32.mrb[0].mxu0
        %1588 = vdwg.mxu0
        %v1589 = vsub.f32 1.0, %v974
        %v1590 = vsub.f32 1.0, %v975
        %v1591 = vmul.f32 %v1589, -10000.0
        %v1592 = vmul.f32 %v1590, -10000.0
        %v1593 = vmul.f32 %v1262, %v974
        %v1594 = vmul.f32 %v1308, %v975
        %v1595 = vmul.f32 %v1354, %v974
        %v1596 = vmul.f32 %v1400, %v975
        %v1597 = vmul.f32 %v1446, %v974
        %v1598 = vmul.f32 %v1492, %v975
        %v1599 = vmul.f32 %v1538, %v974
        %v1600 = vmul.f32 %v1584, %v975
        %v1601 = vadd.f32 %v1593, %v1591
        %v1602 = vadd.f32 %v1594, %v1592
        %v1603 = vadd.f32 %v1595, %v1591
        %v1604 = vadd.f32 %v1596, %v1592
        %v1605 = vadd.f32 %v1597, %v1591
        %v1606 = vadd.f32 %v1598, %v1592
        %v1607 = vadd.f32 %v1599, %v1591
        %v1608 = vadd.f32 %v1600, %v1592
        %vm1609 = vcmask 64512
        %v1610 = vsel %vm1609, %v1601, -inf
        %1611 = vmax.xlane.f32.xlu0 %v1610
        %v1612 = vpop.xlane.xlu0 %1611
        %v1613 = vsel %vm1609, %v1602, -inf
        %1614 = vmax.xlane.f32.xlu0 %v1613
        %v1615 = vpop.xlane.xlu0 %1614
        %v1616 = vsel %vm1609, %v1603, -inf
        %1617 = vmax.xlane.f32.xlu0 %v1616
        %v1618 = vpop.xlane.xlu0 %1617
        %v1619 = vsel %vm1609, %v1604, -inf
        %1620 = vmax.xlane.f32.xlu0 %v1619
        %v1621 = vpop.xlane.xlu0 %1620
        %v1622 = vsel %vm1609, %v1605, -inf
        %1623 = vmax.xlane.f32.xlu0 %v1622
        %v1624 = vpop.xlane.xlu0 %1623
        %v1625 = vsel %vm1609, %v1606, -inf
        %1626 = vmax.xlane.f32.xlu0 %v1625
        %v1627 = vpop.xlane.xlu0 %1626
        %v1628 = vsel %vm1609, %v1607, -inf
        %1629 = vmax.xlane.f32.xlu0 %v1628
        %v1630 = vpop.xlane.xlu0 %1629
        %v1631 = vsel %vm1609, %v1608, -inf
        %1632 = vmax.xlane.f32.xlu0 %v1631
        %v1633 = vpop.xlane.xlu0 %1632
        %v1634 = vsub.f32 %v1601, %v1612
        %v1635 = vsub.f32 %v1602, %v1615
        %v1636 = vsub.f32 %v1603, %v1618
        %v1637 = vsub.f32 %v1604, %v1621
        %v1638 = vsub.f32 %v1605, %v1624
        %v1639 = vsub.f32 %v1606, %v1627
        %v1640 = vsub.f32 %v1607, %v1630
        %v1641 = vsub.f32 %v1608, %v1633
        %v1642 = vmul.f32 %v1634, 1.442695
        %v1643 = vpow.pop %v1642
        %v1644 = vmul.f32 %v1635, 1.442695
        %v1645 = vpow.pop %v1644
        %v1646 = vmul.f32 %v1636, 1.442695
        %v1647 = vpow.pop %v1646
        %v1648 = vmul.f32 %v1637, 1.442695
        %v1649 = vpow.pop %v1648
        %v1650 = vmul.f32 %v1638, 1.442695
        %v1651 = vpow.pop %v1650
        %v1652 = vmul.f32 %v1639, 1.442695
        %v1653 = vpow.pop %v1652
        %v1654 = vmul.f32 %v1640, 1.442695
        %v1655 = vpow.pop %v1654
        %v1656 = vmul.f32 %v1641, 1.442695
        %v1657 = vpow.pop %v1656
        %v1658 = vsel %vm1609, %v1643, 0.0
        %1659 = vadd.xlane.f32.xlu0 %v1658
        %v1660 = vpop.xlane.xlu0 %1659
        %v1661 = vsel %vm1609, %v1645, 0.0
        %1662 = vadd.xlane.f32.xlu0 %v1661
        %v1663 = vpop.xlane.xlu0 %1662
        %v1664 = vsel %vm1609, %v1647, 0.0
        %1665 = vadd.xlane.f32.xlu0 %v1664
        %v1666 = vpop.xlane.xlu0 %1665
        %v1667 = vsel %vm1609, %v1649, 0.0
        %1668 = vadd.xlane.f32.xlu0 %v1667
        %v1669 = vpop.xlane.xlu0 %1668
        %v1670 = vsel %vm1609, %v1651, 0.0
        %1671 = vadd.xlane.f32.xlu0 %v1670
        %v1672 = vpop.xlane.xlu0 %1671
        %v1673 = vsel %vm1609, %v1653, 0.0
        %1674 = vadd.xlane.f32.xlu0 %v1673
        %v1675 = vpop.xlane.xlu0 %1674
        %v1676 = vsel %vm1609, %v1655, 0.0
        %1677 = vadd.xlane.f32.xlu0 %v1676
        %v1678 = vpop.xlane.xlu0 %1677
        %v1679 = vsel %vm1609, %v1657, 0.0
        %1680 = vadd.xlane.f32.xlu0 %v1679
        %v1681 = vpop.xlane.xlu0 %1680
        %v1682 = vrcp.pop %v1660
        %v1683 = vrcp.pop %v1663
        %v1684 = vrcp.pop %v1666
        %v1685 = vrcp.pop %v1669
        %v1686 = vrcp.pop %v1672
        %v1687 = vrcp.pop %v1675
        %v1688 = vrcp.pop %v1678
        %v1689 = vrcp.pop %v1681
        %v1690 = vmul.f32 %v1643, %v1682
        %v1691 = vmul.f32 %v1645, %v1683
        %v1692 = vmul.f32 %v1647, %v1684
        %v1693 = vmul.f32 %v1649, %v1685
        %v1694 = vmul.f32 %v1651, %v1686
        %v1695 = vmul.f32 %v1653, %v1687
        %v1696 = vmul.f32 %v1655, %v1688
        %v1697 = vmul.f32 %v1657, %v1689
        %v1698 = vpack.c.bf16 %v1690, %v1690
        %v1699 = vpack.c.bf16 %v1691, %v1691
        %v1700 = vpack.c.bf16 %v1692, %v1692
        %v1701 = vpack.c.bf16 %v1693, %v1693
        %v1702 = vpack.c.bf16 %v1694, %v1694
        %v1703 = vpack.c.bf16 %v1695, %v1695
        %v1704 = vpack.c.bf16 %v1696, %v1696
        %v1705 = vpack.c.bf16 %v1697, %v1697
        %1707 = vrot.lane.b32.xlu0 %v1212, 64
        %v1708 = vpop.permute.xlu0 %1707
        %v1710 = vsel %vm1609, %v1698, 0
        %vm1712 = vcmask 1043456
        %v1714 = vsel %vm1712, %v1708, 0
        %1716 = vmatprep.subr.bf16.mxu0 0
        %1717 = vmatpush1.bf16.msra.mxu0 %v1714
        %1718 = vmatprep.subr.bf16.mxu0 0
        %1719 = vmatpush1.bf16.msra.mxu0 0
        %1720 = vmatprep.subr.bf16.mxu0 0
        %1721 = vmatpush1.bf16.msra.mxu0 0
        %1722 = vmatprep.subr.bf16.mxu0 0
        %1723 = vmatpush1.bf16.msra.mxu0 0
        %1724 = vmatprep.subr.bf16.mxu0 0
        %1725 = vmatpush1.bf16.msra.mxu0 0
        %1726 = vmatprep.subr.bf16.mxu0 0
        %1727 = vmatpush1.bf16.msra.mxu0 0
        %1728 = vmatprep.subr.bf16.mxu0 0
        %1729 = vmatpush1.bf16.msra.mxu0 0
        %1730 = vmatprep.subr.bf16.mxu0 0
        %1731 = vmatpush1.bf16.msra.mxu0 0
        %1732 = vmatprep.subr.bf16.mxu0 0
        %1733 = vmatpush1.bf16.msra.mxu0 0
        %1734 = vmatprep.subr.bf16.mxu0 0
        %1735 = vmatpush1.bf16.msra.mxu0 0
        %1736 = vmatprep.subr.bf16.mxu0 0
        %1737 = vmatpush1.bf16.msra.mxu0 0
        %1738 = vmatprep.subr.bf16.mxu0 0
        %1739 = vmatpush1.bf16.msra.mxu0 0
        %1740 = vmatprep.subr.bf16.mxu0 0
        %1741 = vmatpush1.bf16.msra.mxu0 0
        %1742 = vmatprep.subr.bf16.mxu0 0
        %1743 = vmatpush1.bf16.msra.mxu0 0
        %1744 = vmatprep.subr.bf16.mxu0 0
        %1745 = vmatpush1.bf16.msra.mxu0 0
        %1746 = vmatprep.subr.bf16.mxu0 0
        %1747 = vmatpush1.bf16.msra.mxu0 0
        %1748 = vmatprep.mubr.bf16.mxu0 0
        %1749 = vmatmul.mubr.bf16.gmra.mrb[0].mxu0 %v1710
        %v1750 = vpop.f32.mrb[0].mxu0
        %v1751 = vadd.f32 0.0, %v1750
        %v1752 = vpop.f32.mrb[0].mxu0
        %v1753 = vpop.f32.mrb[0].mxu0
        %v1754 = vpop.f32.mrb[0].mxu0
        %1755 = vdwg.mxu0
        %1757 = vrot.lane.b32.xlu0 %v1213, 64
        %v1758 = vpop.permute.xlu0 %1757
        %v1760 = vsel %vm1609, %v1699, 0
        %v1763 = vsel %vm1712, %v1758, 0
        %1765 = vmatprep.subr.bf16.mxu0 0
        %1766 = vmatpush1.bf16.msra.mxu0 %v1763
        %1767 = vmatprep.subr.bf16.mxu0 0
        %1768 = vmatpush1.bf16.msra.mxu0 0
        %1769 = vmatprep.subr.bf16.mxu0 0
        %1770 = vmatpush1.bf16.msra.mxu0 0
        %1771 = vmatprep.subr.bf16.mxu0 0
        %1772 = vmatpush1.bf16.msra.mxu0 0
        %1773 = vmatprep.subr.bf16.mxu0 0
        %1774 = vmatpush1.bf16.msra.mxu0 0
        %1775 = vmatprep.subr.bf16.mxu0 0
        %1776 = vmatpush1.bf16.msra.mxu0 0
        %1777 = vmatprep.subr.bf16.mxu0 0
        %1778 = vmatpush1.bf16.msra.mxu0 0
        %1779 = vmatprep.subr.bf16.mxu0 0
        %1780 = vmatpush1.bf16.msra.mxu0 0
        %1781 = vmatprep.subr.bf16.mxu0 0
        %1782 = vmatpush1.bf16.msra.mxu0 0
        %1783 = vmatprep.subr.bf16.mxu0 0
        %1784 = vmatpush1.bf16.msra.mxu0 0
        %1785 = vmatprep.subr.bf16.mxu0 0
        %1786 = vmatpush1.bf16.msra.mxu0 0
        %1787 = vmatprep.subr.bf16.mxu0 0
        %1788 = vmatpush1.bf16.msra.mxu0 0
        %1789 = vmatprep.subr.bf16.mxu0 0
        %1790 = vmatpush1.bf16.msra.mxu0 0
        %1791 = vmatprep.subr.bf16.mxu0 0
        %1792 = vmatpush1.bf16.msra.mxu0 0
        %1793 = vmatprep.subr.bf16.mxu0 0
        %1794 = vmatpush1.bf16.msra.mxu0 0
        %1795 = vmatprep.subr.bf16.mxu0 0
        %1796 = vmatpush1.bf16.msra.mxu0 0
        %1797 = vmatprep.mubr.bf16.mxu0 0
        %1798 = vmatmul.mubr.bf16.gmra.mrb[0].mxu0 %v1760
        %v1799 = vpop.f32.mrb[0].mxu0
        %v1800 = vadd.f32 0.0, %v1799
        %v1801 = vpop.f32.mrb[0].mxu0
        %v1802 = vpop.f32.mrb[0].mxu0
        %v1803 = vpop.f32.mrb[0].mxu0
        %1804 = vdwg.mxu0
        %1806 = vrot.lane.b32.xlu0 %v1214, 64
        %v1807 = vpop.permute.xlu0 %1806
        %v1809 = vsel %vm1609, %v1700, 0
        %v1812 = vsel %vm1712, %v1807, 0
        %1814 = vmatprep.subr.bf16.mxu0 0
        %1815 = vmatpush1.bf16.msra.mxu0 %v1812
        %1816 = vmatprep.subr.bf16.mxu0 0
        %1817 = vmatpush1.bf16.msra.mxu0 0
        %1818 = vmatprep.subr.bf16.mxu0 0
        %1819 = vmatpush1.bf16.msra.mxu0 0
        %1820 = vmatprep.subr.bf16.mxu0 0
        %1821 = vmatpush1.bf16.msra.mxu0 0
        %1822 = vmatprep.subr.bf16.mxu0 0
        %1823 = vmatpush1.bf16.msra.mxu0 0
        %1824 = vmatprep.subr.bf16.mxu0 0
        %1825 = vmatpush1.bf16.msra.mxu0 0
        %1826 = vmatprep.subr.bf16.mxu0 0
        %1827 = vmatpush1.bf16.msra.mxu0 0
        %1828 = vmatprep.subr.bf16.mxu0 0
        %1829 = vmatpush1.bf16.msra.mxu0 0
        %1830 = vmatprep.subr.bf16.mxu0 0
        %1831 = vmatpush1.bf16.msra.mxu0 0
        %1832 = vmatprep.subr.bf16.mxu0 0
        %1833 = vmatpush1.bf16.msra.mxu0 0
        %1834 = vmatprep.subr.bf16.mxu0 0
        %1835 = vmatpush1.bf16.msra.mxu0 0
        %1836 = vmatprep.subr.bf16.mxu0 0
        %1837 = vmatpush1.bf16.msra.mxu0 0
        %1838 = vmatprep.subr.bf16.mxu0 0
        %1839 = vmatpush1.bf16.msra.mxu0 0
        %1840 = vmatprep.subr.bf16.mxu0 0
        %1841 = vmatpush1.bf16.msra.mxu0 0
        %1842 = vmatprep.subr.bf16.mxu0 0
        %1843 = vmatpush1.bf16.msra.mxu0 0
        %1844 = vmatprep.subr.bf16.mxu0 0
        %1845 = vmatpush1.bf16.msra.mxu0 0
        %1846 = vmatprep.mubr.bf16.mxu0 0
        %1847 = vmatmul.mubr.bf16.gmra.mrb[0].mxu0 %v1809
        %v1848 = vpop.f32.mrb[0].mxu0
        %v1849 = vadd.f32 0.0, %v1848
        %v1850 = vpop.f32.mrb[0].mxu0
        %v1851 = vpop.f32.mrb[0].mxu0
        %v1852 = vpop.f32.mrb[0].mxu0
        %1853 = vdwg.mxu0
        %1855 = vrot.lane.b32.xlu0 %v1215, 64
        %v1856 = vpop.permute.xlu0 %1855
        %v1858 = vsel %vm1609, %v1701, 0
        %v1861 = vsel %vm1712, %v1856, 0
        %1863 = vmatprep.subr.bf16.mxu0 0
        %1864 = vmatpush1.bf16.msra.mxu0 %v1861
        %1865 = vmatprep.subr.bf16.mxu0 0
        %1866 = vmatpush1.bf16.msra.mxu0 0
        %1867 = vmatprep.subr.bf16.mxu0 0
        %1868 = vmatpush1.bf16.msra.mxu0 0
        %1869 = vmatprep.subr.bf16.mxu0 0
        %1870 = vmatpush1.bf16.msra.mxu0 0
        %1871 = vmatprep.subr.bf16.mxu0 0
        %1872 = vmatpush1.bf16.msra.mxu0 0
        %1873 = vmatprep.subr.bf16.mxu0 0
        %1874 = vmatpush1.bf16.msra.mxu0 0
        %1875 = vmatprep.subr.bf16.mxu0 0
        %1876 = vmatpush1.bf16.msra.mxu0 0
        %1877 = vmatprep.subr.bf16.mxu0 0
        %1878 = vmatpush1.bf16.msra.mxu0 0
        %1879 = vmatprep.subr.bf16.mxu0 0
        %1880 = vmatpush1.bf16.msra.mxu0 0
        %1881 = vmatprep.subr.bf16.mxu0 0
        %1882 = vmatpush1.bf16.msra.mxu0 0
        %1883 = vmatprep.subr.bf16.mxu0 0
        %1884 = vmatpush1.bf16.msra.mxu0 0
        %1885 = vmatprep.subr.bf16.mxu0 0
        %1886 = vmatpush1.bf16.msra.mxu0 0
        %1887 = vmatprep.subr.bf16.mxu0 0
        %1888 = vmatpush1.bf16.msra.mxu0 0
        %1889 = vmatprep.subr.bf16.mxu0 0
        %1890 = vmatpush1.bf16.msra.mxu0 0
        %1891 = vmatprep.subr.bf16.mxu0 0
        %1892 = vmatpush1.bf16.msra.mxu0 0
        %1893 = vmatprep.subr.bf16.mxu0 0
        %1894 = vmatpush1.bf16.msra.mxu0 0
        %1895 = vmatprep.mubr.bf16.mxu0 0
        %1896 = vmatmul.mubr.bf16.gmra.mrb[0].mxu0 %v1858
        %v1897 = vpop.f32.mrb[0].mxu0
        %v1898 = vadd.f32 0.0, %v1897
        %v1899 = vpop.f32.mrb[0].mxu0
        %v1900 = vpop.f32.mrb[0].mxu0
        %v1901 = vpop.f32.mrb[0].mxu0
        %1902 = vdwg.mxu0
        %1904 = vrot.lane.b32.xlu0 %v1216, 64
        %v1905 = vpop.permute.xlu0 %1904
        %v1907 = vsel %vm1609, %v1702, 0
        %v1910 = vsel %vm1712, %v1905, 0
        %1912 = vmatprep.subr.bf16.mxu0 0
        %1913 = vmatpush1.bf16.msra.mxu0 %v1910
        %1914 = vmatprep.subr.bf16.mxu0 0
        %1915 = vmatpush1.bf16.msra.mxu0 0
        %1916 = vmatprep.subr.bf16.mxu0 0
        %1917 = vmatpush1.bf16.msra.mxu0 0
        %1918 = vmatprep.subr.bf16.mxu0 0
        %1919 = vmatpush1.bf16.msra.mxu0 0
        %1920 = vmatprep.subr.bf16.mxu0 0
        %1921 = vmatpush1.bf16.msra.mxu0 0
        %1922 = vmatprep.subr.bf16.mxu0 0
        %1923 = vmatpush1.bf16.msra.mxu0 0
        %1924 = vmatprep.subr.bf16.mxu0 0
        %1925 = vmatpush1.bf16.msra.mxu0 0
        %1926 = vmatprep.subr.bf16.mxu0 0
        %1927 = vmatpush1.bf16.msra.mxu0 0
        %1928 = vmatprep.subr.bf16.mxu0 0
        %1929 = vmatpush1.bf16.msra.mxu0 0
        %1930 = vmatprep.subr.bf16.mxu0 0
        %1931 = vmatpush1.bf16.msra.mxu0 0
        %1932 = vmatprep.subr.bf16.mxu0 0
        %1933 = vmatpush1.bf16.msra.mxu0 0
        %1934 = vmatprep.subr.bf16.mxu0 0
        %1935 = vmatpush1.bf16.msra.mxu0 0
        %1936 = vmatprep.subr.bf16.mxu0 0
        %1937 = vmatpush1.bf16.msra.mxu0 0
        %1938 = vmatprep.subr.bf16.mxu0 0
        %1939 = vmatpush1.bf16.msra.mxu0 0
        %1940 = vmatprep.subr.bf16.mxu0 0
        %1941 = vmatpush1.bf16.msra.mxu0 0
        %1942 = vmatprep.subr.bf16.mxu0 0
        %1943 = vmatpush1.bf16.msra.mxu0 0
        %1944 = vmatprep.mubr.bf16.mxu0 0
        %1945 = vmatmul.mubr.bf16.gmra.mrb[0].mxu0 %v1907
        %v1946 = vpop.f32.mrb[0].mxu0
        %v1947 = vadd.f32 0.0, %v1946
        %v1948 = vpop.f32.mrb[0].mxu0
        %v1949 = vpop.f32.mrb[0].mxu0
        %v1950 = vpop.f32.mrb[0].mxu0
        %1951 = vdwg.mxu0
        %1953 = vrot.lane.b32.xlu0 %v1217, 64
        %v1954 = vpop.permute.xlu0 %1953
        %v1956 = vsel %vm1609, %v1703, 0
        %v1959 = vsel %vm1712, %v1954, 0
        %1961 = vmatprep.subr.bf16.mxu0 0
        %1962 = vmatpush1.bf16.msra.mxu0 %v1959
        %1963 = vmatprep.subr.bf16.mxu0 0
        %1964 = vmatpush1.bf16.msra.mxu0 0
        %1965 = vmatprep.subr.bf16.mxu0 0
        %1966 = vmatpush1.bf16.msra.mxu0 0
        %1967 = vmatprep.subr.bf16.mxu0 0
        %1968 = vmatpush1.bf16.msra.mxu0 0
        %1969 = vmatprep.subr.bf16.mxu0 0
        %1970 = vmatpush1.bf16.msra.mxu0 0
        %1971 = vmatprep.subr.bf16.mxu0 0
        %1972 = vmatpush1.bf16.msra.mxu0 0
        %1973 = vmatprep.subr.bf16.mxu0 0
        %1974 = vmatpush1.bf16.msra.mxu0 0
        %1975 = vmatprep.subr.bf16.mxu0 0
        %1976 = vmatpush1.bf16.msra.mxu0 0
        %1977 = vmatprep.subr.bf16.mxu0 0
        %1978 = vmatpush1.bf16.msra.mxu0 0
        %1979 = vmatprep.subr.bf16.mxu0 0
        %1980 = vmatpush1.bf16.msra.mxu0 0
        %1981 = vmatprep.subr.bf16.mxu0 0
        %1982 = vmatpush1.bf16.msra.mxu0 0
        %1983 = vmatprep.subr.bf16.mxu0 0
        %1984 = vmatpush1.bf16.msra.mxu0 0
        %1985 = vmatprep.subr.bf16.mxu0 0
        %1986 = vmatpush1.bf16.msra.mxu0 0
        %1987 = vmatprep.subr.bf16.mxu0 0
        %1988 = vmatpush1.bf16.msra.mxu0 0
        %1989 = vmatprep.subr.bf16.mxu0 0
        %1990 = vmatpush1.bf16.msra.mxu0 0
        %1991 = vmatprep.subr.bf16.mxu0 0
        %1992 = vmatpush1.bf16.msra.mxu0 0
        %1993 = vmatprep.mubr.bf16.mxu0 0
        %1994 = vmatmul.mubr.bf16.gmra.mrb[0].mxu0 %v1956
        %v1995 = vpop.f32.mrb[0].mxu0
        %v1996 = vadd.f32 0.0, %v1995
        %v1997 = vpop.f32.mrb[0].mxu0
        %v1998 = vpop.f32.mrb[0].mxu0
        %v1999 = vpop.f32.mrb[0].mxu0
        %2000 = vdwg.mxu0
        %2002 = vrot.lane.b32.xlu0 %v1218, 64
        %v2003 = vpop.permute.xlu0 %2002
        %v2005 = vsel %vm1609, %v1704, 0
        %v2008 = vsel %vm1712, %v2003, 0
        %2010 = vmatprep.subr.bf16.mxu0 0
        %2011 = vmatpush1.bf16.msra.mxu0 %v2008
        %2012 = vmatprep.subr.bf16.mxu0 0
        %2013 = vmatpush1.bf16.msra.mxu0 0
        %2014 = vmatprep.subr.bf16.mxu0 0
        %2015 = vmatpush1.bf16.msra.mxu0 0
        %2016 = vmatprep.subr.bf16.mxu0 0
        %2017 = vmatpush1.bf16.msra.mxu0 0
        %2018 = vmatprep.subr.bf16.mxu0 0
        %2019 = vmatpush1.bf16.msra.mxu0 0
        %2020 = vmatprep.subr.bf16.mxu0 0
        %2021 = vmatpush1.bf16.msra.mxu0 0
        %2022 = vmatprep.subr.bf16.mxu0 0
        %2023 = vmatpush1.bf16.msra.mxu0 0
        %2024 = vmatprep.subr.bf16.mxu0 0
        %2025 = vmatpush1.bf16.msra.mxu0 0
        %2026 = vmatprep.subr.bf16.mxu0 0
        %2027 = vmatpush1.bf16.msra.mxu0 0
        %2028 = vmatprep.subr.bf16.mxu0 0
        %2029 = vmatpush1.bf16.msra.mxu0 0
        %2030 = vmatprep.subr.bf16.mxu0 0
        %2031 = vmatpush1.bf16.msra.mxu0 0
        %2032 = vmatprep.subr.bf16.mxu0 0
        %2033 = vmatpush1.bf16.msra.mxu0 0
        %2034 = vmatprep.subr.bf16.mxu0 0
        %2035 = vmatpush1.bf16.msra.mxu0 0
        %2036 = vmatprep.subr.bf16.mxu0 0
        %2037 = vmatpush1.bf16.msra.mxu0 0
        %2038 = vmatprep.subr.bf16.mxu0 0
        %2039 = vmatpush1.bf16.msra.mxu0 0
        %2040 = vmatprep.subr.bf16.mxu0 0
        %2041 = vmatpush1.bf16.msra.mxu0 0
        %2042 = vmatprep.mubr.bf16.mxu0 0
        %2043 = vmatmul.mubr.bf16.gmra.mrb[0].mxu0 %v2005
        %v2044 = vpop.f32.mrb[0].mxu0
        %v2045 = vadd.f32 0.0, %v2044
        %v2046 = vpop.f32.mrb[0].mxu0
        %v2047 = vpop.f32.mrb[0].mxu0
        %v2048 = vpop.f32.mrb[0].mxu0
        %2049 = vdwg.mxu0
        %2051 = vrot.lane.b32.xlu0 %v1219, 64
        %v2052 = vpop.permute.xlu0 %2051
        %v2054 = vsel %vm1609, %v1705, 0
        %v2057 = vsel %vm1712, %v2052, 0
        %2059 = vmatprep.subr.bf16.mxu0 0
        %2060 = vmatpush1.bf16.msra.mxu0 %v2057
        %2061 = vmatprep.subr.bf16.mxu0 0
        %2062 = vmatpush1.bf16.msra.mxu0 0
        %2063 = vmatprep.subr.bf16.mxu0 0
        %2064 = vmatpush1.bf16.msra.mxu0 0
        %2065 = vmatprep.subr.bf16.mxu0 0
        %2066 = vmatpush1.bf16.msra.mxu0 0
        %2067 = vmatprep.subr.bf16.mxu0 0
        %2068 = vmatpush1.bf16.msra.mxu0 0
        %2069 = vmatprep.subr.bf16.mxu0 0
        %2070 = vmatpush1.bf16.msra.mxu0 0
        %2071 = vmatprep.subr.bf16.mxu0 0
        %2072 = vmatpush1.bf16.msra.mxu0 0
        %2073 = vmatprep.subr.bf16.mxu0 0
        %2074 = vmatpush1.bf16.msra.mxu0 0
        %2075 = vmatprep.subr.bf16.mxu0 0
        %2076 = vmatpush1.bf16.msra.mxu0 0
        %2077 = vmatprep.subr.bf16.mxu0 0
        %2078 = vmatpush1.bf16.msra.mxu0 0
        %2079 = vmatprep.subr.bf16.mxu0 0
        %2080 = vmatpush1.bf16.msra.mxu0 0
        %2081 = vmatprep.subr.bf16.mxu0 0
        %2082 = vmatpush1.bf16.msra.mxu0 0
        %2083 = vmatprep.subr.bf16.mxu0 0
        %2084 = vmatpush1.bf16.msra.mxu0 0
        %2085 = vmatprep.subr.bf16.mxu0 0
        %2086 = vmatpush1.bf16.msra.mxu0 0
        %2087 = vmatprep.subr.bf16.mxu0 0
        %2088 = vmatpush1.bf16.msra.mxu0 0
        %2089 = vmatprep.subr.bf16.mxu0 0
        %2090 = vmatpush1.bf16.msra.mxu0 0
        %2091 = vmatprep.mubr.bf16.mxu0 0
        %2092 = vmatmul.mubr.bf16.gmra.mrb[0].mxu0 %v2054
        %v2093 = vpop.f32.mrb[0].mxu0
        %v2094 = vadd.f32 0.0, %v2093
        %v2095 = vpop.f32.mrb[0].mxu0
        %v2096 = vpop.f32.mrb[0].mxu0
        %v2097 = vpop.f32.mrb[0].mxu0
        %2098 = vdwg.mxu0
        %2101 = vrot.lane.b32.xlu0 %v1849, 16
        %v2102 = vpop.permute.xlu0 %2101
        %2103 = vrot.lane.b32.xlu0 %v1898, 16
        %v2104 = vpop.permute.xlu0 %2103
        %2109 = vrot.lane.b32.xlu0 %v1947, 32
        %v2110 = vpop.permute.xlu0 %2109
        %2111 = vrot.lane.b32.xlu0 %v1996, 32
        %v2112 = vpop.permute.xlu0 %2111
        %2117 = vrot.lane.b32.xlu0 %v2045, 48
        %v2118 = vpop.permute.xlu0 %2117
        %2119 = vrot.lane.b32.xlu0 %v2094, 48
        %v2120 = vpop.permute.xlu0 %2119
        %v2123 = vsel %vm1220, %v1751, %v2102
        %v2124 = vsel %vm1220, %v1800, %v2104
        %vm2125 = vcmask 261120
        %v2126 = vsel %vm2125, %v2123, %v2110
        %v2127 = vsel %vm2125, %v2124, %v2112
        %vm2128 = vcmask 392192
        %v2129 = vsel %vm2128, %v2126, %v2118
        %v2130 = vsel %vm2128, %v2127, %v2120
        %v2131 = vpack.c.bf16 %v2130, %v2129
        %v2133 = vlaneseq
        %v2134 = vshrl.u32 %v2133, 7
        %v2135 = vsub.s32 0, %v2134
        %v2136 = vrot.slane %v1014, %v2135
        %v2146 = vunpack.c.l.b16 %v1006
        %v2147 = vunpack.c.l.b16 %v1007
        %v2148 = vunpack.c.l.b16 %v1008
        %v2149 = vunpack.c.l.b16 %v1009
        %v2150 = vunpack.c.l.b16 %v1010
        %v2151 = vunpack.c.l.b16 %v1011
        %v2152 = vunpack.c.l.b16 %v1012
        %v2153 = vunpack.c.l.b16 %v1013
        %v2154 = vpack.c.b16 %v2147, %v2146
        %v2155 = vpack.c.b16 %v2149, %v2148
        %v2156 = vpack.c.b16 %v2151, %v2150
        %v2157 = vpack.c.b16 %v2153, %v2152
        %v2163 = vsel %vm1046, %v2131, 0
        %2165 = vmatprep.subr.bf16.mxu0 0
        %2166 = vmatpush1.bf16.msra.mxu0 %v2154
        %2167 = vmatprep.subr.bf16.mxu0 0
        %2168 = vmatpush1.bf16.msra.mxu0 %v2155
        %2169 = vmatprep.subr.bf16.mxu0 0
        %2170 = vmatpush1.bf16.msra.mxu0 %v2156
        %2171 = vmatprep.subr.bf16.mxu0 0
        %2172 = vmatpush1.bf16.msra.mxu0 %v2157
        %2173 = vmatprep.subr.bf16.mxu0 0
        %2174 = vmatpush1.bf16.msra.mxu0 0
        %2175 = vmatprep.subr.bf16.mxu0 0
        %2176 = vmatpush1.bf16.msra.mxu0 0
        %2177 = vmatprep.subr.bf16.mxu0 0
        %2178 = vmatpush1.bf16.msra.mxu0 0
        %2179 = vmatprep.subr.bf16.mxu0 0
        %2180 = vmatpush1.bf16.msra.mxu0 0
        %2181 = vmatprep.subr.bf16.mxu0 0
        %2182 = vmatpush1.bf16.msra.mxu0 0
        %2183 = vmatprep.subr.bf16.mxu0 0
        %2184 = vmatpush1.bf16.msra.mxu0 0
        %2185 = vmatprep.subr.bf16.mxu0 0
        %2186 = vmatpush1.bf16.msra.mxu0 0
        %2187 = vmatprep.subr.bf16.mxu0 0
        %2188 = vmatpush1.bf16.msra.mxu0 0
        %2189 = vmatprep.subr.bf16.mxu0 0
        %2190 = vmatpush1.bf16.msra.mxu0 0
        %2191 = vmatprep.subr.bf16.mxu0 0
        %2192 = vmatpush1.bf16.msra.mxu0 0
        %2193 = vmatprep.subr.bf16.mxu0 0
        %2194 = vmatpush1.bf16.msra.mxu0 0
        %2195 = vmatprep.subr.bf16.mxu0 0
        %2196 = vmatpush1.bf16.msra.mxu0 0
        %2197 = vmatprep.mubr.bf16.mxu0 0
        %2198 = vmatmul.mubr.bf16.gmra.mrb[0].mxu0 %v2163
        %v2199 = vpop.f32.mrb[0].mxu0
        %v2200 = vadd.f32 %v2136, %v2199
        %v2201 = vpop.f32.mrb[0].mxu0
        %v2202 = vpop.f32.mrb[0].mxu0
        %v2203 = vadd.f32 %v2136, %v2202
        %v2204 = vpop.f32.mrb[0].mxu0
        %2205 = vdwg.mxu0
        %v2206 = vadd.f32 %v962, %v2200
        %v2207 = vadd.f32 %v963, %v2203
        %v2208 = vsel %vm1046, %v2206, 0.0
        %2209 = vadd.xlane.f32.xlu0 %v2208
        %v2210 = vpop.xlane.xlu0 %2209
        %v2211 = vsel %vm1046, %v2207, 0.0
        %2212 = vadd.xlane.f32.xlu0 %v2211
        %v2213 = vpop.xlane.xlu0 %2212
        %v2214 = vrcp.pop 64.0
        %v2215 = vmul.f32 %v2210, %v2214
        %v2216 = vmul.f32 %v2213, %v2214
        %v2217 = vsub.f32 %v2206, %v2215
        %v2218 = vsub.f32 %v2207, %v2216
        %v2219 = vmul.f32 %v2217, %v2217
        %v2220 = vmul.f32 %v2218, %v2218
        %v2221 = vsel %vm1046, %v2219, 0.0
        %2222 = vadd.xlane.f32.xlu0 %v2221
        %v2223 = vpop.xlane.xlu0 %2222
        %v2224 = vsel %vm1046, %v2220, 0.0
        %2225 = vadd.xlane.f32.xlu0 %v2224
        %v2226 = vpop.xlane.xlu0 %2225
        %v2227 = vmul.f32 %v2223, %v2214
        %v2228 = vmul.f32 %v2226, %v2214
        %v2229 = vadd.f32 %v2227, 1e-12
        %v2230 = vadd.f32 %v2228, 1e-12
        %v2231 = vrsqrt.pop %v2229
        %v2232 = vrsqrt.pop %v2230
        %v2233 = vmul.f32 %v2217, %v2231
        %v2234 = vmul.f32 %v2218, %v2232
        %v2235 = vlaneseq
        %v2236 = vshrl.u32 %v2235, 7
        %v2237 = vsub.s32 0, %v2236
        %v2238 = vrot.slane %v986, %v2237
        %v2239 = vmul.f32 %v2233, %v2238
        %v2240 = vmul.f32 %v2234, %v2238
        %v2241 = vlaneseq
        %v2242 = vshrl.u32 %v2241, 7
        %v2243 = vsub.s32 0, %v2242
        %v2244 = vrot.slane %v987, %v2243
        %v2245 = vadd.f32 %v2239, %v2244
        %v2246 = vadd.f32 %v2240, %v2244
        %v2247 = vld [vmem:[%s10] sm:$0xf]
        %v2248 = vld [vmem:[%s10 + $0x4] sm:$0xf]
        %v2249 = vld [vmem:[%s10 + $0x8] sm:$0xf]
        %v2250 = vld [vmem:[%s10 + $0xc] sm:$0xf]
        %v2251 = vld [vmem:[%s10 + $0x10] sm:$0xf]
        %v2252 = vld [vmem:[%s10 + $0x14] sm:$0xf]
        %v2253 = vld [vmem:[%s10 + $0x18] sm:$0xf]
        %v2254 = vld [vmem:[%s10 + $0x1c] sm:$0xf]
        %v2255 = vld [vmem:[#allocation14] sm:$0x1]
        %v2256 = vld [vmem:[#allocation16] sm:$0xf]
        %v2257 = vld [vmem:[#allocation16 + $0x4] sm:$0xf]
        %v2258 = vld [vmem:[#allocation16 + $0x8] sm:$0xf]
        %v2259 = vld [vmem:[#allocation16 + $0xc] sm:$0xf]
        %v2260 = vld [vmem:[#allocation16 + $0x10] sm:$0xf]
        %v2261 = vld [vmem:[#allocation16 + $0x14] sm:$0xf]
        %v2262 = vld [vmem:[#allocation16 + $0x18] sm:$0xf]
        %v2263 = vld [vmem:[#allocation16 + $0x1c] sm:$0xf]
        %v2264 = vld [vmem:[#allocation17] sm:$0x1]
        %v2265 = vld [vmem:[#allocation19] sm:$0xf]
        %v2266 = vld [vmem:[#allocation19 + $0x4] sm:$0xf]
        %v2267 = vld [vmem:[#allocation19 + $0x8] sm:$0xf]
        %v2268 = vld [vmem:[#allocation19 + $0xc] sm:$0xf]
        %v2269 = vld [vmem:[#allocation19 + $0x10] sm:$0xf]
        %v2270 = vld [vmem:[#allocation19 + $0x14] sm:$0xf]
        %v2271 = vld [vmem:[#allocation19 + $0x18] sm:$0xf]
        %v2272 = vld [vmem:[#allocation19 + $0x1c] sm:$0xf]
        %v2273 = vld [vmem:[#allocation20] sm:$0x1]
        %v2274 = vpack.c.bf16 %v2246, %v2245
        %v2276 = vlaneseq
        %v2277 = vshrl.u32 %v2276, 7
        %v2278 = vsub.s32 0, %v2277
        %v2279 = vrot.slane %v2255, %v2278
        %v2289 = vunpack.c.l.b16 %v2247
        %v2290 = vunpack.c.l.b16 %v2248
        %v2291 = vunpack.c.l.b16 %v2249
        %v2292 = vunpack.c.l.b16 %v2250
        %v2293 = vunpack.c.l.b16 %v2251
        %v2294 = vunpack.c.l.b16 %v2252
        %v2295 = vunpack.c.l.b16 %v2253
        %v2296 = vunpack.c.l.b16 %v2254
        %v2297 = vpack.c.b16 %v2290, %v2289
        %v2298 = vpack.c.b16 %v2292, %v2291
        %v2299 = vpack.c.b16 %v2294, %v2293
        %v2300 = vpack.c.b16 %v2296, %v2295
        %v2306 = vsel %vm1046, %v2274, 0
        %2308 = vmatprep.subr.bf16.mxu0 0
        %2309 = vmatpush1.bf16.msra.mxu0 %v2297
        %2310 = vmatprep.subr.bf16.mxu0 0
        %2311 = vmatpush1.bf16.msra.mxu0 %v2298
        %2312 = vmatprep.subr.bf16.mxu0 0
        %2313 = vmatpush1.bf16.msra.mxu0 %v2299
        %2314 = vmatprep.subr.bf16.mxu0 0
        %2315 = vmatpush1.bf16.msra.mxu0 %v2300
        %2316 = vmatprep.subr.bf16.mxu0 0
        %2317 = vmatpush1.bf16.msra.mxu0 0
        %2318 = vmatprep.subr.bf16.mxu0 0
        %2319 = vmatpush1.bf16.msra.mxu0 0
        %2320 = vmatprep.subr.bf16.mxu0 0
        %2321 = vmatpush1.bf16.msra.mxu0 0
        %2322 = vmatprep.subr.bf16.mxu0 0
        %2323 = vmatpush1.bf16.msra.mxu0 0
        %2324 = vmatprep.subr.bf16.mxu0 0
        %2325 = vmatpush1.bf16.msra.mxu0 0
        %2326 = vmatprep.subr.bf16.mxu0 0
        %2327 = vmatpush1.bf16.msra.mxu0 0
        %2328 = vmatprep.subr.bf16.mxu0 0
        %2329 = vmatpush1.bf16.msra.mxu0 0
        %2330 = vmatprep.subr.bf16.mxu0 0
        %2331 = vmatpush1.bf16.msra.mxu0 0
        %2332 = vmatprep.subr.bf16.mxu0 0
        %2333 = vmatpush1.bf16.msra.mxu0 0
        %2334 = vmatprep.subr.bf16.mxu0 0
        %2335 = vmatpush1.bf16.msra.mxu0 0
        %2336 = vmatprep.subr.bf16.mxu0 0
        %2337 = vmatpush1.bf16.msra.mxu0 0
        %2338 = vmatprep.subr.bf16.mxu0 0
        %2339 = vmatpush1.bf16.msra.mxu0 0
        %2340 = vmatprep.mubr.bf16.mxu0 0
        %2341 = vmatmul.mubr.bf16.gmra.mrb[0].mxu0 %v2306
        %v2342 = vpop.f32.mrb[0].mxu0
        %v2343 = vadd.f32 %v2279, %v2342
        %v2344 = vpop.f32.mrb[0].mxu0
        %v2345 = vpop.f32.mrb[0].mxu0
        %v2346 = vadd.f32 %v2279, %v2345
        %v2347 = vpop.f32.mrb[0].mxu0
        %2348 = vdwg.mxu0
        %v2349 = vpack.c.bf16 %v965, %v964
        %v2351 = vlaneseq
        %v2352 = vshrl.u32 %v2351, 7
        %v2353 = vsub.s32 0, %v2352
        %v2354 = vrot.slane %v2264, %v2353
        %v2364 = vunpack.c.l.b16 %v2256
        %v2365 = vunpack.c.l.b16 %v2257
        %v2366 = vunpack.c.l.b16 %v2258
        %v2367 = vunpack.c.l.b16 %v2259
        %v2368 = vunpack.c.l.b16 %v2260
        %v2369 = vunpack.c.l.b16 %v2261
        %v2370 = vunpack.c.l.b16 %v2262
        %v2371 = vunpack.c.l.b16 %v2263
        %v2372 = vpack.c.b16 %v2365, %v2364
        %v2373 = vpack.c.b16 %v2367, %v2366
        %v2374 = vpack.c.b16 %v2369, %v2368
        %v2375 = vpack.c.b16 %v2371, %v2370
        %v2381 = vsel %vm1046, %v2349, 0
        %2383 = vmatprep.subr.bf16.mxu0 0
        %2384 = vmatpush1.bf16.msra.mxu0 %v2372
        %2385 = vmatprep.subr.bf16.mxu0 0
        %2386 = vmatpush1.bf16.msra.mxu0 %v2373
        %2387 = vmatprep.subr.bf16.mxu0 0
        %2388 = vmatpush1.bf16.msra.mxu0 %v2374
        %2389 = vmatprep.subr.bf16.mxu0 0
        %2390 = vmatpush1.bf16.msra.mxu0 %v2375
        %2391 = vmatprep.subr.bf16.mxu0 0
        %2392 = vmatpush1.bf16.msra.mxu0 0
        %2393 = vmatprep.subr.bf16.mxu0 0
        %2394 = vmatpush1.bf16.msra.mxu0 0
        %2395 = vmatprep.subr.bf16.mxu0 0
        %2396 = vmatpush1.bf16.msra.mxu0 0
        %2397 = vmatprep.subr.bf16.mxu0 0
        %2398 = vmatpush1.bf16.msra.mxu0 0
        %2399 = vmatprep.subr.bf16.mxu0 0
        %2400 = vmatpush1.bf16.msra.mxu0 0
        %2401 = vmatprep.subr.bf16.mxu0 0
        %2402 = vmatpush1.bf16.msra.mxu0 0
        %2403 = vmatprep.subr.bf16.mxu0 0
        %2404 = vmatpush1.bf16.msra.mxu0 0
        %2405 = vmatprep.subr.bf16.mxu0 0
        %2406 = vmatpush1.bf16.msra.mxu0 0
        %2407 = vmatprep.subr.bf16.mxu0 0
        %2408 = vmatpush1.bf16.msra.mxu0 0
        %2409 = vmatprep.subr.bf16.mxu0 0
        %2410 = vmatpush1.bf16.msra.mxu0 0
        %2411 = vmatprep.subr.bf16.mxu0 0
        %2412 = vmatpush1.bf16.msra.mxu0 0
        %2413 = vmatprep.subr.bf16.mxu0 0
        %2414 = vmatpush1.bf16.msra.mxu0 0
        %2415 = vmatprep.mubr.bf16.mxu0 0
        %2416 = vmatmul.mubr.bf16.gmra.mrb[0].mxu0 %v2381
        %v2417 = vpop.f32.mrb[0].mxu0
        %v2418 = vadd.f32 %v2354, %v2417
        %v2419 = vpop.f32.mrb[0].mxu0
        %v2420 = vpop.f32.mrb[0].mxu0
        %v2421 = vadd.f32 %v2354, %v2420
        %v2422 = vpop.f32.mrb[0].mxu0
        %2423 = vdwg.mxu0
        %v2424 = vmul.f32 %v2343, 0.25
        %v2425 = vmul.f32 %v2346, 0.25
        %2428 = vrot.lane.b32.xlu0 %v2424, 112
        %v2429 = vpop.permute.xlu0 %2428
        %2430 = vrot.lane.b32.xlu0 %v2425, 112
        %v2431 = vpop.permute.xlu0 %2430
        %2434 = vrot.lane.b32.xlu0 %v2424, 96
        %v2435 = vpop.permute.xlu0 %2434
        %2436 = vrot.lane.b32.xlu0 %v2425, 96
        %v2437 = vpop.permute.xlu0 %2436
        %2440 = vrot.lane.b32.xlu0 %v2424, 80
        %v2441 = vpop.permute.xlu0 %2440
        %2442 = vrot.lane.b32.xlu0 %v2425, 80
        %v2443 = vpop.permute.xlu0 %2442
        %v2446 = vpack.c.bf16 %v2424, %v2424
        %v2447 = vpack.c.bf16 %v2425, %v2425
        %v2448 = vpack.c.bf16 %v2429, %v2429
        %v2449 = vpack.c.bf16 %v2431, %v2431
        %v2450 = vpack.c.bf16 %v2435, %v2435
        %v2451 = vpack.c.bf16 %v2437, %v2437
        %v2452 = vpack.c.bf16 %v2441, %v2441
        %v2453 = vpack.c.bf16 %v2443, %v2443
        %2456 = vrot.lane.b32.xlu0 %v2418, 112
        %v2457 = vpop.permute.xlu0 %2456
        %2458 = vrot.lane.b32.xlu0 %v2421, 112
        %v2459 = vpop.permute.xlu0 %2458
        %2462 = vrot.lane.b32.xlu0 %v2418, 96
        %v2463 = vpop.permute.xlu0 %2462
        %2464 = vrot.lane.b32.xlu0 %v2421, 96
        %v2465 = vpop.permute.xlu0 %2464
        %2468 = vrot.lane.b32.xlu0 %v2418, 80
        %v2469 = vpop.permute.xlu0 %2468
        %2470 = vrot.lane.b32.xlu0 %v2421, 80
        %v2471 = vpop.permute.xlu0 %2470
        %v2474 = vpack.c.bf16 %v2418, %v2418
        %v2475 = vpack.c.bf16 %v2421, %v2421
        %v2476 = vpack.c.bf16 %v2457, %v2457
        %v2477 = vpack.c.bf16 %v2459, %v2459
        %v2478 = vpack.c.bf16 %v2463, %v2463
        %v2479 = vpack.c.bf16 %v2465, %v2465
        %v2480 = vpack.c.bf16 %v2469, %v2469
        %v2481 = vpack.c.bf16 %v2471, %v2471
        %v2483 = vsel %vm1220, %v2446, 0
        %v2486 = vsel %vm1220, %v2474, 0
        %2488 = vmatprep.subr.bf16.mxu0 0
        %2489 = vmatpush1.bf16.xpose.msra.mxu0 %v2486
        %2490 = vmatprep.subr.bf16.mxu0 0
        %2491 = vmatpush1.bf16.xpose.msra.mxu0 0
        %2492 = vmatprep.subr.bf16.mxu0 0
        %2493 = vmatpush1.bf16.xpose.msra.mxu0 0
        %2494 = vmatprep.subr.bf16.mxu0 0
        %2495 = vmatpush1.bf16.xpose.msra.mxu0 0
        %2496 = vmatprep.subr.bf16.mxu0 0
        %2497 = vmatpush1.bf16.xpose.msra.mxu0 0
        %2498 = vmatprep.subr.bf16.mxu0 0
        %2499 = vmatpush1.bf16.xpose.msra.mxu0 0
        %2500 = vmatprep.subr.bf16.mxu0 0
        %2501 = vmatpush1.bf16.xpose.msra.mxu0 0
        %2502 = vmatprep.subr.bf16.mxu0 0
        %2503 = vmatpush1.bf16.xpose.msra.mxu0 0
        %2504 = vmatprep.subr.bf16.mxu0 0
        %2505 = vmatpush1.bf16.xpose.msra.mxu0 0
        %2506 = vmatprep.subr.bf16.mxu0 0
        %2507 = vmatpush1.bf16.xpose.msra.mxu0 0
        %2508 = vmatprep.subr.bf16.mxu0 0
        %2509 = vmatpush1.bf16.xpose.msra.mxu0 0
        %2510 = vmatprep.subr.bf16.mxu0 0
        %2511 = vmatpush1.bf16.xpose.msra.mxu0 0
        %2512 = vmatprep.subr.bf16.mxu0 0
        %2513 = vmatpush1.bf16.xpose.msra.mxu0 0
        %2514 = vmatprep.subr.bf16.mxu0 0
        %2515 = vmatpush1.bf16.xpose.msra.mxu0 0
        %2516 = vmatprep.subr.bf16.mxu0 0
        %2517 = vmatpush1.bf16.xpose.msra.mxu0 0
        %2518 = vmatprep.subr.bf16.mxu0 0
        %2519 = vmatpush1.bf16.xpose.msra.mxu0 0
        %2520 = vmatprep.mubr.bf16.mxu0 0
        %2521 = vmatmul.mubr.bf16.gmra.mrb[0].mxu0 %v2483
        %v2522 = vpop.f32.mrb[0].mxu0
        %v2523 = vadd.f32 0.0, %v2522
        %v2524 = vpop.f32.mrb[0].mxu0
        %v2525 = vpop.f32.mrb[0].mxu0
        %v2526 = vpop.f32.mrb[0].mxu0
        %2527 = vdwg.mxu0
        %v2529 = vsel %vm1220, %v2447, 0
        %v2532 = vsel %vm1220, %v2475, 0
        %2534 = vmatprep.subr.bf16.mxu0 0
        %2535 = vmatpush1.bf16.xpose.msra.mxu0 %v2532
        %2536 = vmatprep.subr.bf16.mxu0 0
        %2537 = vmatpush1.bf16.xpose.msra.mxu0 0
        %2538 = vmatprep.subr.bf16.mxu0 0
        %2539 = vmatpush1.bf16.xpose.msra.mxu0 0
        %2540 = vmatprep.subr.bf16.mxu0 0
        %2541 = vmatpush1.bf16.xpose.msra.mxu0 0
        %2542 = vmatprep.subr.bf16.mxu0 0
        %2543 = vmatpush1.bf16.xpose.msra.mxu0 0
        %2544 = vmatprep.subr.bf16.mxu0 0
        %2545 = vmatpush1.bf16.xpose.msra.mxu0 0
        %2546 = vmatprep.subr.bf16.mxu0 0
        %2547 = vmatpush1.bf16.xpose.msra.mxu0 0
        %2548 = vmatprep.subr.bf16.mxu0 0
        %2549 = vmatpush1.bf16.xpose.msra.mxu0 0
        %2550 = vmatprep.subr.bf16.mxu0 0
        %2551 = vmatpush1.bf16.xpose.msra.mxu0 0
        %2552 = vmatprep.subr.bf16.mxu0 0
        %2553 = vmatpush1.bf16.xpose.msra.mxu0 0
        %2554 = vmatprep.subr.bf16.mxu0 0
        %2555 = vmatpush1.bf16.xpose.msra.mxu0 0
        %2556 = vmatprep.subr.bf16.mxu0 0
        %2557 = vmatpush1.bf16.xpose.msra.mxu0 0
        %2558 = vmatprep.subr.bf16.mxu0 0
        %2559 = vmatpush1.bf16.xpose.msra.mxu0 0
        %2560 = vmatprep.subr.bf16.mxu0 0
        %2561 = vmatpush1.bf16.xpose.msra.mxu0 0
        %2562 = vmatprep.subr.bf16.mxu0 0
        %2563 = vmatpush1.bf16.xpose.msra.mxu0 0
        %2564 = vmatprep.subr.bf16.mxu0 0
        %2565 = vmatpush1.bf16.xpose.msra.mxu0 0
        %2566 = vmatprep.mubr.bf16.mxu0 0
        %2567 = vmatmul.mubr.bf16.gmra.mrb[0].mxu0 %v2529
        %v2568 = vpop.f32.mrb[0].mxu0
        %v2569 = vadd.f32 0.0, %v2568
        %v2570 = vpop.f32.mrb[0].mxu0
        %v2571 = vpop.f32.mrb[0].mxu0
        %v2572 = vpop.f32.mrb[0].mxu0
        %2573 = vdwg.mxu0
        %v2575 = vsel %vm1220, %v2448, 0
        %v2578 = vsel %vm1220, %v2476, 0
        %2580 = vmatprep.subr.bf16.mxu0 0
        %2581 = vmatpush1.bf16.xpose.msra.mxu0 %v2578
        %2582 = vmatprep.subr.bf16.mxu0 0
        %2583 = vmatpush1.bf16.xpose.msra.mxu0 0
        %2584 = vmatprep.subr.bf16.mxu0 0
        %2585 = vmatpush1.bf16.xpose.msra.mxu0 0
        %2586 = vmatprep.subr.bf16.mxu0 0
        %2587 = vmatpush1.bf16.xpose.msra.mxu0 0
        %2588 = vmatprep.subr.bf16.mxu0 0
        %2589 = vmatpush1.bf16.xpose.msra.mxu0 0
        %2590 = vmatprep.subr.bf16.mxu0 0
        %2591 = vmatpush1.bf16.xpose.msra.mxu0 0
        %2592 = vmatprep.subr.bf16.mxu0 0
        %2593 = vmatpush1.bf16.xpose.msra.mxu0 0
        %2594 = vmatprep.subr.bf16.mxu0 0
        %2595 = vmatpush1.bf16.xpose.msra.mxu0 0
        %2596 = vmatprep.subr.bf16.mxu0 0
        %2597 = vmatpush1.bf16.xpose.msra.mxu0 0
        %2598 = vmatprep.subr.bf16.mxu0 0
        %2599 = vmatpush1.bf16.xpose.msra.mxu0 0
        %2600 = vmatprep.subr.bf16.mxu0 0
        %2601 = vmatpush1.bf16.xpose.msra.mxu0 0
        %2602 = vmatprep.subr.bf16.mxu0 0
        %2603 = vmatpush1.bf16.xpose.msra.mxu0 0
        %2604 = vmatprep.subr.bf16.mxu0 0
        %2605 = vmatpush1.bf16.xpose.msra.mxu0 0
        %2606 = vmatprep.subr.bf16.mxu0 0
        %2607 = vmatpush1.bf16.xpose.msra.mxu0 0
        %2608 = vmatprep.subr.bf16.mxu0 0
        %2609 = vmatpush1.bf16.xpose.msra.mxu0 0
        %2610 = vmatprep.subr.bf16.mxu0 0
        %2611 = vmatpush1.bf16.xpose.msra.mxu0 0
        %2612 = vmatprep.mubr.bf16.mxu0 0
        %2613 = vmatmul.mubr.bf16.gmra.mrb[0].mxu0 %v2575
        %v2614 = vpop.f32.mrb[0].mxu0
        %v2615 = vadd.f32 0.0, %v2614
        %v2616 = vpop.f32.mrb[0].mxu0
        %v2617 = vpop.f32.mrb[0].mxu0
        %v2618 = vpop.f32.mrb[0].mxu0
        %2619 = vdwg.mxu0
        %v2621 = vsel %vm1220, %v2449, 0
        %v2624 = vsel %vm1220, %v2477, 0
        %2626 = vmatprep.subr.bf16.mxu0 0
        %2627 = vmatpush1.bf16.xpose.msra.mxu0 %v2624
        %2628 = vmatprep.subr.bf16.mxu0 0
        %2629 = vmatpush1.bf16.xpose.msra.mxu0 0
        %2630 = vmatprep.subr.bf16.mxu0 0
        %2631 = vmatpush1.bf16.xpose.msra.mxu0 0
        %2632 = vmatprep.subr.bf16.mxu0 0
        %2633 = vmatpush1.bf16.xpose.msra.mxu0 0
        %2634 = vmatprep.subr.bf16.mxu0 0
        %2635 = vmatpush1.bf16.xpose.msra.mxu0 0
        %2636 = vmatprep.subr.bf16.mxu0 0
        %2637 = vmatpush1.bf16.xpose.msra.mxu0 0
        %2638 = vmatprep.subr.bf16.mxu0 0
        %2639 = vmatpush1.bf16.xpose.msra.mxu0 0
        %2640 = vmatprep.subr.bf16.mxu0 0
        %2641 = vmatpush1.bf16.xpose.msra.mxu0 0
        %2642 = vmatprep.subr.bf16.mxu0 0
        %2643 = vmatpush1.bf16.xpose.msra.mxu0 0
        %2644 = vmatprep.subr.bf16.mxu0 0
        %2645 = vmatpush1.bf16.xpose.msra.mxu0 0
        %2646 = vmatprep.subr.bf16.mxu0 0
        %2647 = vmatpush1.bf16.xpose.msra.mxu0 0
        %2648 = vmatprep.subr.bf16.mxu0 0
        %2649 = vmatpush1.bf16.xpose.msra.mxu0 0
        %2650 = vmatprep.subr.bf16.mxu0 0
        %2651 = vmatpush1.bf16.xpose.msra.mxu0 0
        %2652 = vmatprep.subr.bf16.mxu0 0
        %2653 = vmatpush1.bf16.xpose.msra.mxu0 0
        %2654 = vmatprep.subr.bf16.mxu0 0
        %2655 = vmatpush1.bf16.xpose.msra.mxu0 0
        %2656 = vmatprep.subr.bf16.mxu0 0
        %2657 = vmatpush1.bf16.xpose.msra.mxu0 0
        %2658 = vmatprep.mubr.bf16.mxu0 0
        %2659 = vmatmul.mubr.bf16.gmra.mrb[0].mxu0 %v2621
        %v2660 = vpop.f32.mrb[0].mxu0
        %v2661 = vadd.f32 0.0, %v2660
        %v2662 = vpop.f32.mrb[0].mxu0
        %v2663 = vpop.f32.mrb[0].mxu0
        %v2664 = vpop.f32.mrb[0].mxu0
        %2665 = vdwg.mxu0
        %v2667 = vsel %vm1220, %v2450, 0
        %v2670 = vsel %vm1220, %v2478, 0
        %2672 = vmatprep.subr.bf16.mxu0 0
        %2673 = vmatpush1.bf16.xpose.msra.mxu0 %v2670
        %2674 = vmatprep.subr.bf16.mxu0 0
        %2675 = vmatpush1.bf16.xpose.msra.mxu0 0
        %2676 = vmatprep.subr.bf16.mxu0 0
        %2677 = vmatpush1.bf16.xpose.msra.mxu0 0
        %2678 = vmatprep.subr.bf16.mxu0 0
        %2679 = vmatpush1.bf16.xpose.msra.mxu0 0
        %2680 = vmatprep.subr.bf16.mxu0 0
        %2681 = vmatpush1.bf16.xpose.msra.mxu0 0
        %2682 = vmatprep.subr.bf16.mxu0 0
        %2683 = vmatpush1.bf16.xpose.msra.mxu0 0
        %2684 = vmatprep.subr.bf16.mxu0 0
        %2685 = vmatpush1.bf16.xpose.msra.mxu0 0
        %2686 = vmatprep.subr.bf16.mxu0 0
        %2687 = vmatpush1.bf16.xpose.msra.mxu0 0
        %2688 = vmatprep.subr.bf16.mxu0 0
        %2689 = vmatpush1.bf16.xpose.msra.mxu0 0
        %2690 = vmatprep.subr.bf16.mxu0 0
        %2691 = vmatpush1.bf16.xpose.msra.mxu0 0
        %2692 = vmatprep.subr.bf16.mxu0 0
        %2693 = vmatpush1.bf16.xpose.msra.mxu0 0
        %2694 = vmatprep.subr.bf16.mxu0 0
        %2695 = vmatpush1.bf16.xpose.msra.mxu0 0
        %2696 = vmatprep.subr.bf16.mxu0 0
        %2697 = vmatpush1.bf16.xpose.msra.mxu0 0
        %2698 = vmatprep.subr.bf16.mxu0 0
        %2699 = vmatpush1.bf16.xpose.msra.mxu0 0
        %2700 = vmatprep.subr.bf16.mxu0 0
        %2701 = vmatpush1.bf16.xpose.msra.mxu0 0
        %2702 = vmatprep.subr.bf16.mxu0 0
        %2703 = vmatpush1.bf16.xpose.msra.mxu0 0
        %2704 = vmatprep.mubr.bf16.mxu0 0
        %2705 = vmatmul.mubr.bf16.gmra.mrb[0].mxu0 %v2667
        %v2706 = vpop.f32.mrb[0].mxu0
        %v2707 = vadd.f32 0.0, %v2706
        %v2708 = vpop.f32.mrb[0].mxu0
        %v2709 = vpop.f32.mrb[0].mxu0
        %v2710 = vpop.f32.mrb[0].mxu0
        %2711 = vdwg.mxu0
        %v2713 = vsel %vm1220, %v2451, 0
        %v2716 = vsel %vm1220, %v2479, 0
        %2718 = vmatprep.subr.bf16.mxu0 0
        %2719 = vmatpush1.bf16.xpose.msra.mxu0 %v2716
        %2720 = vmatprep.subr.bf16.mxu0 0
        %2721 = vmatpush1.bf16.xpose.msra.mxu0 0
        %2722 = vmatprep.subr.bf16.mxu0 0
        %2723 = vmatpush1.bf16.xpose.msra.mxu0 0
        %2724 = vmatprep.subr.bf16.mxu0 0
        %2725 = vmatpush1.bf16.xpose.msra.mxu0 0
        %2726 = vmatprep.subr.bf16.mxu0 0
        %2727 = vmatpush1.bf16.xpose.msra.mxu0 0
        %2728 = vmatprep.subr.bf16.mxu0 0
        %2729 = vmatpush1.bf16.xpose.msra.mxu0 0
        %2730 = vmatprep.subr.bf16.mxu0 0
        %2731 = vmatpush1.bf16.xpose.msra.mxu0 0
        %2732 = vmatprep.subr.bf16.mxu0 0
        %2733 = vmatpush1.bf16.xpose.msra.mxu0 0
        %2734 = vmatprep.subr.bf16.mxu0 0
        %2735 = vmatpush1.bf16.xpose.msra.mxu0 0
        %2736 = vmatprep.subr.bf16.mxu0 0
        %2737 = vmatpush1.bf16.xpose.msra.mxu0 0
        %2738 = vmatprep.subr.bf16.mxu0 0
        %2739 = vmatpush1.bf16.xpose.msra.mxu0 0
        %2740 = vmatprep.subr.bf16.mxu0 0
        %2741 = vmatpush1.bf16.xpose.msra.mxu0 0
        %2742 = vmatprep.subr.bf16.mxu0 0
        %2743 = vmatpush1.bf16.xpose.msra.mxu0 0
        %2744 = vmatprep.subr.bf16.mxu0 0
        %2745 = vmatpush1.bf16.xpose.msra.mxu0 0
        %2746 = vmatprep.subr.bf16.mxu0 0
        %2747 = vmatpush1.bf16.xpose.msra.mxu0 0
        %2748 = vmatprep.subr.bf16.mxu0 0
        %2749 = vmatpush1.bf16.xpose.msra.mxu0 0
        %2750 = vmatprep.mubr.bf16.mxu0 0
        %2751 = vmatmul.mubr.bf16.gmra.mrb[0].mxu0 %v2713
        %v2752 = vpop.f32.mrb[0].mxu0
        %v2753 = vadd.f32 0.0, %v2752
        %v2754 = vpop.f32.mrb[0].mxu0
        %v2755 = vpop.f32.mrb[0].mxu0
        %v2756 = vpop.f32.mrb[0].mxu0
        %2757 = vdwg.mxu0
        %v2759 = vsel %vm1220, %v2452, 0
        %v2762 = vsel %vm1220, %v2480, 0
        %2764 = vmatprep.subr.bf16.mxu0 0
        %2765 = vmatpush1.bf16.xpose.msra.mxu0 %v2762
        %2766 = vmatprep.subr.bf16.mxu0 0
        %2767 = vmatpush1.bf16.xpose.msra.mxu0 0
        %2768 = vmatprep.subr.bf16.mxu0 0
        %2769 = vmatpush1.bf16.xpose.msra.mxu0 0
        %2770 = vmatprep.subr.bf16.mxu0 0
        %2771 = vmatpush1.bf16.xpose.msra.mxu0 0
        %2772 = vmatprep.subr.bf16.mxu0 0
        %2773 = vmatpush1.bf16.xpose.msra.mxu0 0
        %2774 = vmatprep.subr.bf16.mxu0 0
        %2775 = vmatpush1.bf16.xpose.msra.mxu0 0
        %2776 = vmatprep.subr.bf16.mxu0 0
        %2777 = vmatpush1.bf16.xpose.msra.mxu0 0
        %2778 = vmatprep.subr.bf16.mxu0 0
        %2779 = vmatpush1.bf16.xpose.msra.mxu0 0
        %2780 = vmatprep.subr.bf16.mxu0 0
        %2781 = vmatpush1.bf16.xpose.msra.mxu0 0
        %2782 = vmatprep.subr.bf16.mxu0 0
        %2783 = vmatpush1.bf16.xpose.msra.mxu0 0
        %2784 = vmatprep.subr.bf16.mxu0 0
        %2785 = vmatpush1.bf16.xpose.msra.mxu0 0
        %2786 = vmatprep.subr.bf16.mxu0 0
        %2787 = vmatpush1.bf16.xpose.msra.mxu0 0
        %2788 = vmatprep.subr.bf16.mxu0 0
        %2789 = vmatpush1.bf16.xpose.msra.mxu0 0
        %2790 = vmatprep.subr.bf16.mxu0 0
        %2791 = vmatpush1.bf16.xpose.msra.mxu0 0
        %2792 = vmatprep.subr.bf16.mxu0 0
        %2793 = vmatpush1.bf16.xpose.msra.mxu0 0
        %2794 = vmatprep.subr.bf16.mxu0 0
        %2795 = vmatpush1.bf16.xpose.msra.mxu0 0
        %2796 = vmatprep.mubr.bf16.mxu0 0
        %2797 = vmatmul.mubr.bf16.gmra.mrb[0].mxu0 %v2759
        %v2798 = vpop.f32.mrb[0].mxu0
        %v2799 = vadd.f32 0.0, %v2798
        %v2800 = vpop.f32.mrb[0].mxu0
        %v2801 = vpop.f32.mrb[0].mxu0
        %v2802 = vpop.f32.mrb[0].mxu0
        %2803 = vdwg.mxu0
        %v2805 = vsel %vm1220, %v2453, 0
        %v2808 = vsel %vm1220, %v2481, 0
        %2810 = vmatprep.subr.bf16.mxu0 0
        %2811 = vmatpush1.bf16.xpose.msra.mxu0 %v2808
        %2812 = vmatprep.subr.bf16.mxu0 0
        %2813 = vmatpush1.bf16.xpose.msra.mxu0 0
        %2814 = vmatprep.subr.bf16.mxu0 0
        %2815 = vmatpush1.bf16.xpose.msra.mxu0 0
        %2816 = vmatprep.subr.bf16.mxu0 0
        %2817 = vmatpush1.bf16.xpose.msra.mxu0 0
        %2818 = vmatprep.subr.bf16.mxu0 0
        %2819 = vmatpush1.bf16.xpose.msra.mxu0 0
        %2820 = vmatprep.subr.bf16.mxu0 0
        %2821 = vmatpush1.bf16.xpose.msra.mxu0 0
        %2822 = vmatprep.subr.bf16.mxu0 0
        %2823 = vmatpush1.bf16.xpose.msra.mxu0 0
        %2824 = vmatprep.subr.bf16.mxu0 0
        %2825 = vmatpush1.bf16.xpose.msra.mxu0 0
        %2826 = vmatprep.subr.bf16.mxu0 0
        %2827 = vmatpush1.bf16.xpose.msra.mxu0 0
        %2828 = vmatprep.subr.bf16.mxu0 0
        %2829 = vmatpush1.bf16.xpose.msra.mxu0 0
        %2830 = vmatprep.subr.bf16.mxu0 0
        %2831 = vmatpush1.bf16.xpose.msra.mxu0 0
        %2832 = vmatprep.subr.bf16.mxu0 0
        %2833 = vmatpush1.bf16.xpose.msra.mxu0 0
        %2834 = vmatprep.subr.bf16.mxu0 0
        %2835 = vmatpush1.bf16.xpose.msra.mxu0 0
        %2836 = vmatprep.subr.bf16.mxu0 0
        %2837 = vmatpush1.bf16.xpose.msra.mxu0 0
        %2838 = vmatprep.subr.bf16.mxu0 0
        %2839 = vmatpush1.bf16.xpose.msra.mxu0 0
        %2840 = vmatprep.subr.bf16.mxu0 0
        %2841 = vmatpush1.bf16.xpose.msra.mxu0 0
        %2842 = vmatprep.mubr.bf16.mxu0 0
        %2843 = vmatmul.mubr.bf16.gmra.mrb[0].mxu0 %v2805
        %v2844 = vpop.f32.mrb[0].mxu0
        %v2845 = vadd.f32 0.0, %v2844
        %v2846 = vpop.f32.mrb[0].mxu0
        %v2847 = vpop.f32.mrb[0].mxu0
        %v2848 = vpop.f32.mrb[0].mxu0
        %2849 = vdwg.mxu0
        %v2850 = vsub.f32 1.0, %v984
        %v2851 = vsub.f32 1.0, %v985
        %v2852 = vmul.f32 %v2850, -10000.0
        %v2853 = vmul.f32 %v2851, -10000.0
        %v2854 = vmul.f32 %v2523, %v984
        %v2855 = vmul.f32 %v2569, %v985
        %v2856 = vmul.f32 %v2615, %v984
        %v2857 = vmul.f32 %v2661, %v985
        %v2858 = vmul.f32 %v2707, %v984
        %v2859 = vmul.f32 %v2753, %v985
        %v2860 = vmul.f32 %v2799, %v984
        %v2861 = vmul.f32 %v2845, %v985
        %v2862 = vadd.f32 %v2854, %v2852
        %v2863 = vadd.f32 %v2855, %v2853
        %v2864 = vadd.f32 %v2856, %v2852
        %v2865 = vadd.f32 %v2857, %v2853
        %v2866 = vadd.f32 %v2858, %v2852
        %v2867 = vadd.f32 %v2859, %v2853
        %v2868 = vadd.f32 %v2860, %v2852
        %v2869 = vadd.f32 %v2861, %v2853
        %v2870 = vsel %vm1609, %v2862, -inf
        %2871 = vmax.xlane.f32.xlu0 %v2870
        %v2872 = vpop.xlane.xlu0 %2871
        %v2873 = vsel %vm1609, %v2863, -inf
        %2874 = vmax.xlane.f32.xlu0 %v2873
        %v2875 = vpop.xlane.xlu0 %2874
        %v2876 = vsel %vm1609, %v2864, -inf
        %2877 = vmax.xlane.f32.xlu0 %v2876
        %v2878 = vpop.xlane.xlu0 %2877
        %v2879 = vsel %vm1609, %v2865, -inf
        %2880 = vmax.xlane.f32.xlu0 %v2879
        %v2881 = vpop.xlane.xlu0 %2880
        %v2882 = vsel %vm1609, %v2866, -inf
        %2883 = vmax.xlane.f32.xlu0 %v2882
        %v2884 = vpop.xlane.xlu0 %2883
        %v2885 = vsel %vm1609, %v2867, -inf
        %2886 = vmax.xlane.f32.xlu0 %v2885
        %v2887 = vpop.xlane.xlu0 %2886
        %v2888 = vsel %vm1609, %v2868, -inf
        %2889 = vmax.xlane.f32.xlu0 %v2888
        %v2890 = vpop.xlane.xlu0 %2889
        %v2891 = vsel %vm1609, %v2869, -inf
        %2892 = vmax.xlane.f32.xlu0 %v2891
        %v2893 = vpop.xlane.xlu0 %2892
        %v2894 = vsub.f32 %v2862, %v2872
        %v2895 = vsub.f32 %v2863, %v2875
        %v2896 = vsub.f32 %v2864, %v2878
        %v2897 = vsub.f32 %v2865, %v2881
        %v2898 = vsub.f32 %v2866, %v2884
        %v2899 = vsub.f32 %v2867, %v2887
        %v2900 = vsub.f32 %v2868, %v2890
        %v2901 = vsub.f32 %v2869, %v2893
        %v2902 = vmul.f32 %v2894, 1.442695
        %v2903 = vpow.pop %v2902
        %v2904 = vmul.f32 %v2895, 1.442695
        %v2905 = vpow.pop %v2904
        %v2906 = vmul.f32 %v2896, 1.442695
        %v2907 = vpow.pop %v2906
        %v2908 = vmul.f32 %v2897, 1.442695
        %v2909 = vpow.pop %v2908
        %v2910 = vmul.f32 %v2898, 1.442695
        %v2911 = vpow.pop %v2910
        %v2912 = vmul.f32 %v2899, 1.442695
        %v2913 = vpow.pop %v2912
        %v2914 = vmul.f32 %v2900, 1.442695
        %v2915 = vpow.pop %v2914
        %v2916 = vmul.f32 %v2901, 1.442695
        %v2917 = vpow.pop %v2916
        %v2918 = vsel %vm1609, %v2903, 0.0
        %2919 = vadd.xlane.f32.xlu0 %v2918
        %v2920 = vpop.xlane.xlu0 %2919
        %v2921 = vsel %vm1609, %v2905, 0.0
        %2922 = vadd.xlane.f32.xlu0 %v2921
        %v2923 = vpop.xlane.xlu0 %2922
        %v2924 = vsel %vm1609, %v2907, 0.0
        %2925 = vadd.xlane.f32.xlu0 %v2924
        %v2926 = vpop.xlane.xlu0 %2925
        %v2927 = vsel %vm1609, %v2909, 0.0
        %2928 = vadd.xlane.f32.xlu0 %v2927
        %v2929 = vpop.xlane.xlu0 %2928
        %v2930 = vsel %vm1609, %v2911, 0.0
        %2931 = vadd.xlane.f32.xlu0 %v2930
        %v2932 = vpop.xlane.xlu0 %2931
        %v2933 = vsel %vm1609, %v2913, 0.0
        %2934 = vadd.xlane.f32.xlu0 %v2933
        %v2935 = vpop.xlane.xlu0 %2934
        %v2936 = vsel %vm1609, %v2915, 0.0
        %2937 = vadd.xlane.f32.xlu0 %v2936
        %v2938 = vpop.xlane.xlu0 %2937
        %v2939 = vsel %vm1609, %v2917, 0.0
        %2940 = vadd.xlane.f32.xlu0 %v2939
        %v2941 = vpop.xlane.xlu0 %2940
        %v2942 = vrcp.pop %v2920
        %v2943 = vrcp.pop %v2923
        %v2944 = vrcp.pop %v2926
        %v2945 = vrcp.pop %v2929
        %v2946 = vrcp.pop %v2932
        %v2947 = vrcp.pop %v2935
        %v2948 = vrcp.pop %v2938
        %v2949 = vrcp.pop %v2941
        %v2950 = vmul.f32 %v2903, %v2942
        %v2951 = vmul.f32 %v2905, %v2943
        %v2952 = vmul.f32 %v2907, %v2944
        %v2953 = vmul.f32 %v2909, %v2945
        %v2954 = vmul.f32 %v2911, %v2946
        %v2955 = vmul.f32 %v2913, %v2947
        %v2956 = vmul.f32 %v2915, %v2948
        %v2957 = vmul.f32 %v2917, %v2949
        %v2958 = vpack.c.bf16 %v2950, %v2950
        %v2959 = vpack.c.bf16 %v2951, %v2951
        %v2960 = vpack.c.bf16 %v2952, %v2952
        %v2961 = vpack.c.bf16 %v2953, %v2953
        %v2962 = vpack.c.bf16 %v2954, %v2954
        %v2963 = vpack.c.bf16 %v2955, %v2955
        %v2964 = vpack.c.bf16 %v2956, %v2956
        %v2965 = vpack.c.bf16 %v2957, %v2957
        %2967 = vrot.lane.b32.xlu0 %v2474, 64
        %v2968 = vpop.permute.xlu0 %2967
        %v2970 = vsel %vm1609, %v2958, 0
        %v2973 = vsel %vm1712, %v2968, 0
        %2975 = vmatprep.subr.bf16.mxu0 0
        %2976 = vmatpush1.bf16.msra.mxu0 %v2973
        %2977 = vmatprep.subr.bf16.mxu0 0
        %2978 = vmatpush1.bf16.msra.mxu0 0
        %2979 = vmatprep.subr.bf16.mxu0 0
        %2980 = vmatpush1.bf16.msra.mxu0 0
        %2981 = vmatprep.subr.bf16.mxu0 0
        %2982 = vmatpush1.bf16.msra.mxu0 0
        %2983 = vmatprep.subr.bf16.mxu0 0
        %2984 = vmatpush1.bf16.msra.mxu0 0
        %2985 = vmatprep.subr.bf16.mxu0 0
        %2986 = vmatpush1.bf16.msra.mxu0 0
        %2987 = vmatprep.subr.bf16.mxu0 0
        %2988 = vmatpush1.bf16.msra.mxu0 0
        %2989 = vmatprep.subr.bf16.mxu0 0
        %2990 = vmatpush1.bf16.msra.mxu0 0
        %2991 = vmatprep.subr.bf16.mxu0 0
        %2992 = vmatpush1.bf16.msra.mxu0 0
        %2993 = vmatprep.subr.bf16.mxu0 0
        %2994 = vmatpush1.bf16.msra.mxu0 0
        %2995 = vmatprep.subr.bf16.mxu0 0
        %2996 = vmatpush1.bf16.msra.mxu0 0
        %2997 = vmatprep.subr.bf16.mxu0 0
        %2998 = vmatpush1.bf16.msra.mxu0 0
        %2999 = vmatprep.subr.bf16.mxu0 0
        %3000 = vmatpush1.bf16.msra.mxu0 0
        %3001 = vmatprep.subr.bf16.mxu0 0
        %3002 = vmatpush1.bf16.msra.mxu0 0
        %3003 = vmatprep.subr.bf16.mxu0 0
        %3004 = vmatpush1.bf16.msra.mxu0 0
        %3005 = vmatprep.subr.bf16.mxu0 0
        %3006 = vmatpush1.bf16.msra.mxu0 0
        %3007 = vmatprep.mubr.bf16.mxu0 0
        %3008 = vmatmul.mubr.bf16.gmra.mrb[0].mxu0 %v2970
        %v3009 = vpop.f32.mrb[0].mxu0
        %v3010 = vadd.f32 0.0, %v3009
        %v3011 = vpop.f32.mrb[0].mxu0
        %v3012 = vpop.f32.mrb[0].mxu0
        %v3013 = vpop.f32.mrb[0].mxu0
        %3014 = vdwg.mxu0
        %3016 = vrot.lane.b32.xlu0 %v2475, 64
        %v3017 = vpop.permute.xlu0 %3016
        %v3019 = vsel %vm1609, %v2959, 0
        %v3022 = vsel %vm1712, %v3017, 0
        %3024 = vmatprep.subr.bf16.mxu0 0
        %3025 = vmatpush1.bf16.msra.mxu0 %v3022
        %3026 = vmatprep.subr.bf16.mxu0 0
        %3027 = vmatpush1.bf16.msra.mxu0 0
        %3028 = vmatprep.subr.bf16.mxu0 0
        %3029 = vmatpush1.bf16.msra.mxu0 0
        %3030 = vmatprep.subr.bf16.mxu0 0
        %3031 = vmatpush1.bf16.msra.mxu0 0
        %3032 = vmatprep.subr.bf16.mxu0 0
        %3033 = vmatpush1.bf16.msra.mxu0 0
        %3034 = vmatprep.subr.bf16.mxu0 0
        %3035 = vmatpush1.bf16.msra.mxu0 0
        %3036 = vmatprep.subr.bf16.mxu0 0
        %3037 = vmatpush1.bf16.msra.mxu0 0
        %3038 = vmatprep.subr.bf16.mxu0 0
        %3039 = vmatpush1.bf16.msra.mxu0 0
        %3040 = vmatprep.subr.bf16.mxu0 0
        %3041 = vmatpush1.bf16.msra.mxu0 0
        %3042 = vmatprep.subr.bf16.mxu0 0
        %3043 = vmatpush1.bf16.msra.mxu0 0
        %3044 = vmatprep.subr.bf16.mxu0 0
        %3045 = vmatpush1.bf16.msra.mxu0 0
        %3046 = vmatprep.subr.bf16.mxu0 0
        %3047 = vmatpush1.bf16.msra.mxu0 0
        %3048 = vmatprep.subr.bf16.mxu0 0
        %3049 = vmatpush1.bf16.msra.mxu0 0
        %3050 = vmatprep.subr.bf16.mxu0 0
        %3051 = vmatpush1.bf16.msra.mxu0 0
        %3052 = vmatprep.subr.bf16.mxu0 0
        %3053 = vmatpush1.bf16.msra.mxu0 0
        %3054 = vmatprep.subr.bf16.mxu0 0
        %3055 = vmatpush1.bf16.msra.mxu0 0
        %3056 = vmatprep.mubr.bf16.mxu0 0
        %3057 = vmatmul.mubr.bf16.gmra.mrb[0].mxu0 %v3019
        %v3058 = vpop.f32.mrb[0].mxu0
        %v3059 = vadd.f32 0.0, %v3058
        %v3060 = vpop.f32.mrb[0].mxu0
        %v3061 = vpop.f32.mrb[0].mxu0
        %v3062 = vpop.f32.mrb[0].mxu0
        %3063 = vdwg.mxu0
        %3065 = vrot.lane.b32.xlu0 %v2476, 64
        %v3066 = vpop.permute.xlu0 %3065
        %v3068 = vsel %vm1609, %v2960, 0
        %v3071 = vsel %vm1712, %v3066, 0
        %3073 = vmatprep.subr.bf16.mxu0 0
        %3074 = vmatpush1.bf16.msra.mxu0 %v3071
        %3075 = vmatprep.subr.bf16.mxu0 0
        %3076 = vmatpush1.bf16.msra.mxu0 0
        %3077 = vmatprep.subr.bf16.mxu0 0
        %3078 = vmatpush1.bf16.msra.mxu0 0
        %3079 = vmatprep.subr.bf16.mxu0 0
        %3080 = vmatpush1.bf16.msra.mxu0 0
        %3081 = vmatprep.subr.bf16.mxu0 0
        %3082 = vmatpush1.bf16.msra.mxu0 0
        %3083 = vmatprep.subr.bf16.mxu0 0
        %3084 = vmatpush1.bf16.msra.mxu0 0
        %3085 = vmatprep.subr.bf16.mxu0 0
        %3086 = vmatpush1.bf16.msra.mxu0 0
        %3087 = vmatprep.subr.bf16.mxu0 0
        %3088 = vmatpush1.bf16.msra.mxu0 0
        %3089 = vmatprep.subr.bf16.mxu0 0
        %3090 = vmatpush1.bf16.msra.mxu0 0
        %3091 = vmatprep.subr.bf16.mxu0 0
        %3092 = vmatpush1.bf16.msra.mxu0 0
        %3093 = vmatprep.subr.bf16.mxu0 0
        %3094 = vmatpush1.bf16.msra.mxu0 0
        %3095 = vmatprep.subr.bf16.mxu0 0
        %3096 = vmatpush1.bf16.msra.mxu0 0
        %3097 = vmatprep.subr.bf16.mxu0 0
        %3098 = vmatpush1.bf16.msra.mxu0 0
        %3099 = vmatprep.subr.bf16.mxu0 0
        %3100 = vmatpush1.bf16.msra.mxu0 0
        %3101 = vmatprep.subr.bf16.mxu0 0
        %3102 = vmatpush1.bf16.msra.mxu0 0
        %3103 = vmatprep.subr.bf16.mxu0 0
        %3104 = vmatpush1.bf16.msra.mxu0 0
        %3105 = vmatprep.mubr.bf16.mxu0 0
        %3106 = vmatmul.mubr.bf16.gmra.mrb[0].mxu0 %v3068
        %v3107 = vpop.f32.mrb[0].mxu0
        %v3108 = vadd.f32 0.0, %v3107
        %v3109 = vpop.f32.mrb[0].mxu0
        %v3110 = vpop.f32.mrb[0].mxu0
        %v3111 = vpop.f32.mrb[0].mxu0
        %3112 = vdwg.mxu0
        %3114 = vrot.lane.b32.xlu0 %v2477, 64
        %v3115 = vpop.permute.xlu0 %3114
        %v3117 = vsel %vm1609, %v2961, 0
        %v3120 = vsel %vm1712, %v3115, 0
        %3122 = vmatprep.subr.bf16.mxu0 0
        %3123 = vmatpush1.bf16.msra.mxu0 %v3120
        %3124 = vmatprep.subr.bf16.mxu0 0
        %3125 = vmatpush1.bf16.msra.mxu0 0
        %3126 = vmatprep.subr.bf16.mxu0 0
        %3127 = vmatpush1.bf16.msra.mxu0 0
        %3128 = vmatprep.subr.bf16.mxu0 0
        %3129 = vmatpush1.bf16.msra.mxu0 0
        %3130 = vmatprep.subr.bf16.mxu0 0
        %3131 = vmatpush1.bf16.msra.mxu0 0
        %3132 = vmatprep.subr.bf16.mxu0 0
        %3133 = vmatpush1.bf16.msra.mxu0 0
        %3134 = vmatprep.subr.bf16.mxu0 0
        %3135 = vmatpush1.bf16.msra.mxu0 0
        %3136 = vmatprep.subr.bf16.mxu0 0
        %3137 = vmatpush1.bf16.msra.mxu0 0
        %3138 = vmatprep.subr.bf16.mxu0 0
        %3139 = vmatpush1.bf16.msra.mxu0 0
        %3140 = vmatprep.subr.bf16.mxu0 0
        %3141 = vmatpush1.bf16.msra.mxu0 0
        %3142 = vmatprep.subr.bf16.mxu0 0
        %3143 = vmatpush1.bf16.msra.mxu0 0
        %3144 = vmatprep.subr.bf16.mxu0 0
        %3145 = vmatpush1.bf16.msra.mxu0 0
        %3146 = vmatprep.subr.bf16.mxu0 0
        %3147 = vmatpush1.bf16.msra.mxu0 0
        %3148 = vmatprep.subr.bf16.mxu0 0
        %3149 = vmatpush1.bf16.msra.mxu0 0
        %3150 = vmatprep.subr.bf16.mxu0 0
        %3151 = vmatpush1.bf16.msra.mxu0 0
        %3152 = vmatprep.subr.bf16.mxu0 0
        %3153 = vmatpush1.bf16.msra.mxu0 0
        %3154 = vmatprep.mubr.bf16.mxu0 0
        %3155 = vmatmul.mubr.bf16.gmra.mrb[0].mxu0 %v3117
        %v3156 = vpop.f32.mrb[0].mxu0
        %v3157 = vadd.f32 0.0, %v3156
        %v3158 = vpop.f32.mrb[0].mxu0
        %v3159 = vpop.f32.mrb[0].mxu0
        %v3160 = vpop.f32.mrb[0].mxu0
        %3161 = vdwg.mxu0
        %3163 = vrot.lane.b32.xlu0 %v2478, 64
        %v3164 = vpop.permute.xlu0 %3163
        %v3166 = vsel %vm1609, %v2962, 0
        %v3169 = vsel %vm1712, %v3164, 0
        %3171 = vmatprep.subr.bf16.mxu0 0
        %3172 = vmatpush1.bf16.msra.mxu0 %v3169
        %3173 = vmatprep.subr.bf16.mxu0 0
        %3174 = vmatpush1.bf16.msra.mxu0 0
        %3175 = vmatprep.subr.bf16.mxu0 0
        %3176 = vmatpush1.bf16.msra.mxu0 0
        %3177 = vmatprep.subr.bf16.mxu0 0
        %3178 = vmatpush1.bf16.msra.mxu0 0
        %3179 = vmatprep.subr.bf16.mxu0 0
        %3180 = vmatpush1.bf16.msra.mxu0 0
        %3181 = vmatprep.subr.bf16.mxu0 0
        %3182 = vmatpush1.bf16.msra.mxu0 0
        %3183 = vmatprep.subr.bf16.mxu0 0
        %3184 = vmatpush1.bf16.msra.mxu0 0
        %3185 = vmatprep.subr.bf16.mxu0 0
        %3186 = vmatpush1.bf16.msra.mxu0 0
        %3187 = vmatprep.subr.bf16.mxu0 0
        %3188 = vmatpush1.bf16.msra.mxu0 0
        %3189 = vmatprep.subr.bf16.mxu0 0
        %3190 = vmatpush1.bf16.msra.mxu0 0
        %3191 = vmatprep.subr.bf16.mxu0 0
        %3192 = vmatpush1.bf16.msra.mxu0 0
        %3193 = vmatprep.subr.bf16.mxu0 0
        %3194 = vmatpush1.bf16.msra.mxu0 0
        %3195 = vmatprep.subr.bf16.mxu0 0
        %3196 = vmatpush1.bf16.msra.mxu0 0
        %3197 = vmatprep.subr.bf16.mxu0 0
        %3198 = vmatpush1.bf16.msra.mxu0 0
        %3199 = vmatprep.subr.bf16.mxu0 0
        %3200 = vmatpush1.bf16.msra.mxu0 0
        %3201 = vmatprep.subr.bf16.mxu0 0
        %3202 = vmatpush1.bf16.msra.mxu0 0
        %3203 = vmatprep.mubr.bf16.mxu0 0
        %3204 = vmatmul.mubr.bf16.gmra.mrb[0].mxu0 %v3166
        %v3205 = vpop.f32.mrb[0].mxu0
        %v3206 = vadd.f32 0.0, %v3205
        %v3207 = vpop.f32.mrb[0].mxu0
        %v3208 = vpop.f32.mrb[0].mxu0
        %v3209 = vpop.f32.mrb[0].mxu0
        %3210 = vdwg.mxu0
        %3212 = vrot.lane.b32.xlu0 %v2479, 64
        %v3213 = vpop.permute.xlu0 %3212
        %v3215 = vsel %vm1609, %v2963, 0
        %v3218 = vsel %vm1712, %v3213, 0
        %3220 = vmatprep.subr.bf16.mxu0 0
        %3221 = vmatpush1.bf16.msra.mxu0 %v3218
        %3222 = vmatprep.subr.bf16.mxu0 0
        %3223 = vmatpush1.bf16.msra.mxu0 0
        %3224 = vmatprep.subr.bf16.mxu0 0
        %3225 = vmatpush1.bf16.msra.mxu0 0
        %3226 = vmatprep.subr.bf16.mxu0 0
        %3227 = vmatpush1.bf16.msra.mxu0 0
        %3228 = vmatprep.subr.bf16.mxu0 0
        %3229 = vmatpush1.bf16.msra.mxu0 0
        %3230 = vmatprep.subr.bf16.mxu0 0
        %3231 = vmatpush1.bf16.msra.mxu0 0
        %3232 = vmatprep.subr.bf16.mxu0 0
        %3233 = vmatpush1.bf16.msra.mxu0 0
        %3234 = vmatprep.subr.bf16.mxu0 0
        %3235 = vmatpush1.bf16.msra.mxu0 0
        %3236 = vmatprep.subr.bf16.mxu0 0
        %3237 = vmatpush1.bf16.msra.mxu0 0
        %3238 = vmatprep.subr.bf16.mxu0 0
        %3239 = vmatpush1.bf16.msra.mxu0 0
        %3240 = vmatprep.subr.bf16.mxu0 0
        %3241 = vmatpush1.bf16.msra.mxu0 0
        %3242 = vmatprep.subr.bf16.mxu0 0
        %3243 = vmatpush1.bf16.msra.mxu0 0
        %3244 = vmatprep.subr.bf16.mxu0 0
        %3245 = vmatpush1.bf16.msra.mxu0 0
        %3246 = vmatprep.subr.bf16.mxu0 0
        %3247 = vmatpush1.bf16.msra.mxu0 0
        %3248 = vmatprep.subr.bf16.mxu0 0
        %3249 = vmatpush1.bf16.msra.mxu0 0
        %3250 = vmatprep.subr.bf16.mxu0 0
        %3251 = vmatpush1.bf16.msra.mxu0 0
        %3252 = vmatprep.mubr.bf16.mxu0 0
        %3253 = vmatmul.mubr.bf16.gmra.mrb[0].mxu0 %v3215
        %v3254 = vpop.f32.mrb[0].mxu0
        %v3255 = vadd.f32 0.0, %v3254
        %v3256 = vpop.f32.mrb[0].mxu0
        %v3257 = vpop.f32.mrb[0].mxu0
        %v3258 = vpop.f32.mrb[0].mxu0
        %3259 = vdwg.mxu0
        %3261 = vrot.lane.b32.xlu0 %v2480, 64
        %v3262 = vpop.permute.xlu0 %3261
        %v3264 = vsel %vm1609, %v2964, 0
        %v3267 = vsel %vm1712, %v3262, 0
        %3269 = vmatprep.subr.bf16.mxu0 0
        %3270 = vmatpush1.bf16.msra.mxu0 %v3267
        %3271 = vmatprep.subr.bf16.mxu0 0
        %3272 = vmatpush1.bf16.msra.mxu0 0
        %3273 = vmatprep.subr.bf16.mxu0 0
        %3274 = vmatpush1.bf16.msra.mxu0 0
        %3275 = vmatprep.subr.bf16.mxu0 0
        %3276 = vmatpush1.bf16.msra.mxu0 0
        %3277 = vmatprep.subr.bf16.mxu0 0
        %3278 = vmatpush1.bf16.msra.mxu0 0
        %3279 = vmatprep.subr.bf16.mxu0 0
        %3280 = vmatpush1.bf16.msra.mxu0 0
        %3281 = vmatprep.subr.bf16.mxu0 0
        %3282 = vmatpush1.bf16.msra.mxu0 0
        %3283 = vmatprep.subr.bf16.mxu0 0
        %3284 = vmatpush1.bf16.msra.mxu0 0
        %3285 = vmatprep.subr.bf16.mxu0 0
        %3286 = vmatpush1.bf16.msra.mxu0 0
        %3287 = vmatprep.subr.bf16.mxu0 0
        %3288 = vmatpush1.bf16.msra.mxu0 0
        %3289 = vmatprep.subr.bf16.mxu0 0
        %3290 = vmatpush1.bf16.msra.mxu0 0
        %3291 = vmatprep.subr.bf16.mxu0 0
        %3292 = vmatpush1.bf16.msra.mxu0 0
        %3293 = vmatprep.subr.bf16.mxu0 0
        %3294 = vmatpush1.bf16.msra.mxu0 0
        %3295 = vmatprep.subr.bf16.mxu0 0
        %3296 = vmatpush1.bf16.msra.mxu0 0
        %3297 = vmatprep.subr.bf16.mxu0 0
        %3298 = vmatpush1.bf16.msra.mxu0 0
        %3299 = vmatprep.subr.bf16.mxu0 0
        %3300 = vmatpush1.bf16.msra.mxu0 0
        %3301 = vmatprep.mubr.bf16.mxu0 0
        %3302 = vmatmul.mubr.bf16.gmra.mrb[0].mxu0 %v3264
        %v3303 = vpop.f32.mrb[0].mxu0
        %v3304 = vadd.f32 0.0, %v3303
        %v3305 = vpop.f32.mrb[0].mxu0
        %v3306 = vpop.f32.mrb[0].mxu0
        %v3307 = vpop.f32.mrb[0].mxu0
        %3308 = vdwg.mxu0
        %3310 = vrot.lane.b32.xlu0 %v2481, 64
        %v3311 = vpop.permute.xlu0 %3310
        %v3313 = vsel %vm1609, %v2965, 0
        %v3316 = vsel %vm1712, %v3311, 0
        %3318 = vmatprep.subr.bf16.mxu0 0
        %3319 = vmatpush1.bf16.msra.mxu0 %v3316
        %3320 = vmatprep.subr.bf16.mxu0 0
        %3321 = vmatpush1.bf16.msra.mxu0 0
        %3322 = vmatprep.subr.bf16.mxu0 0
        %3323 = vmatpush1.bf16.msra.mxu0 0
        %3324 = vmatprep.subr.bf16.mxu0 0
        %3325 = vmatpush1.bf16.msra.mxu0 0
        %3326 = vmatprep.subr.bf16.mxu0 0
        %3327 = vmatpush1.bf16.msra.mxu0 0
        %3328 = vmatprep.subr.bf16.mxu0 0
        %3329 = vmatpush1.bf16.msra.mxu0 0
        %3330 = vmatprep.subr.bf16.mxu0 0
        %3331 = vmatpush1.bf16.msra.mxu0 0
        %3332 = vmatprep.subr.bf16.mxu0 0
        %3333 = vmatpush1.bf16.msra.mxu0 0
        %3334 = vmatprep.subr.bf16.mxu0 0
        %3335 = vmatpush1.bf16.msra.mxu0 0
        %3336 = vmatprep.subr.bf16.mxu0 0
        %3337 = vmatpush1.bf16.msra.mxu0 0
        %3338 = vmatprep.subr.bf16.mxu0 0
        %3339 = vmatpush1.bf16.msra.mxu0 0
        %3340 = vmatprep.subr.bf16.mxu0 0
        %3341 = vmatpush1.bf16.msra.mxu0 0
        %3342 = vmatprep.subr.bf16.mxu0 0
        %3343 = vmatpush1.bf16.msra.mxu0 0
        %3344 = vmatprep.subr.bf16.mxu0 0
        %3345 = vmatpush1.bf16.msra.mxu0 0
        %3346 = vmatprep.subr.bf16.mxu0 0
        %3347 = vmatpush1.bf16.msra.mxu0 0
        %3348 = vmatprep.subr.bf16.mxu0 0
        %3349 = vmatpush1.bf16.msra.mxu0 0
        %3350 = vmatprep.mubr.bf16.mxu0 0
        %3351 = vmatmul.mubr.bf16.gmra.mrb[0].mxu0 %v3313
        %v3352 = vpop.f32.mrb[0].mxu0
        %v3353 = vadd.f32 0.0, %v3352
        %v3354 = vpop.f32.mrb[0].mxu0
        %v3355 = vpop.f32.mrb[0].mxu0
        %v3356 = vpop.f32.mrb[0].mxu0
        %3357 = vdwg.mxu0
        %3360 = vrot.lane.b32.xlu0 %v3108, 16
        %v3361 = vpop.permute.xlu0 %3360
        %3362 = vrot.lane.b32.xlu0 %v3157, 16
        %v3363 = vpop.permute.xlu0 %3362
        %3368 = vrot.lane.b32.xlu0 %v3206, 32
        %v3369 = vpop.permute.xlu0 %3368
        %3370 = vrot.lane.b32.xlu0 %v3255, 32
        %v3371 = vpop.permute.xlu0 %3370
        %3376 = vrot.lane.b32.xlu0 %v3304, 48
        %v3377 = vpop.permute.xlu0 %3376
        %3378 = vrot.lane.b32.xlu0 %v3353, 48
        %v3379 = vpop.permute.xlu0 %3378
        %v3382 = vsel %vm1220, %v3010, %v3361
        %v3383 = vsel %vm1220, %v3059, %v3363
        %v3384 = vsel %vm2125, %v3382, %v3369
        %v3385 = vsel %vm2125, %v3383, %v3371
        %v3386 = vsel %vm2128, %v3384, %v3377
        %v3387 = vsel %vm2128, %v3385, %v3379
        %v3388 = vpack.c.bf16 %v3387, %v3386
        %v3390 = vlaneseq
        %v3391 = vshrl.u32 %v3390, 7
        %v3392 = vsub.s32 0, %v3391
        %v3393 = vrot.slane %v2273, %v3392
        %v3403 = vunpack.c.l.b16 %v2265
        %v3404 = vunpack.c.l.b16 %v2266
        %v3405 = vunpack.c.l.b16 %v2267
        %v3406 = vunpack.c.l.b16 %v2268
        %v3407 = vunpack.c.l.b16 %v2269
        %v3408 = vunpack.c.l.b16 %v2270
        %v3409 = vunpack.c.l.b16 %v2271
        %v3410 = vunpack.c.l.b16 %v2272
        %v3411 = vpack.c.b16 %v3404, %v3403
        %v3412 = vpack.c.b16 %v3406, %v3405
        %v3413 = vpack.c.b16 %v3408, %v3407
        %v3414 = vpack.c.b16 %v3410, %v3409
        %v3420 = vsel %vm1046, %v3388, 0
        %3422 = vmatprep.subr.bf16.mxu0 0
        %3423 = vmatpush1.bf16.msra.mxu0 %v3411
        %3424 = vmatprep.subr.bf16.mxu0 0
        %3425 = vmatpush1.bf16.msra.mxu0 %v3412
        %3426 = vmatprep.subr.bf16.mxu0 0
        %3427 = vmatpush1.bf16.msra.mxu0 %v3413
        %3428 = vmatprep.subr.bf16.mxu0 0
        %3429 = vmatpush1.bf16.msra.mxu0 %v3414
        %3430 = vmatprep.subr.bf16.mxu0 0
        %3431 = vmatpush1.bf16.msra.mxu0 0
        %3432 = vmatprep.subr.bf16.mxu0 0
        %3433 = vmatpush1.bf16.msra.mxu0 0
        %3434 = vmatprep.subr.bf16.mxu0 0
        %3435 = vmatpush1.bf16.msra.mxu0 0
        %3436 = vmatprep.subr.bf16.mxu0 0
        %3437 = vmatpush1.bf16.msra.mxu0 0
        %3438 = vmatprep.subr.bf16.mxu0 0
        %3439 = vmatpush1.bf16.msra.mxu0 0
        %3440 = vmatprep.subr.bf16.mxu0 0
        %3441 = vmatpush1.bf16.msra.mxu0 0
        %3442 = vmatprep.subr.bf16.mxu0 0
        %3443 = vmatpush1.bf16.msra.mxu0 0
        %3444 = vmatprep.subr.bf16.mxu0 0
        %3445 = vmatpush1.bf16.msra.mxu0 0
        %3446 = vmatprep.subr.bf16.mxu0 0
        %3447 = vmatpush1.bf16.msra.mxu0 0
        %3448 = vmatprep.subr.bf16.mxu0 0
        %3449 = vmatpush1.bf16.msra.mxu0 0
        %3450 = vmatprep.subr.bf16.mxu0 0
        %3451 = vmatpush1.bf16.msra.mxu0 0
        %3452 = vmatprep.subr.bf16.mxu0 0
        %3453 = vmatpush1.bf16.msra.mxu0 0
        %3454 = vmatprep.mubr.bf16.mxu0 0
        %3455 = vmatmul.mubr.bf16.gmra.mrb[0].mxu0 %v3420
        %v3456 = vpop.f32.mrb[0].mxu0
        %v3457 = vadd.f32 %v3393, %v3456
        %v3458 = vpop.f32.mrb[0].mxu0
        %v3459 = vpop.f32.mrb[0].mxu0
        %v3460 = vadd.f32 %v3393, %v3459
        %v3461 = vpop.f32.mrb[0].mxu0
        %3462 = vdwg.mxu0
        %v3463 = vadd.f32 %v3457, %v2245
        %v3464 = vadd.f32 %v3460, %v2246
        %v3465 = vsel %vm1046, %v3463, 0.0
        %3466 = vadd.xlane.f32.xlu0 %v3465
        %v3467 = vpop.xlane.xlu0 %3466
        %v3468 = vsel %vm1046, %v3464, 0.0
        %3469 = vadd.xlane.f32.xlu0 %v3468
        %v3470 = vpop.xlane.xlu0 %3469
        %v3471 = vmul.f32 %v3467, %v2214
        %v3472 = vmul.f32 %v3470, %v2214
        %v3473 = vsub.f32 %v3463, %v3471
        %v3474 = vsub.f32 %v3464, %v3472
        %v3475 = vmul.f32 %v3473, %v3473
        %v3476 = vmul.f32 %v3474, %v3474
        %v3477 = vsel %vm1046, %v3475, 0.0
        %3478 = vadd.xlane.f32.xlu0 %v3477
        %v3479 = vpop.xlane.xlu0 %3478
        %v3480 = vsel %vm1046, %v3476, 0.0
        %3481 = vadd.xlane.f32.xlu0 %v3480
        %v3482 = vpop.xlane.xlu0 %3481
        %v3483 = vmul.f32 %v3479, %v2214
        %v3484 = vmul.f32 %v3482, %v2214
        %v3485 = vadd.f32 %v3483, 1e-12
        %v3486 = vadd.f32 %v3484, 1e-12
        %v3487 = vrsqrt.pop %v3485
        %v3488 = vrsqrt.pop %v3486
        %v3489 = vmul.f32 %v3473, %v3487
        %v3490 = vmul.f32 %v3474, %v3488
        %v3491 = vlaneseq
        %v3492 = vshrl.u32 %v3491, 7
        %v3493 = vsub.s32 1, %v3492
        %v3494 = vrot.slane %v986, %v3493
        %v3495 = vmul.f32 %v3489, %v3494
        %v3496 = vmul.f32 %v3490, %v3494
        %v3497 = vlaneseq
        %v3498 = vshrl.u32 %v3497, 7
        %v3499 = vsub.s32 1, %v3498
        %v3500 = vrot.slane %v987, %v3499
        %v3501 = vadd.f32 %v3495, %v3500
        %v3502 = vadd.f32 %v3496, %v3500
        %v3503 = vpack.c.bf16 %v3502, %v3501
        %v3504 = vld [vmem:[#allocation25] sm:$0xf]
        %v3505 = vld [vmem:[#allocation25 + $0x4] sm:$0xf]
        %v3506 = vld [vmem:[#allocation25 + $0x8] sm:$0xf]
        %v3507 = vld [vmem:[#allocation25 + $0xc] sm:$0xf]
        %v3508 = vld [vmem:[#allocation25 + $0x10] sm:$0xf]
        %v3509 = vld [vmem:[#allocation25 + $0x14] sm:$0xf]
        %v3510 = vld [vmem:[#allocation25 + $0x18] sm:$0xf]
        %v3511 = vld [vmem:[#allocation25 + $0x1c] sm:$0xf]
        %v3512 = vld [vmem:[%s19] sm:$0x1]
        %v3514 = vlaneseq
        %v3515 = vshrl.u32 %v3514, 7
        %v3516 = vsub.s32 0, %v3515
        %v3517 = vrot.slane %v3512, %v3516
        %v3527 = vunpack.c.l.b16 %v3504
        %v3528 = vunpack.c.l.b16 %v3505
        %v3529 = vunpack.c.l.b16 %v3506
        %v3530 = vunpack.c.l.b16 %v3507
        %v3531 = vunpack.c.l.b16 %v3508
        %v3532 = vunpack.c.l.b16 %v3509
        %v3533 = vunpack.c.l.b16 %v3510
        %v3534 = vunpack.c.l.b16 %v3511
        %v3535 = vpack.c.b16 %v3528, %v3527
        %v3536 = vpack.c.b16 %v3530, %v3529
        %v3537 = vpack.c.b16 %v3532, %v3531
        %v3538 = vpack.c.b16 %v3534, %v3533
        %v3544 = vsel %vm1046, %v3503, 0
        %3546 = vmatprep.subr.bf16.mxu0 0
        %3547 = vmatpush1.bf16.msra.mxu0 %v3535
        %3548 = vmatprep.subr.bf16.mxu0 0
        %3549 = vmatpush1.bf16.msra.mxu0 %v3536
        %3550 = vmatprep.subr.bf16.mxu0 0
        %3551 = vmatpush1.bf16.msra.mxu0 %v3537
        %3552 = vmatprep.subr.bf16.mxu0 0
        %3553 = vmatpush1.bf16.msra.mxu0 %v3538
        %3554 = vmatprep.subr.bf16.mxu0 0
        %3555 = vmatpush1.bf16.msra.mxu0 0
        %3556 = vmatprep.subr.bf16.mxu0 0
        %3557 = vmatpush1.bf16.msra.mxu0 0
        %3558 = vmatprep.subr.bf16.mxu0 0
        %3559 = vmatpush1.bf16.msra.mxu0 0
        %3560 = vmatprep.subr.bf16.mxu0 0
        %3561 = vmatpush1.bf16.msra.mxu0 0
        %3562 = vmatprep.subr.bf16.mxu0 0
        %3563 = vmatpush1.bf16.msra.mxu0 0
        %3564 = vmatprep.subr.bf16.mxu0 0
        %3565 = vmatpush1.bf16.msra.mxu0 0
        %3566 = vmatprep.subr.bf16.mxu0 0
        %3567 = vmatpush1.bf16.msra.mxu0 0
        %3568 = vmatprep.subr.bf16.mxu0 0
        %3569 = vmatpush1.bf16.msra.mxu0 0
        %3570 = vmatprep.subr.bf16.mxu0 0
        %3571 = vmatpush1.bf16.msra.mxu0 0
        %3572 = vmatprep.subr.bf16.mxu0 0
        %3573 = vmatpush1.bf16.msra.mxu0 0
        %3574 = vmatprep.subr.bf16.mxu0 0
        %3575 = vmatpush1.bf16.msra.mxu0 0
        %3576 = vmatprep.subr.bf16.mxu0 0
        %3577 = vmatpush1.bf16.msra.mxu0 0
        %3578 = vmatprep.mubr.bf16.mxu0 0
        %3579 = vmatmul.mubr.bf16.gmra.mrb[0].mxu0 %v3544
        %v3580 = vpop.f32.mrb[0].mxu0
        %v3581 = vadd.f32 %v3517, %v3580
        %v3582 = vpop.f32.mrb[0].mxu0
        %v3583 = vpop.f32.mrb[0].mxu0
        %v3584 = vadd.f32 %v3517, %v3583
        %v3585 = vpop.f32.mrb[0].mxu0
        %3586 = vdwg.mxu0
        %v3587 = vmax.f32 %v3581, 0.0
        %v3588 = vmax.f32 %v3584, 0.0
        %v3589 = vpack.c.bf16 %v3588, %v3587
        %v3590 = vld [vmem:[%s20] sm:$0xf]
        %v3591 = vld [vmem:[%s20 + $0x4] sm:$0xf]
        %v3592 = vld [vmem:[%s20 + $0x8] sm:$0xf]
        %v3593 = vld [vmem:[%s20 + $0xc] sm:$0xf]
        %v3594 = vld [vmem:[%s20 + $0x10] sm:$0xf]
        %v3595 = vld [vmem:[%s20 + $0x14] sm:$0xf]
        %v3596 = vld [vmem:[%s20 + $0x18] sm:$0xf]
        %v3597 = vld [vmem:[%s20 + $0x1c] sm:$0xf]
        %v3598 = vld [vmem:[%s20 + $0x20] sm:$0xf]
        %v3599 = vld [vmem:[%s20 + $0x24] sm:$0xf]
        %v3600 = vld [vmem:[%s20 + $0x28] sm:$0xf]
        %v3601 = vld [vmem:[%s20 + $0x2c] sm:$0xf]
        %v3602 = vld [vmem:[%s20 + $0x30] sm:$0xf]
        %v3603 = vld [vmem:[%s20 + $0x34] sm:$0xf]
        %v3604 = vld [vmem:[%s20 + $0x38] sm:$0xf]
        %v3605 = vld [vmem:[%s20 + $0x3c] sm:$0xf]
        %v3606 = vld [vmem:[%s21] sm:$0x1]
        %v3608 = vlaneseq
        %v3609 = vshrl.u32 %v3608, 7
        %v3610 = vsub.s32 0, %v3609
        %v3611 = vrot.slane %v3606, %v3610
        %v3629 = vunpack.c.l.b16 %v3590
        %v3630 = vunpack.c.l.b16 %v3591
        %v3631 = vunpack.c.l.b16 %v3592
        %v3632 = vunpack.c.l.b16 %v3593
        %v3633 = vunpack.c.l.b16 %v3594
        %v3634 = vunpack.c.l.b16 %v3595
        %v3635 = vunpack.c.l.b16 %v3596
        %v3636 = vunpack.c.l.b16 %v3597
        %v3637 = vunpack.c.l.b16 %v3598
        %v3638 = vunpack.c.l.b16 %v3599
        %v3639 = vunpack.c.l.b16 %v3600
        %v3640 = vunpack.c.l.b16 %v3601
        %v3641 = vunpack.c.l.b16 %v3602
        %v3642 = vunpack.c.l.b16 %v3603
        %v3643 = vunpack.c.l.b16 %v3604
        %v3644 = vunpack.c.l.b16 %v3605
        %v3645 = vpack.c.b16 %v3630, %v3629
        %v3646 = vpack.c.b16 %v3632, %v3631
        %v3647 = vpack.c.b16 %v3634, %v3633
        %v3648 = vpack.c.b16 %v3636, %v3635
        %v3649 = vpack.c.b16 %v3638, %v3637
        %v3650 = vpack.c.b16 %v3640, %v3639
        %v3651 = vpack.c.b16 %v3642, %v3641
        %v3652 = vpack.c.b16 %v3644, %v3643
        %3661 = vmatprep.subr.bf16.mxu0 0
        %3662 = vmatpush1.bf16.msra.mxu0 %v3645
        %3663 = vmatprep.subr.bf16.mxu0 0
        %3664 = vmatpush1.bf16.msra.mxu0 %v3646
        %3665 = vmatprep.subr.bf16.mxu0 0
        %3666 = vmatpush1.bf16.msra.mxu0 %v3647
        %3667 = vmatprep.subr.bf16.mxu0 0
        %3668 = vmatpush1.bf16.msra.mxu0 %v3648
        %3669 = vmatprep.subr.bf16.mxu0 0
        %3670 = vmatpush1.bf16.msra.mxu0 %v3649
        %3671 = vmatprep.subr.bf16.mxu0 0
        %3672 = vmatpush1.bf16.msra.mxu0 %v3650
        %3673 = vmatprep.subr.bf16.mxu0 0
        %3674 = vmatpush1.bf16.msra.mxu0 %v3651
        %3675 = vmatprep.subr.bf16.mxu0 0
        %3676 = vmatpush1.bf16.msra.mxu0 %v3652
        %3677 = vmatprep.subr.bf16.mxu0 0
        %3678 = vmatpush1.bf16.msra.mxu0 0
        %3679 = vmatprep.subr.bf16.mxu0 0
        %3680 = vmatpush1.bf16.msra.mxu0 0
        %3681 = vmatprep.subr.bf16.mxu0 0
        %3682 = vmatpush1.bf16.msra.mxu0 0
        %3683 = vmatprep.subr.bf16.mxu0 0
        %3684 = vmatpush1.bf16.msra.mxu0 0
        %3685 = vmatprep.subr.bf16.mxu0 0
        %3686 = vmatpush1.bf16.msra.mxu0 0
        %3687 = vmatprep.subr.bf16.mxu0 0
        %3688 = vmatpush1.bf16.msra.mxu0 0
        %3689 = vmatprep.subr.bf16.mxu0 0
        %3690 = vmatpush1.bf16.msra.mxu0 0
        %3691 = vmatprep.subr.bf16.mxu0 0
        %3692 = vmatpush1.bf16.msra.mxu0 0
        %3693 = vmatprep.mubr.bf16.mxu0 0
        %3694 = vmatmul.mubr.bf16.gmra.mrb[0].mxu0 %v3589
        %v3695 = vpop.f32.mrb[0].mxu0
        %v3696 = vadd.f32 %v3611, %v3695
        %v3697 = vpop.f32.mrb[0].mxu0
        %v3698 = vpop.f32.mrb[0].mxu0
        %v3699 = vadd.f32 %v3611, %v3698
        %v3700 = vpop.f32.mrb[0].mxu0
        %3701 = vdwg.mxu0
        %v3702 = vadd.f32 %v3696, %v3501
        %v3703 = vadd.f32 %v3699, %v3502
        %v3704 = vsel %vm1046, %v3702, 0.0
        %3705 = vadd.xlane.f32.xlu0 %v3704
        %v3706 = vpop.xlane.xlu0 %3705
        %v3707 = vsel %vm1046, %v3703, 0.0
        %3708 = vadd.xlane.f32.xlu0 %v3707
        %v3709 = vpop.xlane.xlu0 %3708
        %v3710 = vmul.f32 %v3706, %v2214
        %v3711 = vmul.f32 %v3709, %v2214
        %v3712 = vsub.f32 %v3702, %v3710
        %v3713 = vsub.f32 %v3703, %v3711
        %v3714 = vmul.f32 %v3712, %v3712
        %v3715 = vmul.f32 %v3713, %v3713
        %v3716 = vsel %vm1046, %v3714, 0.0
        %3717 = vadd.xlane.f32.xlu0 %v3716
        %v3718 = vpop.xlane.xlu0 %3717
        %v3719 = vsel %vm1046, %v3715, 0.0
        %3720 = vadd.xlane.f32.xlu0 %v3719
        %v3721 = vpop.xlane.xlu0 %3720
        %v3722 = vmul.f32 %v3718, %v2214
        %v3723 = vmul.f32 %v3721, %v2214
        %v3724 = vadd.f32 %v3722, 1e-12
        %v3725 = vadd.f32 %v3723, 1e-12
        %v3726 = vrsqrt.pop %v3724
        %v3727 = vrsqrt.pop %v3725
        %v3728 = vmul.f32 %v3712, %v3726
        %v3729 = vmul.f32 %v3713, %v3727
        %v3730 = vlaneseq
        %v3731 = vshrl.u32 %v3730, 7
        %v3732 = vsub.s32 2, %v3731
        %v3733 = vrot.slane %v986, %v3732
        %v3734 = vmul.f32 %v3728, %v3733
        %v3735 = vmul.f32 %v3729, %v3733
        %v3736 = vlaneseq
        %v3737 = vshrl.u32 %v3736, 7
        %v3738 = vsub.s32 2, %v3737
        %v3739 = vrot.slane %v987, %v3738
        %v3740 = vadd.f32 %v3734, %v3739
        %v3741 = vadd.f32 %v3735, %v3739
        %3742 = vst.msk [vmem:[%s945] sm:$0xff] %vm1046, %v3740
        %3743 = vst.msk [vmem:[%s945 + $0x8] sm:$0xff] %vm1046, %v3741
        %s3744 = sand.u32 %s538, 1
        %s3745 = scalar_lea.sflag [#allocation4], %s3744
        %s3746 = sand.u32 %s538, 1
        %s3747 = smul.addr %s3746, 16
        %s3748 = scalar_lea.vmem [#allocation26], %s3747
        // Predicated region
        $region169: #{tpu_custom_call.1} parent=107 // pred_check
          %p3749 = pneg %p548
        $region170: #{tpu_custom_call.1} parent=107 // pred_check_branch
          %3751 = sbr.rel (%p3749) target = $region172
        $region171: #{tpu_custom_call.1} parent=107 // pred_region
          %s3752 = smul.u32 2, %s48
          %s3754 = ssub.s32 256, 256
          %3755 = vsyncadd %s3745, %s3754
          %s3756 = smul.addr %s3752, 128
          %s3757 = scalar_lea.hbm %s22, %s3756
          %s3758 = sshll.u32 %s3748, 4
          %s3759 = int_to_ptr.vmem [resolvable:$true] %s3758
          %3764 = dma.vmem_to_hbm [thread:$0]  %s3759, 256, %s3757, %s3745, 128, 128, 8
        $region172: #{tpu_custom_call.1} parent=107 // pred_fallthru
          _
      $region108: #{tpu_custom_call.1} parent=5 // pred_fallthru
        _
      %p3765 = scmp.le.s32.totalorder 2, %s43
      // Predicated region
      $region173: #{tpu_custom_call.1} parent=5 // pred_check
        %p3766 = pneg %p3765
      $region174: #{tpu_custom_call.1} parent=5 // pred_check_branch
        %3768 = sbr.rel (%p3766) target = $region176
      $region175: #{tpu_custom_call.1} parent=5 // pred_region
        %s3769 = ssub.s32 %s43, 2
        // Predicated region
        $region177: #{tpu_custom_call.1} parent=175 // pred_check
          %p3770 = pneg %p554
        $region178: #{tpu_custom_call.1} parent=175 // pred_check_branch
          %3772 = sbr.rel (%p3770) target = $region180
        $region179: #{tpu_custom_call.1} parent=175 // pred_region
          %s3773 = sand.u32 %s539, 1
          %s3774 = scalar_lea.sflag [#allocation4], %s3773
          %s3775 = sand.u32 %s539, 1
          %s3776 = smul.addr %s3775, 16
          %s3777 = scalar_lea.vmem [#allocation26], %s3776
          %3778 = dma.done %s3774, 256
        $region180: #{tpu_custom_call.1} parent=175 // pred_fallthru
          _
      $region176: #{tpu_custom_call.1} parent=5 // pred_fallthru
        _
    $region6: #{tpu_custom_call.1} parent=1 // loop_footer
      %s47 = sadd.s32 1, %s43
    $region7: #{tpu_custom_call.1} parent=1 // loop_footer_branch
      %42 = sbr.rel target = $region3
    $region8: #{tpu_custom_call.1} parent=1 // loop_exit
      _
    %3779 = vsyncpa [#allocation3], 1
    %s3780 = scalar_lea.sflag [#allocation3], 1
    %3781 = vsyncpa %s3780, 1
    %3782 = vsyncpa [#allocation6], 1
    %s3783 = scalar_lea.sflag [#allocation6], 1
    %3784 = vsyncpa %s3783, 1
    %3785 = vsyncpa [#allocation9], 1
    %3786 = vsyncpa [#allocation12], 1
    %3787 = vsyncpa [#allocation15], 1
    %3788 = vsyncpa [#allocation18], 1
    %3789 = vsyncpa [#allocation21], 1
    %3790 = vsyncpa [#allocation24], 1
    %3791 = vsyncpa [#allocation4], 1
    %s3792 = scalar_lea.sflag [#allocation4], 1
    %3793 = vsyncpa %s3792, 1

</llo_original>
